<compile_context>
chip_gen: v7x
topology: tpu7x:2x2x1
jax: 0.10.0
libtpu: 0.0.40
codegen_flags: <defaults>
</compile_context>

<pallas_src>
import functools

import jax
import jax.numpy as jnp
from jax.experimental import pallas as pl
from jax.experimental.pallas import tpu as pltpu


def mha_kernel(x_ref, wqkv_ref, wout_ref, bout_ref, o_ref, *, heads, dim_head, bt, n):
    # x_ref:    (bt*n, D)       flattened rows of the current batch block
    # wqkv_ref: (D, 3*H*Dh)     bf16, Q columns pre-scaled by dim_head**-0.5
    # wout_ref: (H*Dh, D)       bf16
    # bout_ref: (1, D)          f32
    # o_ref:    (bt*n, D)
    d = x_ref.shape[-1]
    inner = heads * dim_head
    m = bt * n
    groups = bt * heads

    # Fused QKV projection: one MXU matmul over all rows of the block,
    # bf16 operands with f32 accumulation, then a single bf16 pack of the slab.
    x2d = x_ref[...].astype(jnp.bfloat16)
    qkv = jnp.dot(x2d, wqkv_ref[...], preferred_element_type=jnp.float32)   # (m, 3*inner)
    qkv = qkv.astype(jnp.bfloat16)

    def split_heads(t2d):
        # (m, inner) -> (bt*H, n, Dh); the n<->H swap is the one unavoidable
        # relayout of multi-head attention (minor dim Dh unchanged).
        return (t2d.reshape(bt, n, heads, dim_head)
                   .transpose(0, 2, 1, 3)
                   .reshape(groups, n, dim_head))

    # 128-lane-aligned contiguous column slices of the bf16 slab.
    q = split_heads(qkv[:, :inner])            # scale already folded into W_q
    k = split_heads(qkv[:, inner:2 * inner])
    v = split_heads(qkv[:, 2 * inner:])

    # Batched QK^T over all (batch, head) pairs in one MXU stream; no explicit
    # transpose of k (contract last axes directly).
    s = jnp.einsum('gqd,gkd->gqk', q, k,
                   preferred_element_type=jnp.float32)                      # (G, n, n)
    s = s - jnp.max(s, axis=-1, keepdims=True)
    e = jnp.exp(s)
    attn = e * pl.reciprocal(jnp.sum(e, axis=-1, keepdims=True), approx=True)

    # Batched attn @ V, then merge heads back to one (m, inner) slab.
    o = jnp.einsum('gqk,gkd->gqd', attn.astype(jnp.bfloat16), v,
                   preferred_element_type=jnp.float32)                      # (G, n, Dh)
    out2d = (o.astype(jnp.bfloat16)
              .reshape(bt, heads, n, dim_head)
              .transpose(0, 2, 1, 3)
              .reshape(m, inner))                                           # (m, inner)

    # Single fused output projection (K = inner) + bias for the whole block.
    y = jnp.dot(out2d, wout_ref[...], preferred_element_type=jnp.float32) + bout_ref[...]
    o_ref[...] = y.astype(o_ref.dtype)
    # TODO(synk): optional `mask` path of the PyTorch module not implemented
    # (forward is exercised with mask=None); dropout is identity at p=0.0.


def _pick_block_batch(batch, seq, target_rows=256):
    """Largest divisor-of-batch bt with bt*seq <= target_rows (when possible).

    No forced multi-step grid: on single-TC chips (v5e/v6e) the grid is a
    serial loop, so shrinking bt only loses MXU M-fill and adds ~0.35us/step
    overhead.  target_rows=256 fills the 256x256 MXU on v6e/v7x and is a clean
    multiple of v5e's 128x128 MXUs.
    """
    bt = max(1, min(batch, target_rows // max(seq, 1)))
    while batch % bt:
        bt -= 1
    return bt


def _vmem_cap_bytes():
    """Generation-aware scoped-VMEM cap: ~80% of physical per-core VMEM
    (~51 MiB of v7x's 64 MiB, ~102 MiB of v5e/v6e's 128 MiB) so compiler
    scratch and double-buffered I/O always keep headroom."""
    try:
        cap = int(pltpu.get_tpu_info().vmem_capacity_bytes)
    except Exception:
        cap = 64 * 2**20   # conservative fallback: assume smallest (v7x per-TC)
    return (cap * 4) // 5


def multi_head_attention(x, w_qkv, w_out, b_out, *, heads):
    B, N, D = x.shape
    dim_head = D                      # the module hard-codes dim_head == dim
    inner = heads * dim_head
    scale = float(dim_head) ** -0.5

    # Wrapper-side prep (zero kernel cost):
    #   * fold the softmax scale into the Q block of the QKV weight,
    #   * cast resident weights to bf16 (MXU operands; f32 accumulate in-kernel),
    #   * flatten x to 2D so the kernel sees lane-contiguous (rows, D) blocks.
    w_qkv_p = w_qkv.at[:, :inner].multiply(scale).astype(jnp.bfloat16)   # (D, 3*inner)
    w_out_p = w_out.astype(jnp.bfloat16)                                 # (inner, D)
    b_out_p = b_out.reshape(1, D).astype(jnp.float32)
    x2d = x.reshape(B * N, D)

    bt = _pick_block_batch(B, N)
    grid = (B // bt,)
    rows = bt * N

    kernel = functools.partial(mha_kernel, heads=heads, dim_head=dim_head, bt=bt, n=N)

    # Rough VMEM budget: resident bf16 weights (x2 if double-buffered) +
    # double-buffered x/o blocks + the f32/bf16 qkv slab, batched scores and
    # per-head outputs.
    itemsize = x.dtype.itemsize
    weight_bytes = (w_qkv_p.size + w_out_p.size) * 2 + b_out_p.size * 4
    io_bytes = 2 * 2 * rows * D * itemsize
    interm_bytes = (rows * (3 * inner) * (4 + 2)          # qkv f32 + bf16 slab
                    + bt * heads * N * N * 4 * 2          # scores / probs f32
                    + rows * inner * (4 + 2))             # head outputs + merged bf16
    est = 2 * weight_bytes + io_bytes + interm_bytes

    vmem_cap = _vmem_cap_bytes()
    vmem_limit = int(min(max(2 * est, 32 * 2**20), vmem_cap))

    # Single-buffer the grid-invariant weights when double-buffering them would
    # eat a significant slice of VMEM (irrelevant at small D, first thing that
    # matters when D/inner grow, especially on v7x's 64 MiB).
    single_buffer_weights = (2 * weight_bytes) > (vmem_limit // 4)

    def w_spec(shape):
        if single_buffer_weights:
            return pl.BlockSpec(shape, lambda g: (0, 0), pipeline_mode=pl.Buffered(1))
        return pl.BlockSpec(shape, lambda g: (0, 0))

    out2d = pl.pallas_call(
        kernel,
        out_shape=jax.ShapeDtypeStruct((B * N, D), x.dtype),
        grid_spec=pltpu.PrefetchScalarGridSpec(
            num_scalar_prefetch=0,
            grid=grid,
            in_specs=[
                pl.BlockSpec((rows, D), lambda g: (g, 0)),
                w_spec((D, 3 * inner)),
                w_spec((inner, D)),
                pl.BlockSpec((1, D), lambda g: (0, 0)),
            ],
            out_specs=pl.BlockSpec((rows, D), lambda g: (g, 0)),
        ),
        compiler_params=pltpu.CompilerParams(
            dimension_semantics=("parallel",),
            vmem_limit_bytes=vmem_limit,
        ),
    )(x2d, w_qkv_p, w_out_p, b_out_p)

    return out2d.reshape(B, N, D)


def reference_mha(x, w_qkv, w_out, b_out, *, heads):
    B, N, D = x.shape
    dim_head = D
    inner = heads * dim_head
    scale = dim_head ** -0.5
    qkv = x @ w_qkv                                   # (B, N, 3*inner)
    q, k, v = jnp.split(qkv, 3, axis=-1)

    def to_heads(t):
        return t.reshape(B, N, heads, dim_head).transpose(0, 2, 1, 3)

    q, k, v = map(to_heads, (q, k, v))                # (B, H, N, Dh)
    dots = jnp.einsum('bhid,bhjd->bhij', q, k) * scale
    attn = jax.nn.softmax(dots, axis=-1)
    out = jnp.einsum('bhij,bhjd->bhid', attn, v)
    out = out.transpose(0, 2, 1, 3).reshape(B, N, inner)
    return out @ w_out + b_out


if __name__ == "__main__":
    # Small shapes consistent with the module: batch=2, seq=8, dim=32, heads=8.
    B, N, D, H = 2, 8, 32, 8
    dim_head = D
    inner = H * dim_head

    key = jax.random.PRNGKey(0)
    k1, k2, k3, k4 = jax.random.split(key, 4)

    x = jax.random.normal(k1, (B, N, D), dtype=jnp.float32)

    # PyTorch Linear stores weight as (out, in); build and pass transposed.
    bound_qkv = 1.0 / (D ** 0.5)
    w_qkv_t = jax.random.uniform(k2, (3 * inner, D), jnp.float32,
                                 -bound_qkv, bound_qkv)
    bound_out = 1.0 / (inner ** 0.5)
    w_out_t = jax.random.uniform(k3, (D, inner), jnp.float32,
                                 -bound_out, bound_out)
    b_out = jax.random.uniform(k4, (D,), jnp.float32, -bound_out, bound_out)

    w_qkv = w_qkv_t.T                 # (D, 3*inner)
    w_out = w_out_t.T                 # (inner, D)

    out = multi_head_attention(x, w_qkv, w_out, b_out, heads=H)
    out = jax.block_until_ready(out)

    ref = reference_mha(x, w_qkv, w_out, b_out, heads=H)
    assert out.shape == (B, N, D)
    # bf16 MXU operands (f32 accumulate) + approx reciprocal -> loosened tol.
    assert jnp.allclose(out, ref, atol=5e-2, rtol=5e-2), \
        f"max err {jnp.max(jnp.abs(out - ref))}"

    print("KERNEL_OK")
</pallas_src>

<mosaic_0001>
module attributes {stable_mosaic.version = 11 : i64} {
  func.func @mha_kernel(%arg0: i32, %arg1: memref<16x32xf32, #tpu.memory_space<vmem>>, %arg2: memref<32x768xbf16, #tpu.memory_space<vmem>>, %arg3: memref<256x32xbf16, #tpu.memory_space<vmem>>, %arg4: memref<1x32xf32, #tpu.memory_space<vmem>>, %arg5: memref<16x32xf32, #tpu.memory_space<vmem>>) attributes {dimension_semantics = [#tpu.dimension_semantics<parallel>], iteration_bounds = array<i64: 1>, scalar_prefetch = 0 : i64, scratch_operands = 0 : i64, tpu.core_type = #tpu.core_type<tc>, window_params = [{transform_indices = @transform_0, window_bounds = array<i64: 16, 32>}, {pipeline_mode = #tpu.pipeline_mode<synchronous>, transform_indices = @transform_1, window_bounds = array<i64: 32, 768>}, {pipeline_mode = #tpu.pipeline_mode<synchronous>, transform_indices = @transform_2, window_bounds = array<i64: 256, 32>}, {pipeline_mode = #tpu.pipeline_mode<synchronous>, transform_indices = @transform_3, window_bounds = array<i64: 1, 32>}, {transform_indices = @transform_4, window_bounds = array<i64: 16, 32>}]} {
    %c0 = arith.constant 0 : index
    %c0_0 = arith.constant 0 : index
    %0 = vector.load %arg1[%c0, %c0_0] : memref<16x32xf32, #tpu.memory_space<vmem>>, vector<16x32xf32>
    %1 = arith.truncf %0 : vector<16x32xf32> to vector<16x32xbf16>
    %c0_1 = arith.constant 0 : index
    %c0_2 = arith.constant 0 : index
    %2 = vector.load %arg2[%c0_1, %c0_2] : memref<32x768xbf16, #tpu.memory_space<vmem>>, vector<32x768xbf16>
    %cst = arith.constant dense<0.000000e+00> : vector<16x768xf32>
    %3 = tpu.matmul %1, %2, %cst {dimension_numbers = #tpu.dot_dimension_numbers<[1], [0], [0], [1], [0, 0, 1, 1], [], []>} : vector<16x32xbf16>, vector<32x768xbf16>, vector<16x768xf32> -> vector<16x768xf32>
    %4 = arith.truncf %3 : vector<16x768xf32> to vector<16x768xbf16>
    %5 = vector.extract_strided_slice %4 {offsets = [0, 0], sizes = [16, 256], strides = [1, 1]} : vector<16x768xbf16> to vector<16x256xbf16>
    %6 = vector.shape_cast %5 : vector<16x256xbf16> to vector<2x8x8x32xbf16>
    %7 = tpu.transpose %6, [0, 2, 1, 3] : vector<2x8x8x32xbf16> -> vector<2x8x8x32xbf16>
    %8 = vector.shape_cast %7 : vector<2x8x8x32xbf16> to vector<16x8x32xbf16>
    %9 = vector.extract_strided_slice %4 {offsets = [0, 256], sizes = [16, 256], strides = [1, 1]} : vector<16x768xbf16> to vector<16x256xbf16>
    %10 = vector.shape_cast %9 : vector<16x256xbf16> to vector<2x8x8x32xbf16>
    %11 = tpu.transpose %10, [0, 2, 1, 3] : vector<2x8x8x32xbf16> -> vector<2x8x8x32xbf16>
    %12 = vector.shape_cast %11 : vector<2x8x8x32xbf16> to vector<16x8x32xbf16>
    %13 = vector.extract_strided_slice %4 {offsets = [0, 512], sizes = [16, 256], strides = [1, 1]} : vector<16x768xbf16> to vector<16x256xbf16>
    %14 = vector.shape_cast %13 : vector<16x256xbf16> to vector<2x8x8x32xbf16>
    %15 = tpu.transpose %14, [0, 2, 1, 3] : vector<2x8x8x32xbf16> -> vector<2x8x8x32xbf16>
    %16 = vector.shape_cast %15 : vector<2x8x8x32xbf16> to vector<16x8x32xbf16>
    "tpu.trace_start"() <{level = 10 : i32, message = "gqd,gkd->gqk"}> : () -> ()
    %cst_3 = arith.constant dense<0.000000e+00> : vector<16x8x8xf32>
    %17 = tpu.matmul %8, %12, %cst_3 {dimension_numbers = #tpu.dot_dimension_numbers<[2], [2], [1], [1], [0, 0, 0, 1, 1, 1], [0], [0]>} : vector<16x8x32xbf16>, vector<16x8x32xbf16>, vector<16x8x8xf32> -> vector<16x8x8xf32>
    "tpu.trace_stop"() : () -> ()
    %cst_4 = arith.constant dense<0xFF800000> : vector<16x8xf32>
    %18 = vector.multi_reduction <maximumf>, %17, %cst_4 [2] : vector<16x8x8xf32> to vector<16x8xf32>
    %19 = vector.shape_cast %18 : vector<16x8xf32> to vector<16x8x1xf32>
    %20 = vector.broadcast %19 : vector<16x8x1xf32> to vector<16x8x8xf32>
    %21 = arith.subf %17, %20 : vector<16x8x8xf32>
    %22 = math.exp %21 : vector<16x8x8xf32>
    %cst_5 = arith.constant dense<0.000000e+00> : vector<16x8xf32>
    %23 = vector.multi_reduction <add>, %22, %cst_5 [2] : vector<16x8x8xf32> to vector<16x8xf32>
    %24 = vector.shape_cast %23 : vector<16x8xf32> to vector<16x8x1xf32>
    %25 = tpu.reciprocal %24 {approx = true} : vector<16x8x1xf32> -> vector<16x8x1xf32>
    %26 = vector.broadcast %25 : vector<16x8x1xf32> to vector<16x8x8xf32>
    %27 = arith.mulf %22, %26 : vector<16x8x8xf32>
    %28 = arith.truncf %27 : vector<16x8x8xf32> to vector<16x8x8xbf16>
    "tpu.trace_start"() <{level = 10 : i32, message = "gqk,gkd->gqd"}> : () -> ()
    %cst_6 = arith.constant dense<0.000000e+00> : vector<16x8x32xf32>
    %29 = tpu.matmul %28, %16, %cst_6 {dimension_numbers = #tpu.dot_dimension_numbers<[2], [1], [1], [2], [0, 0, 0, 1, 1, 2], [0], [0]>} : vector<16x8x8xbf16>, vector<16x8x32xbf16>, vector<16x8x32xf32> -> vector<16x8x32xf32>
    "tpu.trace_stop"() : () -> ()
    %30 = arith.truncf %29 : vector<16x8x32xf32> to vector<16x8x32xbf16>
    %31 = vector.shape_cast %30 : vector<16x8x32xbf16> to vector<2x8x8x32xbf16>
    %32 = tpu.transpose %31, [0, 2, 1, 3] : vector<2x8x8x32xbf16> -> vector<2x8x8x32xbf16>
    %33 = vector.shape_cast %32 : vector<2x8x8x32xbf16> to vector<16x256xbf16>
    %c0_7 = arith.constant 0 : index
    %c0_8 = arith.constant 0 : index
    %34 = vector.load %arg3[%c0_7, %c0_8] : memref<256x32xbf16, #tpu.memory_space<vmem>>, vector<256x32xbf16>
    %cst_9 = arith.constant dense<0.000000e+00> : vector<16x32xf32>
    %35 = tpu.matmul %33, %34, %cst_9 {dimension_numbers = #tpu.dot_dimension_numbers<[1], [0], [0], [1], [0, 0, 1, 1], [], []>} : vector<16x256xbf16>, vector<256x32xbf16>, vector<16x32xf32> -> vector<16x32xf32>
    %c0_10 = arith.constant 0 : index
    %c0_11 = arith.constant 0 : index
    %36 = vector.load %arg4[%c0_10, %c0_11] : memref<1x32xf32, #tpu.memory_space<vmem>>, vector<1x32xf32>
    %37 = vector.broadcast %36 : vector<1x32xf32> to vector<16x32xf32>
    %38 = arith.addf %35, %37 : vector<16x32xf32>
    %c0_12 = arith.constant 0 : index
    %c0_13 = arith.constant 0 : index
    %39 = vector.load %arg5[%c0_12, %c0_13] : memref<16x32xf32, #tpu.memory_space<vmem>>, vector<16x32xf32>
    tpu.vector_store %arg5[%c0_12, %c0_13], %38 {strides = array<i32>} : memref<16x32xf32, #tpu.memory_space<vmem>>, vector<16x32xf32>,
    return
  }
  func.func @transform_0(%arg0: i32) -> (i32, i32) {
    %c0_i32 = arith.constant 0 : i32
    %c0_i32_0 = arith.constant 0 : i32
    return %arg0, %c0_i32 : i32, i32
  }
  func.func @transform_1(%arg0: i32) -> (i32, i32) {
    %c0_i32 = arith.constant 0 : i32
    %c0_i32_0 = arith.constant 0 : i32
    %c0_i32_1 = arith.constant 0 : i32
    return %c0_i32, %c0_i32_0 : i32, i32
  }
  func.func @transform_2(%arg0: i32) -> (i32, i32) {
    %c0_i32 = arith.constant 0 : i32
    %c0_i32_0 = arith.constant 0 : i32
    %c0_i32_1 = arith.constant 0 : i32
    return %c0_i32, %c0_i32_0 : i32, i32
  }
  func.func @transform_3(%arg0: i32) -> (i32, i32) {
    %c0_i32 = arith.constant 0 : i32
    %c0_i32_0 = arith.constant 0 : i32
    %c0_i32_1 = arith.constant 0 : i32
    return %c0_i32, %c0_i32_0 : i32, i32
  }
  func.func @transform_4(%arg0: i32) -> (i32, i32) {
    %c0_i32 = arith.constant 0 : i32
    %c0_i32_0 = arith.constant 0 : i32
    return %arg0, %c0_i32 : i32, i32
  }
}

</mosaic_0001>

<llo_original>
// kernel: tpu_custom_call.1
$region0: #{tpu_custom_call.1}
  #allocation0 [shape = 'u32[]', space=smem, size = 0x4, offset = 0x4, fixed_abs, tag = 'smem constant byte address 0x4 - core index']
  #allocation1 [shape = 'u32[144,128]{1,0:T(1,128)}', space=vmem, size = 0x12000, scoped, tag = 'internal scratch']
  %s0 = inlined_call_operand.vmem [shape: f32[16,32], index: 0, kind: input, shape index: {}]
  %s1 = inlined_call_operand.vmem [shape: bf16[32,768], index: 1, kind: input, shape index: {}]
  %s2 = inlined_call_operand.vmem [shape: bf16[256,32], index: 2, kind: input, shape index: {}]
  %s3 = inlined_call_operand.vmem [shape: f32[1,32], index: 3, kind: input, shape index: {}]
  %s4 = inlined_call_operand.hbm [shape: f32[16,32], index: 4, kind: output, shape index: {}]
  %s5 = sld [smem:[#allocation0]]
  $region26: #{tpu_custom_call.1} parent=0
    _
  %s7 = ssub.s32 1, %s5
  %s8 = scalar_select 0, %s7, %s5
  $region1: #{tpu_custom_call.1} parent=0
    #allocation2 [shape = 'u8[8192]{0}', space=vmem, size = 0x2000, scoped, tag = 'output window, operand 0, single buffered']
    #allocation3 [shape = 's32[1]{0}', space=sflag, size = 0x4, scoped, tag = 'scoped memory for tpu_custom_call.1']
    %9 = vsyncpa [#allocation3], 0
    // Predicated region
    $region2: #{tpu_custom_call.1} parent=1 // pred_check
      _
    $region3: #{tpu_custom_call.1} parent=1 // pred_check_branch
      %11 = sbr.rel (0) target = $region5
    $region4: #{tpu_custom_call.1} parent=1 // pred_region
      _
    $region5: #{tpu_custom_call.1} parent=1 // pred_fallthru
      _
    // Predicated region
    $region6: #{tpu_custom_call.1} parent=1 // pred_check
      _
    $region7: #{tpu_custom_call.1} parent=1 // pred_check_branch
      %13 = sbr.rel (0) target = $region9
    $region8: #{tpu_custom_call.1} parent=1 // pred_region
      _
    $region9: #{tpu_custom_call.1} parent=1 // pred_fallthru
      _
    // Predicated region
    $region10: #{tpu_custom_call.1} parent=1 // pred_check
      _
    $region11: #{tpu_custom_call.1} parent=1 // pred_check_branch
      %15 = sbr.rel (0) target = $region13
    $region12: #{tpu_custom_call.1} parent=1 // pred_region
      _
    $region13: #{tpu_custom_call.1} parent=1 // pred_fallthru
      _
    // Predicated region
    $region14: #{tpu_custom_call.1} parent=1 // pred_check
      _
    $region15: #{tpu_custom_call.1} parent=1 // pred_check_branch
      %17 = sbr.rel (0) target = $region17
    $region16: #{tpu_custom_call.1} parent=1 // pred_region
      _
    $region17: #{tpu_custom_call.1} parent=1 // pred_fallthru
      _
    %v19 = vld [vmem:[%s0] sm:$0xff]
    %v20 = vld [vmem:[%s0 + $0x8] sm:$0xff]
    %v21 = vpack.c.bf16 %v20, %v19
    %v22 = vld [vmem:[%s1] sm:$0xff]
    %v23 = vld [vmem:[%s1 + $0x8] sm:$0xff]
    %v24 = vld [vmem:[%s1 + $0x10] sm:$0xff]
    %v25 = vld [vmem:[%s1 + $0x18] sm:$0xff]
    %v26 = vld [vmem:[%s1 + $0x20] sm:$0xff]
    %v27 = vld [vmem:[%s1 + $0x28] sm:$0xff]
    %v28 = vld [vmem:[%s1 + $0x30] sm:$0xff]
    %v29 = vld [vmem:[%s1 + $0x38] sm:$0xff]
    %v30 = vld [vmem:[%s1 + $0x40] sm:$0xff]
    %v31 = vld [vmem:[%s1 + $0x48] sm:$0xff]
    %v32 = vld [vmem:[%s1 + $0x50] sm:$0xff]
    %v33 = vld [vmem:[%s1 + $0x58] sm:$0xff]
    %v46 = vunpack.c.l.b16 %v22
    %v47 = vunpack.c.h.b16 %v22
    %v48 = vunpack.c.l.b16 %v23
    %v49 = vunpack.c.h.b16 %v23
    %v50 = vunpack.c.l.b16 %v24
    %v51 = vunpack.c.h.b16 %v24
    %v52 = vunpack.c.l.b16 %v25
    %v53 = vunpack.c.h.b16 %v25
    %v54 = vunpack.c.l.b16 %v26
    %v55 = vunpack.c.h.b16 %v26
    %v56 = vunpack.c.l.b16 %v27
    %v57 = vunpack.c.h.b16 %v27
    %v58 = vunpack.c.l.b16 %v28
    %v59 = vunpack.c.h.b16 %v28
    %v60 = vunpack.c.l.b16 %v29
    %v61 = vunpack.c.h.b16 %v29
    %v62 = vunpack.c.l.b16 %v30
    %v63 = vunpack.c.h.b16 %v30
    %v64 = vunpack.c.l.b16 %v31
    %v65 = vunpack.c.h.b16 %v31
    %v66 = vunpack.c.l.b16 %v32
    %v67 = vunpack.c.h.b16 %v32
    %v68 = vunpack.c.l.b16 %v33
    %v69 = vunpack.c.h.b16 %v33
    %v70 = vpack.c.b16 %v52, %v46
    %v71 = vpack.c.b16 %v53, %v47
    %v72 = vpack.c.b16 %v54, %v48
    %v73 = vpack.c.b16 %v55, %v49
    %v74 = vpack.c.b16 %v56, %v50
    %v75 = vpack.c.b16 %v57, %v51
    %v76 = vpack.c.b16 %v64, %v58
    %v77 = vpack.c.b16 %v65, %v59
    %v78 = vpack.c.b16 %v66, %v60
    %v79 = vpack.c.b16 %v67, %v61
    %v80 = vpack.c.b16 %v68, %v62
    %v81 = vpack.c.b16 %v69, %v63
    %vm94 = vcmask 261120
    %v96 = vsel %vm94, %v21, 0
    %98 = vmatprep.subr.bf16.mxu0 %v71
    %99 = vmatpush1.bf16.msra.mxu0 %v70
    %100 = vmatprep.subr.bf16.mxu0 %v77
    %101 = vmatpush1.bf16.msra.mxu0 %v76
    %102 = vmatprep.subr.bf16.mxu0 0
    %103 = vmatpush1.bf16.msra.mxu0 0
    %104 = vmatprep.subr.bf16.mxu0 0
    %105 = vmatpush1.bf16.msra.mxu0 0
    %106 = vmatprep.subr.bf16.mxu0 0
    %107 = vmatpush1.bf16.msra.mxu0 0
    %108 = vmatprep.subr.bf16.mxu0 0
    %109 = vmatpush1.bf16.msra.mxu0 0
    %110 = vmatprep.subr.bf16.mxu0 0
    %111 = vmatpush1.bf16.msra.mxu0 0
    %112 = vmatprep.subr.bf16.mxu0 0
    %113 = vmatpush1.bf16.msra.mxu0 0
    %114 = vmatprep.subr.bf16.mxu0 0
    %115 = vmatpush1.bf16.msra.mxu0 0
    %116 = vmatprep.subr.bf16.mxu0 0
    %117 = vmatpush1.bf16.msra.mxu0 0
    %118 = vmatprep.subr.bf16.mxu0 0
    %119 = vmatpush1.bf16.msra.mxu0 0
    %120 = vmatprep.subr.bf16.mxu0 0
    %121 = vmatpush1.bf16.msra.mxu0 0
    %122 = vmatprep.subr.bf16.mxu0 0
    %123 = vmatpush1.bf16.msra.mxu0 0
    %124 = vmatprep.subr.bf16.mxu0 0
    %125 = vmatpush1.bf16.msra.mxu0 0
    %126 = vmatprep.subr.bf16.mxu0 0
    %127 = vmatpush1.bf16.msra.mxu0 0
    %128 = vmatprep.subr.bf16.mxu0 0
    %129 = vmatpush1.bf16.msra.mxu0 0
    %130 = vmatprep.mubr.bf16.mxu0 0
    %131 = vmatmul.mubr.bf16.gmra.mrb[0].mxu0 %v96
    %v132 = vpop.f32.mrb[0].mxu0
    %v133 = vadd.f32 0.0, %v132
    %v134 = vpop.f32.mrb[0].mxu0
    %v135 = vadd.f32 0.0, %v134
    %v136 = vpop.f32.mrb[0].mxu0
    %v137 = vadd.f32 0.0, %v136
    %v138 = vpop.f32.mrb[0].mxu0
    %v139 = vadd.f32 0.0, %v138
    %140 = vdwg.mxu0
    %141 = vmatprep.subr.bf16.mxu0 %v73
    %142 = vmatpush1.bf16.msra.mxu0 %v72
    %143 = vmatprep.subr.bf16.mxu0 %v79
    %144 = vmatpush1.bf16.msra.mxu0 %v78
    %145 = vmatprep.subr.bf16.mxu0 0
    %146 = vmatpush1.bf16.msra.mxu0 0
    %147 = vmatprep.subr.bf16.mxu0 0
    %148 = vmatpush1.bf16.msra.mxu0 0
    %149 = vmatprep.subr.bf16.mxu0 0
    %150 = vmatpush1.bf16.msra.mxu0 0
    %151 = vmatprep.subr.bf16.mxu0 0
    %152 = vmatpush1.bf16.msra.mxu0 0
    %153 = vmatprep.subr.bf16.mxu0 0
    %154 = vmatpush1.bf16.msra.mxu0 0
    %155 = vmatprep.subr.bf16.mxu0 0
    %156 = vmatpush1.bf16.msra.mxu0 0
    %157 = vmatprep.subr.bf16.mxu0 0
    %158 = vmatpush1.bf16.msra.mxu0 0
    %159 = vmatprep.subr.bf16.mxu0 0
    %160 = vmatpush1.bf16.msra.mxu0 0
    %161 = vmatprep.subr.bf16.mxu0 0
    %162 = vmatpush1.bf16.msra.mxu0 0
    %163 = vmatprep.subr.bf16.mxu0 0
    %164 = vmatpush1.bf16.msra.mxu0 0
    %165 = vmatprep.subr.bf16.mxu0 0
    %166 = vmatpush1.bf16.msra.mxu0 0
    %167 = vmatprep.subr.bf16.mxu0 0
    %168 = vmatpush1.bf16.msra.mxu0 0
    %169 = vmatprep.subr.bf16.mxu0 0
    %170 = vmatpush1.bf16.msra.mxu0 0
    %171 = vmatprep.subr.bf16.mxu0 0
    %172 = vmatpush1.bf16.msra.mxu0 0
    %173 = vmatprep.mubr.bf16.mxu0 0
    %174 = vmatmul.mubr.bf16.gmra.mrb[0].mxu0 %v96
    %v175 = vpop.f32.mrb[0].mxu0
    %v176 = vadd.f32 0.0, %v175
    %v177 = vpop.f32.mrb[0].mxu0
    %v178 = vadd.f32 0.0, %v177
    %v179 = vpop.f32.mrb[0].mxu0
    %v180 = vadd.f32 0.0, %v179
    %v181 = vpop.f32.mrb[0].mxu0
    %v182 = vadd.f32 0.0, %v181
    %183 = vdwg.mxu0
    %184 = vmatprep.subr.bf16.mxu0 %v75
    %185 = vmatpush1.bf16.msra.mxu0 %v74
    %186 = vmatprep.subr.bf16.mxu0 %v81
    %187 = vmatpush1.bf16.msra.mxu0 %v80
    %188 = vmatprep.subr.bf16.mxu0 0
    %189 = vmatpush1.bf16.msra.mxu0 0
    %190 = vmatprep.subr.bf16.mxu0 0
    %191 = vmatpush1.bf16.msra.mxu0 0
    %192 = vmatprep.subr.bf16.mxu0 0
    %193 = vmatpush1.bf16.msra.mxu0 0
    %194 = vmatprep.subr.bf16.mxu0 0
    %195 = vmatpush1.bf16.msra.mxu0 0
    %196 = vmatprep.subr.bf16.mxu0 0
    %197 = vmatpush1.bf16.msra.mxu0 0
    %198 = vmatprep.subr.bf16.mxu0 0
    %199 = vmatpush1.bf16.msra.mxu0 0
    %200 = vmatprep.subr.bf16.mxu0 0
    %201 = vmatpush1.bf16.msra.mxu0 0
    %202 = vmatprep.subr.bf16.mxu0 0
    %203 = vmatpush1.bf16.msra.mxu0 0
    %204 = vmatprep.subr.bf16.mxu0 0
    %205 = vmatpush1.bf16.msra.mxu0 0
    %206 = vmatprep.subr.bf16.mxu0 0
    %207 = vmatpush1.bf16.msra.mxu0 0
    %208 = vmatprep.subr.bf16.mxu0 0
    %209 = vmatpush1.bf16.msra.mxu0 0
    %210 = vmatprep.subr.bf16.mxu0 0
    %211 = vmatpush1.bf16.msra.mxu0 0
    %212 = vmatprep.subr.bf16.mxu0 0
    %213 = vmatpush1.bf16.msra.mxu0 0
    %214 = vmatprep.subr.bf16.mxu0 0
    %215 = vmatpush1.bf16.msra.mxu0 0
    %216 = vmatprep.mubr.bf16.mxu0 0
    %217 = vmatmul.mubr.bf16.gmra.mrb[0].mxu0 %v96
    %v218 = vpop.f32.mrb[0].mxu0
    %v219 = vadd.f32 0.0, %v218
    %v220 = vpop.f32.mrb[0].mxu0
    %v221 = vadd.f32 0.0, %v220
    %v222 = vpop.f32.mrb[0].mxu0
    %v223 = vadd.f32 0.0, %v222
    %v224 = vpop.f32.mrb[0].mxu0
    %v225 = vadd.f32 0.0, %v224
    %226 = vdwg.mxu0
    %v227 = vpack.c.bf16 %v137, %v133
    %v228 = vpack.c.bf16 %v139, %v135
    %v229 = vpack.c.bf16 %v180, %v176
    %v230 = vpack.c.bf16 %v182, %v178
    %v231 = vpack.c.bf16 %v223, %v219
    %v232 = vpack.c.bf16 %v225, %v221
    %234 = vrot.lane.b32.xlu0 %v227, 96
    %v235 = vpop.permute.xlu0 %234
    %236 = vrot.lane.b32.xlu0 %v227, 64
    %v237 = vpop.permute.xlu0 %236
    %238 = vrot.lane.b32.xlu0 %v227, 32
    %v239 = vpop.permute.xlu0 %238
    %241 = vrot.lane.b32.xlu0 %v228, 96
    %v242 = vpop.permute.xlu0 %241
    %243 = vrot.lane.b32.xlu0 %v228, 64
    %v244 = vpop.permute.xlu0 %243
    %245 = vrot.lane.b32.xlu0 %v228, 32
    %v246 = vpop.permute.xlu0 %245
    %v249 = vpack.i.b16 %v235, %v227
    %v251 = vshrl.u32 %v227, 16
    %v252 = vshrl.u32 %v235, 16
    %v253 = vpack.i.b16 %v252, %v251
    %v257 = vpack.i.b16 %v239, %v237
    %v259 = vshrl.u32 %v237, 16
    %v260 = vshrl.u32 %v239, 16
    %v261 = vpack.i.b16 %v260, %v259
    %v265 = vpack.i.b16 %v242, %v228
    %v267 = vshrl.u32 %v228, 16
    %v268 = vshrl.u32 %v242, 16
    %v269 = vpack.i.b16 %v268, %v267
    %v273 = vpack.i.b16 %v246, %v244
    %v275 = vshrl.u32 %v244, 16
    %v276 = vshrl.u32 %v246, 16
    %v277 = vpack.i.b16 %v276, %v275
    %v279 = vcombine.low %v249, %v265
    %v280 = vcombine.high %v249, %v265
    %v282 = vunpack.c.l.s4 1983009808
    %v283 = vunpack.c.0.s8 %v282
    %v284 = vlaneseq
    %v285 = vshrl.u32 %v284, 7
    %v286 = vsub.s32 %v283, %v285
    %v287 = vrot.slane %v279, %v286
    %v289 = vunpack.c.l.s4 1983009808
    %v290 = vunpack.c.0.s8 %v289
    %v291 = vlaneseq
    %v292 = vshrl.u32 %v291, 7
    %v293 = vsub.s32 %v290, %v292
    %v294 = vrot.slane %v280, %v293
    %v295 = vcombine.low %v257, %v273
    %v296 = vcombine.high %v257, %v273
    %v298 = vunpack.c.l.s4 1983009808
    %v299 = vunpack.c.0.s8 %v298
    %v300 = vlaneseq
    %v301 = vshrl.u32 %v300, 7
    %v302 = vsub.s32 %v299, %v301
    %v303 = vrot.slane %v295, %v302
    %v305 = vunpack.c.l.s4 1983009808
    %v306 = vunpack.c.0.s8 %v305
    %v307 = vlaneseq
    %v308 = vshrl.u32 %v307, 7
    %v309 = vsub.s32 %v306, %v308
    %v310 = vrot.slane %v296, %v309
    %v311 = vcombine.low %v287, %v303
    %v312 = vcombine.high %v287, %v303
    %v314 = vunpack.c.l.s4 1934713408
    %v315 = vunpack.c.0.s8 %v314
    %v316 = vlaneseq
    %v317 = vshrl.u32 %v316, 7
    %v318 = vsub.s32 %v315, %v317
    %v319 = vrot.slane %v311, %v318
    %v321 = vunpack.c.l.s4 1934713408
    %v322 = vunpack.c.0.s8 %v321
    %v323 = vlaneseq
    %v324 = vshrl.u32 %v323, 7
    %v325 = vsub.s32 %v322, %v324
    %v326 = vrot.slane %v312, %v325
    %v327 = vcombine.low %v294, %v310
    %v328 = vcombine.high %v294, %v310
    %v330 = vunpack.c.l.s4 1934713408
    %v331 = vunpack.c.0.s8 %v330
    %v332 = vlaneseq
    %v333 = vshrl.u32 %v332, 7
    %v334 = vsub.s32 %v331, %v333
    %v335 = vrot.slane %v327, %v334
    %v337 = vunpack.c.l.s4 1934713408
    %v338 = vunpack.c.0.s8 %v337
    %v339 = vlaneseq
    %v340 = vshrl.u32 %v339, 7
    %v341 = vsub.s32 %v338, %v340
    %v342 = vrot.slane %v328, %v341
    %v343 = vcombine.high %v319, 0
    %v344 = vcombine.high %v326, 0
    %v345 = vcombine.high %v335, 0
    %v346 = vcombine.high %v342, 0
    %v347 = vcombine.low %v253, %v269
    %v348 = vcombine.high %v253, %v269
    %v350 = vunpack.c.l.s4 1983009808
    %v351 = vunpack.c.0.s8 %v350
    %v352 = vlaneseq
    %v353 = vshrl.u32 %v352, 7
    %v354 = vsub.s32 %v351, %v353
    %v355 = vrot.slane %v347, %v354
    %v357 = vunpack.c.l.s4 1983009808
    %v358 = vunpack.c.0.s8 %v357
    %v359 = vlaneseq
    %v360 = vshrl.u32 %v359, 7
    %v361 = vsub.s32 %v358, %v360
    %v362 = vrot.slane %v348, %v361
    %v363 = vcombine.low %v261, %v277
    %v364 = vcombine.high %v261, %v277
    %v366 = vunpack.c.l.s4 1983009808
    %v367 = vunpack.c.0.s8 %v366
    %v368 = vlaneseq
    %v369 = vshrl.u32 %v368, 7
    %v370 = vsub.s32 %v367, %v369
    %v371 = vrot.slane %v363, %v370
    %v373 = vunpack.c.l.s4 1983009808
    %v374 = vunpack.c.0.s8 %v373
    %v375 = vlaneseq
    %v376 = vshrl.u32 %v375, 7
    %v377 = vsub.s32 %v374, %v376
    %v378 = vrot.slane %v364, %v377
    %v379 = vcombine.low %v355, %v371
    %v380 = vcombine.high %v355, %v371
    %v382 = vunpack.c.l.s4 1934713408
    %v383 = vunpack.c.0.s8 %v382
    %v384 = vlaneseq
    %v385 = vshrl.u32 %v384, 7
    %v386 = vsub.s32 %v383, %v385
    %v387 = vrot.slane %v379, %v386
    %v389 = vunpack.c.l.s4 1934713408
    %v390 = vunpack.c.0.s8 %v389
    %v391 = vlaneseq
    %v392 = vshrl.u32 %v391, 7
    %v393 = vsub.s32 %v390, %v392
    %v394 = vrot.slane %v380, %v393
    %v395 = vcombine.low %v362, %v378
    %v396 = vcombine.high %v362, %v378
    %v398 = vunpack.c.l.s4 1934713408
    %v399 = vunpack.c.0.s8 %v398
    %v400 = vlaneseq
    %v401 = vshrl.u32 %v400, 7
    %v402 = vsub.s32 %v399, %v401
    %v403 = vrot.slane %v395, %v402
    %v405 = vunpack.c.l.s4 1934713408
    %v406 = vunpack.c.0.s8 %v405
    %v407 = vlaneseq
    %v408 = vshrl.u32 %v407, 7
    %v409 = vsub.s32 %v406, %v408
    %v410 = vrot.slane %v396, %v409
    %v411 = vcombine.high %v387, 0
    %v412 = vcombine.high %v394, 0
    %v413 = vcombine.high %v403, 0
    %v414 = vcombine.high %v410, 0
    %v415 = vcombine.low %v319, %v326
    %v417 = vunpack.c.l.s4 1983009808
    %v418 = vunpack.c.0.s8 %v417
    %v419 = vlaneseq
    %v420 = vshrl.u32 %v419, 7
    %v421 = vsub.s32 %v418, %v420
    %v422 = vrot.slane %v415, %v421
    %v423 = vcombine.low %v343, %v344
    %v425 = vunpack.c.l.s4 1983009808
    %v426 = vunpack.c.0.s8 %v425
    %v427 = vlaneseq
    %v428 = vshrl.u32 %v427, 7
    %v429 = vsub.s32 %v426, %v428
    %v430 = vrot.slane %v423, %v429
    %v431 = vcombine.low %v422, %v430
    %v432 = vcombine.high %v422, %v430
    %v434 = vunpack.c.l.s4 1934713408
    %v435 = vunpack.c.0.s8 %v434
    %v436 = vlaneseq
    %v437 = vshrl.u32 %v436, 7
    %v438 = vsub.s32 %v435, %v437
    %v439 = vrot.slane %v431, %v438
    %v441 = vunpack.c.l.s4 1934713408
    %v442 = vunpack.c.0.s8 %v441
    %v443 = vlaneseq
    %v444 = vshrl.u32 %v443, 7
    %v445 = vsub.s32 %v442, %v444
    %v446 = vrot.slane %v432, %v445
    %v447 = vcombine.high %v439, 0
    %v448 = vcombine.high %v446, 0
    %v449 = vcombine.low %v387, %v394
    %v451 = vunpack.c.l.s4 1983009808
    %v452 = vunpack.c.0.s8 %v451
    %v453 = vlaneseq
    %v454 = vshrl.u32 %v453, 7
    %v455 = vsub.s32 %v452, %v454
    %v456 = vrot.slane %v449, %v455
    %v457 = vcombine.low %v411, %v412
    %v459 = vunpack.c.l.s4 1983009808
    %v460 = vunpack.c.0.s8 %v459
    %v461 = vlaneseq
    %v462 = vshrl.u32 %v461, 7
    %v463 = vsub.s32 %v460, %v462
    %v464 = vrot.slane %v457, %v463
    %v465 = vcombine.low %v456, %v464
    %v466 = vcombine.high %v456, %v464
    %v468 = vunpack.c.l.s4 1934713408
    %v469 = vunpack.c.0.s8 %v468
    %v470 = vlaneseq
    %v471 = vshrl.u32 %v470, 7
    %v472 = vsub.s32 %v469, %v471
    %v473 = vrot.slane %v465, %v472
    %v475 = vunpack.c.l.s4 1934713408
    %v476 = vunpack.c.0.s8 %v475
    %v477 = vlaneseq
    %v478 = vshrl.u32 %v477, 7
    %v479 = vsub.s32 %v476, %v478
    %v480 = vrot.slane %v466, %v479
    %v481 = vcombine.high %v473, 0
    %v482 = vcombine.high %v480, 0
    %v483 = vcombine.low %v335, %v342
    %v485 = vunpack.c.l.s4 1983009808
    %v486 = vunpack.c.0.s8 %v485
    %v487 = vlaneseq
    %v488 = vshrl.u32 %v487, 7
    %v489 = vsub.s32 %v486, %v488
    %v490 = vrot.slane %v483, %v489
    %v491 = vcombine.low %v345, %v346
    %v493 = vunpack.c.l.s4 1983009808
    %v494 = vunpack.c.0.s8 %v493
    %v495 = vlaneseq
    %v496 = vshrl.u32 %v495, 7
    %v497 = vsub.s32 %v494, %v496
    %v498 = vrot.slane %v491, %v497
    %v499 = vcombine.low %v490, %v498
    %v500 = vcombine.high %v490, %v498
    %v502 = vunpack.c.l.s4 1934713408
    %v503 = vunpack.c.0.s8 %v502
    %v504 = vlaneseq
    %v505 = vshrl.u32 %v504, 7
    %v506 = vsub.s32 %v503, %v505
    %v507 = vrot.slane %v499, %v506
    %v509 = vunpack.c.l.s4 1934713408
    %v510 = vunpack.c.0.s8 %v509
    %v511 = vlaneseq
    %v512 = vshrl.u32 %v511, 7
    %v513 = vsub.s32 %v510, %v512
    %v514 = vrot.slane %v500, %v513
    %v515 = vcombine.high %v507, 0
    %v516 = vcombine.high %v514, 0
    %v517 = vcombine.low %v403, %v410
    %v519 = vunpack.c.l.s4 1983009808
    %v520 = vunpack.c.0.s8 %v519
    %v521 = vlaneseq
    %v522 = vshrl.u32 %v521, 7
    %v523 = vsub.s32 %v520, %v522
    %v524 = vrot.slane %v517, %v523
    %v525 = vcombine.low %v413, %v414
    %v527 = vunpack.c.l.s4 1983009808
    %v528 = vunpack.c.0.s8 %v527
    %v529 = vlaneseq
    %v530 = vshrl.u32 %v529, 7
    %v531 = vsub.s32 %v528, %v530
    %v532 = vrot.slane %v525, %v531
    %v533 = vcombine.low %v524, %v532
    %v534 = vcombine.high %v524, %v532
    %v536 = vunpack.c.l.s4 1934713408
    %v537 = vunpack.c.0.s8 %v536
    %v538 = vlaneseq
    %v539 = vshrl.u32 %v538, 7
    %v540 = vsub.s32 %v537, %v539
    %v541 = vrot.slane %v533, %v540
    %v543 = vunpack.c.l.s4 1934713408
    %v544 = vunpack.c.0.s8 %v543
    %v545 = vlaneseq
    %v546 = vshrl.u32 %v545, 7
    %v547 = vsub.s32 %v544, %v546
    %v548 = vrot.slane %v534, %v547
    %v549 = vcombine.high %v541, 0
    %v550 = vcombine.high %v548, 0
    %v553 = vpack.i.b16 %v473, %v439
    %v554 = vshrl.u32 %v439, 16
    %v555 = vshrl.u32 %v473, 16
    %v556 = vpack.i.b16 %v555, %v554
    %v559 = vpack.i.b16 %v481, %v447
    %v560 = vshrl.u32 %v447, 16
    %v561 = vshrl.u32 %v481, 16
    %v562 = vpack.i.b16 %v561, %v560
    %v565 = vpack.i.b16 %v480, %v446
    %v566 = vshrl.u32 %v446, 16
    %v567 = vshrl.u32 %v480, 16
    %v568 = vpack.i.b16 %v567, %v566
    %v571 = vpack.i.b16 %v482, %v448
    %v572 = vshrl.u32 %v448, 16
    %v573 = vshrl.u32 %v482, 16
    %v574 = vpack.i.b16 %v573, %v572
    %v577 = vpack.i.b16 %v541, %v507
    %v578 = vshrl.u32 %v507, 16
    %v579 = vshrl.u32 %v541, 16
    %v580 = vpack.i.b16 %v579, %v578
    %v583 = vpack.i.b16 %v549, %v515
    %v584 = vshrl.u32 %v515, 16
    %v585 = vshrl.u32 %v549, 16
    %v586 = vpack.i.b16 %v585, %v584
    %v589 = vpack.i.b16 %v548, %v514
    %v590 = vshrl.u32 %v514, 16
    %v591 = vshrl.u32 %v548, 16
    %v592 = vpack.i.b16 %v591, %v590
    %v595 = vpack.i.b16 %v550, %v516
    %v596 = vshrl.u32 %v516, 16
    %v597 = vshrl.u32 %v550, 16
    %v598 = vpack.i.b16 %v597, %v596
    %600 = vrot.lane.b32.xlu0 %v229, 96
    %v601 = vpop.permute.xlu0 %600
    %602 = vrot.lane.b32.xlu0 %v229, 64
    %v603 = vpop.permute.xlu0 %602
    %604 = vrot.lane.b32.xlu0 %v229, 32
    %v605 = vpop.permute.xlu0 %604
    %607 = vrot.lane.b32.xlu0 %v230, 96
    %v608 = vpop.permute.xlu0 %607
    %609 = vrot.lane.b32.xlu0 %v230, 64
    %v610 = vpop.permute.xlu0 %609
    %611 = vrot.lane.b32.xlu0 %v230, 32
    %v612 = vpop.permute.xlu0 %611
    %v615 = vpack.i.b16 %v601, %v229
    %v617 = vshrl.u32 %v229, 16
    %v618 = vshrl.u32 %v601, 16
    %v619 = vpack.i.b16 %v618, %v617
    %v623 = vpack.i.b16 %v605, %v603
    %v625 = vshrl.u32 %v603, 16
    %v626 = vshrl.u32 %v605, 16
    %v627 = vpack.i.b16 %v626, %v625
    %v631 = vpack.i.b16 %v608, %v230
    %v633 = vshrl.u32 %v230, 16
    %v634 = vshrl.u32 %v608, 16
    %v635 = vpack.i.b16 %v634, %v633
    %v639 = vpack.i.b16 %v612, %v610
    %v641 = vshrl.u32 %v610, 16
    %v642 = vshrl.u32 %v612, 16
    %v643 = vpack.i.b16 %v642, %v641
    %v645 = vcombine.low %v615, %v631
    %v646 = vcombine.high %v615, %v631
    %v648 = vunpack.c.l.s4 1983009808
    %v649 = vunpack.c.0.s8 %v648
    %v650 = vlaneseq
    %v651 = vshrl.u32 %v650, 7
    %v652 = vsub.s32 %v649, %v651
    %v653 = vrot.slane %v645, %v652
    %v655 = vunpack.c.l.s4 1983009808
    %v656 = vunpack.c.0.s8 %v655
    %v657 = vlaneseq
    %v658 = vshrl.u32 %v657, 7
    %v659 = vsub.s32 %v656, %v658
    %v660 = vrot.slane %v646, %v659
    %v661 = vcombine.low %v623, %v639
    %v662 = vcombine.high %v623, %v639
    %v664 = vunpack.c.l.s4 1983009808
    %v665 = vunpack.c.0.s8 %v664
    %v666 = vlaneseq
    %v667 = vshrl.u32 %v666, 7
    %v668 = vsub.s32 %v665, %v667
    %v669 = vrot.slane %v661, %v668
    %v671 = vunpack.c.l.s4 1983009808
    %v672 = vunpack.c.0.s8 %v671
    %v673 = vlaneseq
    %v674 = vshrl.u32 %v673, 7
    %v675 = vsub.s32 %v672, %v674
    %v676 = vrot.slane %v662, %v675
    %v677 = vcombine.low %v653, %v669
    %v678 = vcombine.high %v653, %v669
    %v680 = vunpack.c.l.s4 1934713408
    %v681 = vunpack.c.0.s8 %v680
    %v682 = vlaneseq
    %v683 = vshrl.u32 %v682, 7
    %v684 = vsub.s32 %v681, %v683
    %v685 = vrot.slane %v677, %v684
    %v687 = vunpack.c.l.s4 1934713408
    %v688 = vunpack.c.0.s8 %v687
    %v689 = vlaneseq
    %v690 = vshrl.u32 %v689, 7
    %v691 = vsub.s32 %v688, %v690
    %v692 = vrot.slane %v678, %v691
    %v693 = vcombine.low %v660, %v676
    %v694 = vcombine.high %v660, %v676
    %v696 = vunpack.c.l.s4 1934713408
    %v697 = vunpack.c.0.s8 %v696
    %v698 = vlaneseq
    %v699 = vshrl.u32 %v698, 7
    %v700 = vsub.s32 %v697, %v699
    %v701 = vrot.slane %v693, %v700
    %v703 = vunpack.c.l.s4 1934713408
    %v704 = vunpack.c.0.s8 %v703
    %v705 = vlaneseq
    %v706 = vshrl.u32 %v705, 7
    %v707 = vsub.s32 %v704, %v706
    %v708 = vrot.slane %v694, %v707
    %v709 = vcombine.high %v685, 0
    %v710 = vcombine.high %v692, 0
    %v711 = vcombine.high %v701, 0
    %v712 = vcombine.high %v708, 0
    %v713 = vcombine.low %v619, %v635
    %v714 = vcombine.high %v619, %v635
    %v716 = vunpack.c.l.s4 1983009808
    %v717 = vunpack.c.0.s8 %v716
    %v718 = vlaneseq
    %v719 = vshrl.u32 %v718, 7
    %v720 = vsub.s32 %v717, %v719
    %v721 = vrot.slane %v713, %v720
    %v723 = vunpack.c.l.s4 1983009808
    %v724 = vunpack.c.0.s8 %v723
    %v725 = vlaneseq
    %v726 = vshrl.u32 %v725, 7
    %v727 = vsub.s32 %v724, %v726
    %v728 = vrot.slane %v714, %v727
    %v729 = vcombine.low %v627, %v643
    %v730 = vcombine.high %v627, %v643
    %v732 = vunpack.c.l.s4 1983009808
    %v733 = vunpack.c.0.s8 %v732
    %v734 = vlaneseq
    %v735 = vshrl.u32 %v734, 7
    %v736 = vsub.s32 %v733, %v735
    %v737 = vrot.slane %v729, %v736
    %v739 = vunpack.c.l.s4 1983009808
    %v740 = vunpack.c.0.s8 %v739
    %v741 = vlaneseq
    %v742 = vshrl.u32 %v741, 7
    %v743 = vsub.s32 %v740, %v742
    %v744 = vrot.slane %v730, %v743
    %v745 = vcombine.low %v721, %v737
    %v746 = vcombine.high %v721, %v737
    %v748 = vunpack.c.l.s4 1934713408
    %v749 = vunpack.c.0.s8 %v748
    %v750 = vlaneseq
    %v751 = vshrl.u32 %v750, 7
    %v752 = vsub.s32 %v749, %v751
    %v753 = vrot.slane %v745, %v752
    %v755 = vunpack.c.l.s4 1934713408
    %v756 = vunpack.c.0.s8 %v755
    %v757 = vlaneseq
    %v758 = vshrl.u32 %v757, 7
    %v759 = vsub.s32 %v756, %v758
    %v760 = vrot.slane %v746, %v759
    %v761 = vcombine.low %v728, %v744
    %v762 = vcombine.high %v728, %v744
    %v764 = vunpack.c.l.s4 1934713408
    %v765 = vunpack.c.0.s8 %v764
    %v766 = vlaneseq
    %v767 = vshrl.u32 %v766, 7
    %v768 = vsub.s32 %v765, %v767
    %v769 = vrot.slane %v761, %v768
    %v771 = vunpack.c.l.s4 1934713408
    %v772 = vunpack.c.0.s8 %v771
    %v773 = vlaneseq
    %v774 = vshrl.u32 %v773, 7
    %v775 = vsub.s32 %v772, %v774
    %v776 = vrot.slane %v762, %v775
    %v777 = vcombine.high %v753, 0
    %v778 = vcombine.high %v760, 0
    %v779 = vcombine.high %v769, 0
    %v780 = vcombine.high %v776, 0
    %v781 = vcombine.low %v685, %v692
    %v783 = vunpack.c.l.s4 1983009808
    %v784 = vunpack.c.0.s8 %v783
    %v785 = vlaneseq
    %v786 = vshrl.u32 %v785, 7
    %v787 = vsub.s32 %v784, %v786
    %v788 = vrot.slane %v781, %v787
    %v789 = vcombine.low %v709, %v710
    %v791 = vunpack.c.l.s4 1983009808
    %v792 = vunpack.c.0.s8 %v791
    %v793 = vlaneseq
    %v794 = vshrl.u32 %v793, 7
    %v795 = vsub.s32 %v792, %v794
    %v796 = vrot.slane %v789, %v795
    %v797 = vcombine.low %v788, %v796
    %v798 = vcombine.high %v788, %v796
    %v800 = vunpack.c.l.s4 1934713408
    %v801 = vunpack.c.0.s8 %v800
    %v802 = vlaneseq
    %v803 = vshrl.u32 %v802, 7
    %v804 = vsub.s32 %v801, %v803
    %v805 = vrot.slane %v797, %v804
    %v807 = vunpack.c.l.s4 1934713408
    %v808 = vunpack.c.0.s8 %v807
    %v809 = vlaneseq
    %v810 = vshrl.u32 %v809, 7
    %v811 = vsub.s32 %v808, %v810
    %v812 = vrot.slane %v798, %v811
    %v813 = vcombine.high %v805, 0
    %v814 = vcombine.high %v812, 0
    %v815 = vcombine.low %v753, %v760
    %v817 = vunpack.c.l.s4 1983009808
    %v818 = vunpack.c.0.s8 %v817
    %v819 = vlaneseq
    %v820 = vshrl.u32 %v819, 7
    %v821 = vsub.s32 %v818, %v820
    %v822 = vrot.slane %v815, %v821
    %v823 = vcombine.low %v777, %v778
    %v825 = vunpack.c.l.s4 1983009808
    %v826 = vunpack.c.0.s8 %v825
    %v827 = vlaneseq
    %v828 = vshrl.u32 %v827, 7
    %v829 = vsub.s32 %v826, %v828
    %v830 = vrot.slane %v823, %v829
    %v831 = vcombine.low %v822, %v830
    %v832 = vcombine.high %v822, %v830
    %v834 = vunpack.c.l.s4 1934713408
    %v835 = vunpack.c.0.s8 %v834
    %v836 = vlaneseq
    %v837 = vshrl.u32 %v836, 7
    %v838 = vsub.s32 %v835, %v837
    %v839 = vrot.slane %v831, %v838
    %v841 = vunpack.c.l.s4 1934713408
    %v842 = vunpack.c.0.s8 %v841
    %v843 = vlaneseq
    %v844 = vshrl.u32 %v843, 7
    %v845 = vsub.s32 %v842, %v844
    %v846 = vrot.slane %v832, %v845
    %v847 = vcombine.high %v839, 0
    %v848 = vcombine.high %v846, 0
    %v849 = vcombine.low %v701, %v708
    %v851 = vunpack.c.l.s4 1983009808
    %v852 = vunpack.c.0.s8 %v851
    %v853 = vlaneseq
    %v854 = vshrl.u32 %v853, 7
    %v855 = vsub.s32 %v852, %v854
    %v856 = vrot.slane %v849, %v855
    %v857 = vcombine.low %v711, %v712
    %v859 = vunpack.c.l.s4 1983009808
    %v860 = vunpack.c.0.s8 %v859
    %v861 = vlaneseq
    %v862 = vshrl.u32 %v861, 7
    %v863 = vsub.s32 %v860, %v862
    %v864 = vrot.slane %v857, %v863
    %v865 = vcombine.low %v856, %v864
    %v866 = vcombine.high %v856, %v864
    %v868 = vunpack.c.l.s4 1934713408
    %v869 = vunpack.c.0.s8 %v868
    %v870 = vlaneseq
    %v871 = vshrl.u32 %v870, 7
    %v872 = vsub.s32 %v869, %v871
    %v873 = vrot.slane %v865, %v872
    %v875 = vunpack.c.l.s4 1934713408
    %v876 = vunpack.c.0.s8 %v875
    %v877 = vlaneseq
    %v878 = vshrl.u32 %v877, 7
    %v879 = vsub.s32 %v876, %v878
    %v880 = vrot.slane %v866, %v879
    %v881 = vcombine.high %v873, 0
    %v882 = vcombine.high %v880, 0
    %v883 = vcombine.low %v769, %v776
    %v885 = vunpack.c.l.s4 1983009808
    %v886 = vunpack.c.0.s8 %v885
    %v887 = vlaneseq
    %v888 = vshrl.u32 %v887, 7
    %v889 = vsub.s32 %v886, %v888
    %v890 = vrot.slane %v883, %v889
    %v891 = vcombine.low %v779, %v780
    %v893 = vunpack.c.l.s4 1983009808
    %v894 = vunpack.c.0.s8 %v893
    %v895 = vlaneseq
    %v896 = vshrl.u32 %v895, 7
    %v897 = vsub.s32 %v894, %v896
    %v898 = vrot.slane %v891, %v897
    %v899 = vcombine.low %v890, %v898
    %v900 = vcombine.high %v890, %v898
    %v902 = vunpack.c.l.s4 1934713408
    %v903 = vunpack.c.0.s8 %v902
    %v904 = vlaneseq
    %v905 = vshrl.u32 %v904, 7
    %v906 = vsub.s32 %v903, %v905
    %v907 = vrot.slane %v899, %v906
    %v909 = vunpack.c.l.s4 1934713408
    %v910 = vunpack.c.0.s8 %v909
    %v911 = vlaneseq
    %v912 = vshrl.u32 %v911, 7
    %v913 = vsub.s32 %v910, %v912
    %v914 = vrot.slane %v900, %v913
    %v915 = vcombine.high %v907, 0
    %v916 = vcombine.high %v914, 0
    %v919 = vpack.i.b16 %v839, %v805
    %v920 = vshrl.u32 %v805, 16
    %v921 = vshrl.u32 %v839, 16
    %v922 = vpack.i.b16 %v921, %v920
    %v925 = vpack.i.b16 %v847, %v813
    %v926 = vshrl.u32 %v813, 16
    %v927 = vshrl.u32 %v847, 16
    %v928 = vpack.i.b16 %v927, %v926
    %v931 = vpack.i.b16 %v846, %v812
    %v932 = vshrl.u32 %v812, 16
    %v933 = vshrl.u32 %v846, 16
    %v934 = vpack.i.b16 %v933, %v932
    %v937 = vpack.i.b16 %v848, %v814
    %v938 = vshrl.u32 %v814, 16
    %v939 = vshrl.u32 %v848, 16
    %v940 = vpack.i.b16 %v939, %v938
    %v943 = vpack.i.b16 %v907, %v873
    %v944 = vshrl.u32 %v873, 16
    %v945 = vshrl.u32 %v907, 16
    %v946 = vpack.i.b16 %v945, %v944
    %v949 = vpack.i.b16 %v915, %v881
    %v950 = vshrl.u32 %v881, 16
    %v951 = vshrl.u32 %v915, 16
    %v952 = vpack.i.b16 %v951, %v950
    %v955 = vpack.i.b16 %v914, %v880
    %v956 = vshrl.u32 %v880, 16
    %v957 = vshrl.u32 %v914, 16
    %v958 = vpack.i.b16 %v957, %v956
    %v961 = vpack.i.b16 %v916, %v882
    %v962 = vshrl.u32 %v882, 16
    %v963 = vshrl.u32 %v916, 16
    %v964 = vpack.i.b16 %v963, %v962
    %966 = vrot.lane.b32.xlu0 %v231, 96
    %v967 = vpop.permute.xlu0 %966
    %968 = vrot.lane.b32.xlu0 %v231, 64
    %v969 = vpop.permute.xlu0 %968
    %970 = vrot.lane.b32.xlu0 %v231, 32
    %v971 = vpop.permute.xlu0 %970
    %973 = vrot.lane.b32.xlu0 %v232, 96
    %v974 = vpop.permute.xlu0 %973
    %975 = vrot.lane.b32.xlu0 %v232, 64
    %v976 = vpop.permute.xlu0 %975
    %977 = vrot.lane.b32.xlu0 %v232, 32
    %v978 = vpop.permute.xlu0 %977
    %v981 = vpack.i.b16 %v967, %v231
    %v983 = vshrl.u32 %v231, 16
    %v984 = vshrl.u32 %v967, 16
    %v985 = vpack.i.b16 %v984, %v983
    %v989 = vpack.i.b16 %v971, %v969
    %v991 = vshrl.u32 %v969, 16
    %v992 = vshrl.u32 %v971, 16
    %v993 = vpack.i.b16 %v992, %v991
    %v997 = vpack.i.b16 %v974, %v232
    %v999 = vshrl.u32 %v232, 16
    %v1000 = vshrl.u32 %v974, 16
    %v1001 = vpack.i.b16 %v1000, %v999
    %v1005 = vpack.i.b16 %v978, %v976
    %v1007 = vshrl.u32 %v976, 16
    %v1008 = vshrl.u32 %v978, 16
    %v1009 = vpack.i.b16 %v1008, %v1007
    %v1011 = vcombine.low %v981, %v997
    %v1012 = vcombine.high %v981, %v997
    %v1014 = vunpack.c.l.s4 1983009808
    %v1015 = vunpack.c.0.s8 %v1014
    %v1016 = vlaneseq
    %v1017 = vshrl.u32 %v1016, 7
    %v1018 = vsub.s32 %v1015, %v1017
    %v1019 = vrot.slane %v1011, %v1018
    %v1021 = vunpack.c.l.s4 1983009808
    %v1022 = vunpack.c.0.s8 %v1021
    %v1023 = vlaneseq
    %v1024 = vshrl.u32 %v1023, 7
    %v1025 = vsub.s32 %v1022, %v1024
    %v1026 = vrot.slane %v1012, %v1025
    %v1027 = vcombine.low %v989, %v1005
    %v1028 = vcombine.high %v989, %v1005
    %v1030 = vunpack.c.l.s4 1983009808
    %v1031 = vunpack.c.0.s8 %v1030
    %v1032 = vlaneseq
    %v1033 = vshrl.u32 %v1032, 7
    %v1034 = vsub.s32 %v1031, %v1033
    %v1035 = vrot.slane %v1027, %v1034
    %v1037 = vunpack.c.l.s4 1983009808
    %v1038 = vunpack.c.0.s8 %v1037
    %v1039 = vlaneseq
    %v1040 = vshrl.u32 %v1039, 7
    %v1041 = vsub.s32 %v1038, %v1040
    %v1042 = vrot.slane %v1028, %v1041
    %v1043 = vcombine.low %v1019, %v1035
    %v1044 = vcombine.high %v1019, %v1035
    %v1046 = vunpack.c.l.s4 1934713408
    %v1047 = vunpack.c.0.s8 %v1046
    %v1048 = vlaneseq
    %v1049 = vshrl.u32 %v1048, 7
    %v1050 = vsub.s32 %v1047, %v1049
    %v1051 = vrot.slane %v1043, %v1050
    %v1053 = vunpack.c.l.s4 1934713408
    %v1054 = vunpack.c.0.s8 %v1053
    %v1055 = vlaneseq
    %v1056 = vshrl.u32 %v1055, 7
    %v1057 = vsub.s32 %v1054, %v1056
    %v1058 = vrot.slane %v1044, %v1057
    %v1059 = vcombine.low %v1026, %v1042
    %v1060 = vcombine.high %v1026, %v1042
    %v1062 = vunpack.c.l.s4 1934713408
    %v1063 = vunpack.c.0.s8 %v1062
    %v1064 = vlaneseq
    %v1065 = vshrl.u32 %v1064, 7
    %v1066 = vsub.s32 %v1063, %v1065
    %v1067 = vrot.slane %v1059, %v1066
    %v1069 = vunpack.c.l.s4 1934713408
    %v1070 = vunpack.c.0.s8 %v1069
    %v1071 = vlaneseq
    %v1072 = vshrl.u32 %v1071, 7
    %v1073 = vsub.s32 %v1070, %v1072
    %v1074 = vrot.slane %v1060, %v1073
    %v1075 = vcombine.high %v1051, 0
    %v1076 = vcombine.high %v1058, 0
    %v1077 = vcombine.high %v1067, 0
    %v1078 = vcombine.high %v1074, 0
    %v1079 = vcombine.low %v985, %v1001
    %v1080 = vcombine.high %v985, %v1001
    %v1082 = vunpack.c.l.s4 1983009808
    %v1083 = vunpack.c.0.s8 %v1082
    %v1084 = vlaneseq
    %v1085 = vshrl.u32 %v1084, 7
    %v1086 = vsub.s32 %v1083, %v1085
    %v1087 = vrot.slane %v1079, %v1086
    %v1089 = vunpack.c.l.s4 1983009808
    %v1090 = vunpack.c.0.s8 %v1089
    %v1091 = vlaneseq
    %v1092 = vshrl.u32 %v1091, 7
    %v1093 = vsub.s32 %v1090, %v1092
    %v1094 = vrot.slane %v1080, %v1093
    %v1095 = vcombine.low %v993, %v1009
    %v1096 = vcombine.high %v993, %v1009
    %v1098 = vunpack.c.l.s4 1983009808
    %v1099 = vunpack.c.0.s8 %v1098
    %v1100 = vlaneseq
    %v1101 = vshrl.u32 %v1100, 7
    %v1102 = vsub.s32 %v1099, %v1101
    %v1103 = vrot.slane %v1095, %v1102
    %v1105 = vunpack.c.l.s4 1983009808
    %v1106 = vunpack.c.0.s8 %v1105
    %v1107 = vlaneseq
    %v1108 = vshrl.u32 %v1107, 7
    %v1109 = vsub.s32 %v1106, %v1108
    %v1110 = vrot.slane %v1096, %v1109
    %v1111 = vcombine.low %v1087, %v1103
    %v1112 = vcombine.high %v1087, %v1103
    %v1114 = vunpack.c.l.s4 1934713408
    %v1115 = vunpack.c.0.s8 %v1114
    %v1116 = vlaneseq
    %v1117 = vshrl.u32 %v1116, 7
    %v1118 = vsub.s32 %v1115, %v1117
    %v1119 = vrot.slane %v1111, %v1118
    %v1121 = vunpack.c.l.s4 1934713408
    %v1122 = vunpack.c.0.s8 %v1121
    %v1123 = vlaneseq
    %v1124 = vshrl.u32 %v1123, 7
    %v1125 = vsub.s32 %v1122, %v1124
    %v1126 = vrot.slane %v1112, %v1125
    %v1127 = vcombine.low %v1094, %v1110
    %v1128 = vcombine.high %v1094, %v1110
    %v1130 = vunpack.c.l.s4 1934713408
    %v1131 = vunpack.c.0.s8 %v1130
    %v1132 = vlaneseq
    %v1133 = vshrl.u32 %v1132, 7
    %v1134 = vsub.s32 %v1131, %v1133
    %v1135 = vrot.slane %v1127, %v1134
    %v1137 = vunpack.c.l.s4 1934713408
    %v1138 = vunpack.c.0.s8 %v1137
    %v1139 = vlaneseq
    %v1140 = vshrl.u32 %v1139, 7
    %v1141 = vsub.s32 %v1138, %v1140
    %v1142 = vrot.slane %v1128, %v1141
    %v1143 = vcombine.high %v1119, 0
    %v1144 = vcombine.high %v1126, 0
    %v1145 = vcombine.high %v1135, 0
    %v1146 = vcombine.high %v1142, 0
    %v1147 = vcombine.low %v1051, %v1058
    %v1149 = vunpack.c.l.s4 1983009808
    %v1150 = vunpack.c.0.s8 %v1149
    %v1151 = vlaneseq
    %v1152 = vshrl.u32 %v1151, 7
    %v1153 = vsub.s32 %v1150, %v1152
    %v1154 = vrot.slane %v1147, %v1153
    %v1155 = vcombine.low %v1075, %v1076
    %v1157 = vunpack.c.l.s4 1983009808
    %v1158 = vunpack.c.0.s8 %v1157
    %v1159 = vlaneseq
    %v1160 = vshrl.u32 %v1159, 7
    %v1161 = vsub.s32 %v1158, %v1160
    %v1162 = vrot.slane %v1155, %v1161
    %v1163 = vcombine.low %v1154, %v1162
    %v1164 = vcombine.high %v1154, %v1162
    %v1166 = vunpack.c.l.s4 1934713408
    %v1167 = vunpack.c.0.s8 %v1166
    %v1168 = vlaneseq
    %v1169 = vshrl.u32 %v1168, 7
    %v1170 = vsub.s32 %v1167, %v1169
    %v1171 = vrot.slane %v1163, %v1170
    %v1173 = vunpack.c.l.s4 1934713408
    %v1174 = vunpack.c.0.s8 %v1173
    %v1175 = vlaneseq
    %v1176 = vshrl.u32 %v1175, 7
    %v1177 = vsub.s32 %v1174, %v1176
    %v1178 = vrot.slane %v1164, %v1177
    %v1179 = vcombine.high %v1171, 0
    %v1180 = vcombine.high %v1178, 0
    %v1181 = vcombine.low %v1119, %v1126
    %v1183 = vunpack.c.l.s4 1983009808
    %v1184 = vunpack.c.0.s8 %v1183
    %v1185 = vlaneseq
    %v1186 = vshrl.u32 %v1185, 7
    %v1187 = vsub.s32 %v1184, %v1186
    %v1188 = vrot.slane %v1181, %v1187
    %v1189 = vcombine.low %v1143, %v1144
    %v1191 = vunpack.c.l.s4 1983009808
    %v1192 = vunpack.c.0.s8 %v1191
    %v1193 = vlaneseq
    %v1194 = vshrl.u32 %v1193, 7
    %v1195 = vsub.s32 %v1192, %v1194
    %v1196 = vrot.slane %v1189, %v1195
    %v1197 = vcombine.low %v1188, %v1196
    %v1198 = vcombine.high %v1188, %v1196
    %v1200 = vunpack.c.l.s4 1934713408
    %v1201 = vunpack.c.0.s8 %v1200
    %v1202 = vlaneseq
    %v1203 = vshrl.u32 %v1202, 7
    %v1204 = vsub.s32 %v1201, %v1203
    %v1205 = vrot.slane %v1197, %v1204
    %v1207 = vunpack.c.l.s4 1934713408
    %v1208 = vunpack.c.0.s8 %v1207
    %v1209 = vlaneseq
    %v1210 = vshrl.u32 %v1209, 7
    %v1211 = vsub.s32 %v1208, %v1210
    %v1212 = vrot.slane %v1198, %v1211
    %v1213 = vcombine.high %v1205, 0
    %v1214 = vcombine.high %v1212, 0
    %v1215 = vcombine.low %v1067, %v1074
    %v1217 = vunpack.c.l.s4 1983009808
    %v1218 = vunpack.c.0.s8 %v1217
    %v1219 = vlaneseq
    %v1220 = vshrl.u32 %v1219, 7
    %v1221 = vsub.s32 %v1218, %v1220
    %v1222 = vrot.slane %v1215, %v1221
    %v1223 = vcombine.low %v1077, %v1078
    %v1225 = vunpack.c.l.s4 1983009808
    %v1226 = vunpack.c.0.s8 %v1225
    %v1227 = vlaneseq
    %v1228 = vshrl.u32 %v1227, 7
    %v1229 = vsub.s32 %v1226, %v1228
    %v1230 = vrot.slane %v1223, %v1229
    %v1231 = vcombine.low %v1222, %v1230
    %v1232 = vcombine.high %v1222, %v1230
    %v1234 = vunpack.c.l.s4 1934713408
    %v1235 = vunpack.c.0.s8 %v1234
    %v1236 = vlaneseq
    %v1237 = vshrl.u32 %v1236, 7
    %v1238 = vsub.s32 %v1235, %v1237
    %v1239 = vrot.slane %v1231, %v1238
    %v1241 = vunpack.c.l.s4 1934713408
    %v1242 = vunpack.c.0.s8 %v1241
    %v1243 = vlaneseq
    %v1244 = vshrl.u32 %v1243, 7
    %v1245 = vsub.s32 %v1242, %v1244
    %v1246 = vrot.slane %v1232, %v1245
    %v1247 = vcombine.high %v1239, 0
    %v1248 = vcombine.high %v1246, 0
    %v1249 = vcombine.low %v1135, %v1142
    %v1251 = vunpack.c.l.s4 1983009808
    %v1252 = vunpack.c.0.s8 %v1251
    %v1253 = vlaneseq
    %v1254 = vshrl.u32 %v1253, 7
    %v1255 = vsub.s32 %v1252, %v1254
    %v1256 = vrot.slane %v1249, %v1255
    %v1257 = vcombine.low %v1145, %v1146
    %v1259 = vunpack.c.l.s4 1983009808
    %v1260 = vunpack.c.0.s8 %v1259
    %v1261 = vlaneseq
    %v1262 = vshrl.u32 %v1261, 7
    %v1263 = vsub.s32 %v1260, %v1262
    %v1264 = vrot.slane %v1257, %v1263
    %v1265 = vcombine.low %v1256, %v1264
    %v1266 = vcombine.high %v1256, %v1264
    %v1268 = vunpack.c.l.s4 1934713408
    %v1269 = vunpack.c.0.s8 %v1268
    %v1270 = vlaneseq
    %v1271 = vshrl.u32 %v1270, 7
    %v1272 = vsub.s32 %v1269, %v1271
    %v1273 = vrot.slane %v1265, %v1272
    %v1275 = vunpack.c.l.s4 1934713408
    %v1276 = vunpack.c.0.s8 %v1275
    %v1277 = vlaneseq
    %v1278 = vshrl.u32 %v1277, 7
    %v1279 = vsub.s32 %v1276, %v1278
    %v1280 = vrot.slane %v1266, %v1279
    %v1281 = vcombine.high %v1273, 0
    %v1282 = vcombine.high %v1280, 0
    %v1285 = vpack.i.b16 %v1205, %v1171
    %v1286 = vshrl.u32 %v1171, 16
    %v1287 = vshrl.u32 %v1205, 16
    %v1288 = vpack.i.b16 %v1287, %v1286
    %v1291 = vpack.i.b16 %v1213, %v1179
    %v1292 = vshrl.u32 %v1179, 16
    %v1293 = vshrl.u32 %v1213, 16
    %v1294 = vpack.i.b16 %v1293, %v1292
    %v1297 = vpack.i.b16 %v1212, %v1178
    %v1298 = vshrl.u32 %v1178, 16
    %v1299 = vshrl.u32 %v1212, 16
    %v1300 = vpack.i.b16 %v1299, %v1298
    %v1303 = vpack.i.b16 %v1214, %v1180
    %v1304 = vshrl.u32 %v1180, 16
    %v1305 = vshrl.u32 %v1214, 16
    %v1306 = vpack.i.b16 %v1305, %v1304
    %v1309 = vpack.i.b16 %v1273, %v1239
    %v1310 = vshrl.u32 %v1239, 16
    %v1311 = vshrl.u32 %v1273, 16
    %v1312 = vpack.i.b16 %v1311, %v1310
    %v1315 = vpack.i.b16 %v1281, %v1247
    %v1316 = vshrl.u32 %v1247, 16
    %v1317 = vshrl.u32 %v1281, 16
    %v1318 = vpack.i.b16 %v1317, %v1316
    %v1321 = vpack.i.b16 %v1280, %v1246
    %v1322 = vshrl.u32 %v1246, 16
    %v1323 = vshrl.u32 %v1280, 16
    %v1324 = vpack.i.b16 %v1323, %v1322
    %v1327 = vpack.i.b16 %v1282, %v1248
    %v1328 = vshrl.u32 %v1248, 16
    %v1329 = vshrl.u32 %v1282, 16
    %v1330 = vpack.i.b16 %v1329, %v1328
    %v1332 = vsel %vm94, %v553, 0
    %v1335 = vsel %vm94, %v919, 0
    %1337 = vmatprep.subr.bf16.mxu0 0
    %1338 = vmatpush1.bf16.xpose.msra.mxu0 %v1335
    %1339 = vmatprep.subr.bf16.mxu0 0
    %1340 = vmatpush1.bf16.xpose.msra.mxu0 0
    %1341 = vmatprep.subr.bf16.mxu0 0
    %1342 = vmatpush1.bf16.xpose.msra.mxu0 0
    %1343 = vmatprep.subr.bf16.mxu0 0
    %1344 = vmatpush1.bf16.xpose.msra.mxu0 0
    %1345 = vmatprep.subr.bf16.mxu0 0
    %1346 = vmatpush1.bf16.xpose.msra.mxu0 0
    %1347 = vmatprep.subr.bf16.mxu0 0
    %1348 = vmatpush1.bf16.xpose.msra.mxu0 0
    %1349 = vmatprep.subr.bf16.mxu0 0
    %1350 = vmatpush1.bf16.xpose.msra.mxu0 0
    %1351 = vmatprep.subr.bf16.mxu0 0
    %1352 = vmatpush1.bf16.xpose.msra.mxu0 0
    %1353 = vmatprep.subr.bf16.mxu0 0
    %1354 = vmatpush1.bf16.xpose.msra.mxu0 0
    %1355 = vmatprep.subr.bf16.mxu0 0
    %1356 = vmatpush1.bf16.xpose.msra.mxu0 0
    %1357 = vmatprep.subr.bf16.mxu0 0
    %1358 = vmatpush1.bf16.xpose.msra.mxu0 0
    %1359 = vmatprep.subr.bf16.mxu0 0
    %1360 = vmatpush1.bf16.xpose.msra.mxu0 0
    %1361 = vmatprep.subr.bf16.mxu0 0
    %1362 = vmatpush1.bf16.xpose.msra.mxu0 0
    %1363 = vmatprep.subr.bf16.mxu0 0
    %1364 = vmatpush1.bf16.xpose.msra.mxu0 0
    %1365 = vmatprep.subr.bf16.mxu0 0
    %1366 = vmatpush1.bf16.xpose.msra.mxu0 0
    %1367 = vmatprep.subr.bf16.mxu0 0
    %1368 = vmatpush1.bf16.xpose.msra.mxu0 0
    %1369 = vmatprep.mubr.bf16.mxu0 0
    %1370 = vmatmul.mubr.bf16.gmra.mrb[0].mxu0 %v1332
    %v1371 = vpop.f32.mrb[0].mxu0
    %v1372 = vadd.f32 0.0, %v1371
    %v1373 = vpop.f32.mrb[0].mxu0
    %v1374 = vpop.f32.mrb[0].mxu0
    %v1375 = vpop.f32.mrb[0].mxu0
    %1376 = vdwg.mxu0
    %v1378 = vsel %vm94, %v556, 0
    %v1381 = vsel %vm94, %v922, 0
    %1383 = vmatprep.subr.bf16.mxu0 0
    %1384 = vmatpush1.bf16.xpose.msra.mxu0 %v1381
    %1385 = vmatprep.subr.bf16.mxu0 0
    %1386 = vmatpush1.bf16.xpose.msra.mxu0 0
    %1387 = vmatprep.subr.bf16.mxu0 0
    %1388 = vmatpush1.bf16.xpose.msra.mxu0 0
    %1389 = vmatprep.subr.bf16.mxu0 0
    %1390 = vmatpush1.bf16.xpose.msra.mxu0 0
    %1391 = vmatprep.subr.bf16.mxu0 0
    %1392 = vmatpush1.bf16.xpose.msra.mxu0 0
    %1393 = vmatprep.subr.bf16.mxu0 0
    %1394 = vmatpush1.bf16.xpose.msra.mxu0 0
    %1395 = vmatprep.subr.bf16.mxu0 0
    %1396 = vmatpush1.bf16.xpose.msra.mxu0 0
    %1397 = vmatprep.subr.bf16.mxu0 0
    %1398 = vmatpush1.bf16.xpose.msra.mxu0 0
    %1399 = vmatprep.subr.bf16.mxu0 0
    %1400 = vmatpush1.bf16.xpose.msra.mxu0 0
    %1401 = vmatprep.subr.bf16.mxu0 0
    %1402 = vmatpush1.bf16.xpose.msra.mxu0 0
    %1403 = vmatprep.subr.bf16.mxu0 0
    %1404 = vmatpush1.bf16.xpose.msra.mxu0 0
    %1405 = vmatprep.subr.bf16.mxu0 0
    %1406 = vmatpush1.bf16.xpose.msra.mxu0 0
    %1407 = vmatprep.subr.bf16.mxu0 0
    %1408 = vmatpush1.bf16.xpose.msra.mxu0 0
    %1409 = vmatprep.subr.bf16.mxu0 0
    %1410 = vmatpush1.bf16.xpose.msra.mxu0 0
    %1411 = vmatprep.subr.bf16.mxu0 0
    %1412 = vmatpush1.bf16.xpose.msra.mxu0 0
    %1413 = vmatprep.subr.bf16.mxu0 0
    %1414 = vmatpush1.bf16.xpose.msra.mxu0 0
    %1415 = vmatprep.mubr.bf16.mxu0 0
    %1416 = vmatmul.mubr.bf16.gmra.mrb[0].mxu0 %v1378
    %v1417 = vpop.f32.mrb[0].mxu0
    %v1418 = vadd.f32 0.0, %v1417
    %v1419 = vpop.f32.mrb[0].mxu0
    %v1420 = vpop.f32.mrb[0].mxu0
    %v1421 = vpop.f32.mrb[0].mxu0
    %1422 = vdwg.mxu0
    %v1424 = vsel %vm94, %v559, 0
    %v1427 = vsel %vm94, %v925, 0
    %1429 = vmatprep.subr.bf16.mxu0 0
    %1430 = vmatpush1.bf16.xpose.msra.mxu0 %v1427
    %1431 = vmatprep.subr.bf16.mxu0 0
    %1432 = vmatpush1.bf16.xpose.msra.mxu0 0
    %1433 = vmatprep.subr.bf16.mxu0 0
    %1434 = vmatpush1.bf16.xpose.msra.mxu0 0
    %1435 = vmatprep.subr.bf16.mxu0 0
    %1436 = vmatpush1.bf16.xpose.msra.mxu0 0
    %1437 = vmatprep.subr.bf16.mxu0 0
    %1438 = vmatpush1.bf16.xpose.msra.mxu0 0
    %1439 = vmatprep.subr.bf16.mxu0 0
    %1440 = vmatpush1.bf16.xpose.msra.mxu0 0
    %1441 = vmatprep.subr.bf16.mxu0 0
    %1442 = vmatpush1.bf16.xpose.msra.mxu0 0
    %1443 = vmatprep.subr.bf16.mxu0 0
    %1444 = vmatpush1.bf16.xpose.msra.mxu0 0
    %1445 = vmatprep.subr.bf16.mxu0 0
    %1446 = vmatpush1.bf16.xpose.msra.mxu0 0
    %1447 = vmatprep.subr.bf16.mxu0 0
    %1448 = vmatpush1.bf16.xpose.msra.mxu0 0
    %1449 = vmatprep.subr.bf16.mxu0 0
    %1450 = vmatpush1.bf16.xpose.msra.mxu0 0
    %1451 = vmatprep.subr.bf16.mxu0 0
    %1452 = vmatpush1.bf16.xpose.msra.mxu0 0
    %1453 = vmatprep.subr.bf16.mxu0 0
    %1454 = vmatpush1.bf16.xpose.msra.mxu0 0
    %1455 = vmatprep.subr.bf16.mxu0 0
    %1456 = vmatpush1.bf16.xpose.msra.mxu0 0
    %1457 = vmatprep.subr.bf16.mxu0 0
    %1458 = vmatpush1.bf16.xpose.msra.mxu0 0
    %1459 = vmatprep.subr.bf16.mxu0 0
    %1460 = vmatpush1.bf16.xpose.msra.mxu0 0
    %1461 = vmatprep.mubr.bf16.mxu0 0
    %1462 = vmatmul.mubr.bf16.gmra.mrb[0].mxu0 %v1424
    %v1463 = vpop.f32.mrb[0].mxu0
    %v1464 = vadd.f32 0.0, %v1463
    %v1465 = vpop.f32.mrb[0].mxu0
    %v1466 = vpop.f32.mrb[0].mxu0
    %v1467 = vpop.f32.mrb[0].mxu0
    %1468 = vdwg.mxu0
    %v1470 = vsel %vm94, %v562, 0
    %v1473 = vsel %vm94, %v928, 0
    %1475 = vmatprep.subr.bf16.mxu0 0
    %1476 = vmatpush1.bf16.xpose.msra.mxu0 %v1473
    %1477 = vmatprep.subr.bf16.mxu0 0
    %1478 = vmatpush1.bf16.xpose.msra.mxu0 0
    %1479 = vmatprep.subr.bf16.mxu0 0
    %1480 = vmatpush1.bf16.xpose.msra.mxu0 0
    %1481 = vmatprep.subr.bf16.mxu0 0
    %1482 = vmatpush1.bf16.xpose.msra.mxu0 0
    %1483 = vmatprep.subr.bf16.mxu0 0
    %1484 = vmatpush1.bf16.xpose.msra.mxu0 0
    %1485 = vmatprep.subr.bf16.mxu0 0
    %1486 = vmatpush1.bf16.xpose.msra.mxu0 0
    %1487 = vmatprep.subr.bf16.mxu0 0
    %1488 = vmatpush1.bf16.xpose.msra.mxu0 0
    %1489 = vmatprep.subr.bf16.mxu0 0
    %1490 = vmatpush1.bf16.xpose.msra.mxu0 0
    %1491 = vmatprep.subr.bf16.mxu0 0
    %1492 = vmatpush1.bf16.xpose.msra.mxu0 0
    %1493 = vmatprep.subr.bf16.mxu0 0
    %1494 = vmatpush1.bf16.xpose.msra.mxu0 0
    %1495 = vmatprep.subr.bf16.mxu0 0
    %1496 = vmatpush1.bf16.xpose.msra.mxu0 0
    %1497 = vmatprep.subr.bf16.mxu0 0
    %1498 = vmatpush1.bf16.xpose.msra.mxu0 0
    %1499 = vmatprep.subr.bf16.mxu0 0
    %1500 = vmatpush1.bf16.xpose.msra.mxu0 0
    %1501 = vmatprep.subr.bf16.mxu0 0
    %1502 = vmatpush1.bf16.xpose.msra.mxu0 0
    %1503 = vmatprep.subr.bf16.mxu0 0
    %1504 = vmatpush1.bf16.xpose.msra.mxu0 0
    %1505 = vmatprep.subr.bf16.mxu0 0
    %1506 = vmatpush1.bf16.xpose.msra.mxu0 0
    %1507 = vmatprep.mubr.bf16.mxu0 0
    %1508 = vmatmul.mubr.bf16.gmra.mrb[0].mxu0 %v1470
    %v1509 = vpop.f32.mrb[0].mxu0
    %v1510 = vadd.f32 0.0, %v1509
    %v1511 = vpop.f32.mrb[0].mxu0
    %v1512 = vpop.f32.mrb[0].mxu0
    %v1513 = vpop.f32.mrb[0].mxu0
    %1514 = vdwg.mxu0
    %v1516 = vsel %vm94, %v565, 0
    %v1519 = vsel %vm94, %v931, 0
    %1521 = vmatprep.subr.bf16.mxu0 0
    %1522 = vmatpush1.bf16.xpose.msra.mxu0 %v1519
    %1523 = vmatprep.subr.bf16.mxu0 0
    %1524 = vmatpush1.bf16.xpose.msra.mxu0 0
    %1525 = vmatprep.subr.bf16.mxu0 0
    %1526 = vmatpush1.bf16.xpose.msra.mxu0 0
    %1527 = vmatprep.subr.bf16.mxu0 0
    %1528 = vmatpush1.bf16.xpose.msra.mxu0 0
    %1529 = vmatprep.subr.bf16.mxu0 0
    %1530 = vmatpush1.bf16.xpose.msra.mxu0 0
    %1531 = vmatprep.subr.bf16.mxu0 0
    %1532 = vmatpush1.bf16.xpose.msra.mxu0 0
    %1533 = vmatprep.subr.bf16.mxu0 0
    %1534 = vmatpush1.bf16.xpose.msra.mxu0 0
    %1535 = vmatprep.subr.bf16.mxu0 0
    %1536 = vmatpush1.bf16.xpose.msra.mxu0 0
    %1537 = vmatprep.subr.bf16.mxu0 0
    %1538 = vmatpush1.bf16.xpose.msra.mxu0 0
    %1539 = vmatprep.subr.bf16.mxu0 0
    %1540 = vmatpush1.bf16.xpose.msra.mxu0 0
    %1541 = vmatprep.subr.bf16.mxu0 0
    %1542 = vmatpush1.bf16.xpose.msra.mxu0 0
    %1543 = vmatprep.subr.bf16.mxu0 0
    %1544 = vmatpush1.bf16.xpose.msra.mxu0 0
    %1545 = vmatprep.subr.bf16.mxu0 0
    %1546 = vmatpush1.bf16.xpose.msra.mxu0 0
    %1547 = vmatprep.subr.bf16.mxu0 0
    %1548 = vmatpush1.bf16.xpose.msra.mxu0 0
    %1549 = vmatprep.subr.bf16.mxu0 0
    %1550 = vmatpush1.bf16.xpose.msra.mxu0 0
    %1551 = vmatprep.subr.bf16.mxu0 0
    %1552 = vmatpush1.bf16.xpose.msra.mxu0 0
    %1553 = vmatprep.mubr.bf16.mxu0 0
    %1554 = vmatmul.mubr.bf16.gmra.mrb[0].mxu0 %v1516
    %v1555 = vpop.f32.mrb[0].mxu0
    %v1556 = vadd.f32 0.0, %v1555
    %v1557 = vpop.f32.mrb[0].mxu0
    %v1558 = vpop.f32.mrb[0].mxu0
    %v1559 = vpop.f32.mrb[0].mxu0
    %1560 = vdwg.mxu0
    %v1562 = vsel %vm94, %v568, 0
    %v1565 = vsel %vm94, %v934, 0
    %1567 = vmatprep.subr.bf16.mxu0 0
    %1568 = vmatpush1.bf16.xpose.msra.mxu0 %v1565
    %1569 = vmatprep.subr.bf16.mxu0 0
    %1570 = vmatpush1.bf16.xpose.msra.mxu0 0
    %1571 = vmatprep.subr.bf16.mxu0 0
    %1572 = vmatpush1.bf16.xpose.msra.mxu0 0
    %1573 = vmatprep.subr.bf16.mxu0 0
    %1574 = vmatpush1.bf16.xpose.msra.mxu0 0
    %1575 = vmatprep.subr.bf16.mxu0 0
    %1576 = vmatpush1.bf16.xpose.msra.mxu0 0
    %1577 = vmatprep.subr.bf16.mxu0 0
    %1578 = vmatpush1.bf16.xpose.msra.mxu0 0
    %1579 = vmatprep.subr.bf16.mxu0 0
    %1580 = vmatpush1.bf16.xpose.msra.mxu0 0
    %1581 = vmatprep.subr.bf16.mxu0 0
    %1582 = vmatpush1.bf16.xpose.msra.mxu0 0
    %1583 = vmatprep.subr.bf16.mxu0 0
    %1584 = vmatpush1.bf16.xpose.msra.mxu0 0
    %1585 = vmatprep.subr.bf16.mxu0 0
    %1586 = vmatpush1.bf16.xpose.msra.mxu0 0
    %1587 = vmatprep.subr.bf16.mxu0 0
    %1588 = vmatpush1.bf16.xpose.msra.mxu0 0
    %1589 = vmatprep.subr.bf16.mxu0 0
    %1590 = vmatpush1.bf16.xpose.msra.mxu0 0
    %1591 = vmatprep.subr.bf16.mxu0 0
    %1592 = vmatpush1.bf16.xpose.msra.mxu0 0
    %1593 = vmatprep.subr.bf16.mxu0 0
    %1594 = vmatpush1.bf16.xpose.msra.mxu0 0
    %1595 = vmatprep.subr.bf16.mxu0 0
    %1596 = vmatpush1.bf16.xpose.msra.mxu0 0
    %1597 = vmatprep.subr.bf16.mxu0 0
    %1598 = vmatpush1.bf16.xpose.msra.mxu0 0
    %1599 = vmatprep.mubr.bf16.mxu0 0
    %1600 = vmatmul.mubr.bf16.gmra.mrb[0].mxu0 %v1562
    %v1601 = vpop.f32.mrb[0].mxu0
    %v1602 = vadd.f32 0.0, %v1601
    %v1603 = vpop.f32.mrb[0].mxu0
    %v1604 = vpop.f32.mrb[0].mxu0
    %v1605 = vpop.f32.mrb[0].mxu0
    %1606 = vdwg.mxu0
    %v1608 = vsel %vm94, %v571, 0
    %v1611 = vsel %vm94, %v937, 0
    %1613 = vmatprep.subr.bf16.mxu0 0
    %1614 = vmatpush1.bf16.xpose.msra.mxu0 %v1611
    %1615 = vmatprep.subr.bf16.mxu0 0
    %1616 = vmatpush1.bf16.xpose.msra.mxu0 0
    %1617 = vmatprep.subr.bf16.mxu0 0
    %1618 = vmatpush1.bf16.xpose.msra.mxu0 0
    %1619 = vmatprep.subr.bf16.mxu0 0
    %1620 = vmatpush1.bf16.xpose.msra.mxu0 0
    %1621 = vmatprep.subr.bf16.mxu0 0
    %1622 = vmatpush1.bf16.xpose.msra.mxu0 0
    %1623 = vmatprep.subr.bf16.mxu0 0
    %1624 = vmatpush1.bf16.xpose.msra.mxu0 0
    %1625 = vmatprep.subr.bf16.mxu0 0
    %1626 = vmatpush1.bf16.xpose.msra.mxu0 0
    %1627 = vmatprep.subr.bf16.mxu0 0
    %1628 = vmatpush1.bf16.xpose.msra.mxu0 0
    %1629 = vmatprep.subr.bf16.mxu0 0
    %1630 = vmatpush1.bf16.xpose.msra.mxu0 0
    %1631 = vmatprep.subr.bf16.mxu0 0
    %1632 = vmatpush1.bf16.xpose.msra.mxu0 0
    %1633 = vmatprep.subr.bf16.mxu0 0
    %1634 = vmatpush1.bf16.xpose.msra.mxu0 0
    %1635 = vmatprep.subr.bf16.mxu0 0
    %1636 = vmatpush1.bf16.xpose.msra.mxu0 0
    %1637 = vmatprep.subr.bf16.mxu0 0
    %1638 = vmatpush1.bf16.xpose.msra.mxu0 0
    %1639 = vmatprep.subr.bf16.mxu0 0
    %1640 = vmatpush1.bf16.xpose.msra.mxu0 0
    %1641 = vmatprep.subr.bf16.mxu0 0
    %1642 = vmatpush1.bf16.xpose.msra.mxu0 0
    %1643 = vmatprep.subr.bf16.mxu0 0
    %1644 = vmatpush1.bf16.xpose.msra.mxu0 0
    %1645 = vmatprep.mubr.bf16.mxu0 0
    %1646 = vmatmul.mubr.bf16.gmra.mrb[0].mxu0 %v1608
    %v1647 = vpop.f32.mrb[0].mxu0
    %v1648 = vadd.f32 0.0, %v1647
    %v1649 = vpop.f32.mrb[0].mxu0
    %v1650 = vpop.f32.mrb[0].mxu0
    %v1651 = vpop.f32.mrb[0].mxu0
    %1652 = vdwg.mxu0
    %v1654 = vsel %vm94, %v574, 0
    %v1657 = vsel %vm94, %v940, 0
    %1659 = vmatprep.subr.bf16.mxu0 0
    %1660 = vmatpush1.bf16.xpose.msra.mxu0 %v1657
    %1661 = vmatprep.subr.bf16.mxu0 0
    %1662 = vmatpush1.bf16.xpose.msra.mxu0 0
    %1663 = vmatprep.subr.bf16.mxu0 0
    %1664 = vmatpush1.bf16.xpose.msra.mxu0 0
    %1665 = vmatprep.subr.bf16.mxu0 0
    %1666 = vmatpush1.bf16.xpose.msra.mxu0 0
    %1667 = vmatprep.subr.bf16.mxu0 0
    %1668 = vmatpush1.bf16.xpose.msra.mxu0 0
    %1669 = vmatprep.subr.bf16.mxu0 0
    %1670 = vmatpush1.bf16.xpose.msra.mxu0 0
    %1671 = vmatprep.subr.bf16.mxu0 0
    %1672 = vmatpush1.bf16.xpose.msra.mxu0 0
    %1673 = vmatprep.subr.bf16.mxu0 0
    %1674 = vmatpush1.bf16.xpose.msra.mxu0 0
    %1675 = vmatprep.subr.bf16.mxu0 0
    %1676 = vmatpush1.bf16.xpose.msra.mxu0 0
    %1677 = vmatprep.subr.bf16.mxu0 0
    %1678 = vmatpush1.bf16.xpose.msra.mxu0 0
    %1679 = vmatprep.subr.bf16.mxu0 0
    %1680 = vmatpush1.bf16.xpose.msra.mxu0 0
    %1681 = vmatprep.subr.bf16.mxu0 0
    %1682 = vmatpush1.bf16.xpose.msra.mxu0 0
    %1683 = vmatprep.subr.bf16.mxu0 0
    %1684 = vmatpush1.bf16.xpose.msra.mxu0 0
    %1685 = vmatprep.subr.bf16.mxu0 0
    %1686 = vmatpush1.bf16.xpose.msra.mxu0 0
    %1687 = vmatprep.subr.bf16.mxu0 0
    %1688 = vmatpush1.bf16.xpose.msra.mxu0 0
    %1689 = vmatprep.subr.bf16.mxu0 0
    %1690 = vmatpush1.bf16.xpose.msra.mxu0 0
    %1691 = vmatprep.mubr.bf16.mxu0 0
    %1692 = vmatmul.mubr.bf16.gmra.mrb[0].mxu0 %v1654
    %v1693 = vpop.f32.mrb[0].mxu0
    %v1694 = vadd.f32 0.0, %v1693
    %v1695 = vpop.f32.mrb[0].mxu0
    %v1696 = vpop.f32.mrb[0].mxu0
    %v1697 = vpop.f32.mrb[0].mxu0
    %1698 = vdwg.mxu0
    %v1700 = vsel %vm94, %v577, 0
    %v1703 = vsel %vm94, %v943, 0
    %1705 = vmatprep.subr.bf16.mxu0 0
    %1706 = vmatpush1.bf16.xpose.msra.mxu0 %v1703
    %1707 = vmatprep.subr.bf16.mxu0 0
    %1708 = vmatpush1.bf16.xpose.msra.mxu0 0
    %1709 = vmatprep.subr.bf16.mxu0 0
    %1710 = vmatpush1.bf16.xpose.msra.mxu0 0
    %1711 = vmatprep.subr.bf16.mxu0 0
    %1712 = vmatpush1.bf16.xpose.msra.mxu0 0
    %1713 = vmatprep.subr.bf16.mxu0 0
    %1714 = vmatpush1.bf16.xpose.msra.mxu0 0
    %1715 = vmatprep.subr.bf16.mxu0 0
    %1716 = vmatpush1.bf16.xpose.msra.mxu0 0
    %1717 = vmatprep.subr.bf16.mxu0 0
    %1718 = vmatpush1.bf16.xpose.msra.mxu0 0
    %1719 = vmatprep.subr.bf16.mxu0 0
    %1720 = vmatpush1.bf16.xpose.msra.mxu0 0
    %1721 = vmatprep.subr.bf16.mxu0 0
    %1722 = vmatpush1.bf16.xpose.msra.mxu0 0
    %1723 = vmatprep.subr.bf16.mxu0 0
    %1724 = vmatpush1.bf16.xpose.msra.mxu0 0
    %1725 = vmatprep.subr.bf16.mxu0 0
    %1726 = vmatpush1.bf16.xpose.msra.mxu0 0
    %1727 = vmatprep.subr.bf16.mxu0 0
    %1728 = vmatpush1.bf16.xpose.msra.mxu0 0
    %1729 = vmatprep.subr.bf16.mxu0 0
    %1730 = vmatpush1.bf16.xpose.msra.mxu0 0
    %1731 = vmatprep.subr.bf16.mxu0 0
    %1732 = vmatpush1.bf16.xpose.msra.mxu0 0
    %1733 = vmatprep.subr.bf16.mxu0 0
    %1734 = vmatpush1.bf16.xpose.msra.mxu0 0
    %1735 = vmatprep.subr.bf16.mxu0 0
    %1736 = vmatpush1.bf16.xpose.msra.mxu0 0
    %1737 = vmatprep.mubr.bf16.mxu0 0
    %1738 = vmatmul.mubr.bf16.gmra.mrb[0].mxu0 %v1700
    %v1739 = vpop.f32.mrb[0].mxu0
    %v1740 = vadd.f32 0.0, %v1739
    %v1741 = vpop.f32.mrb[0].mxu0
    %v1742 = vpop.f32.mrb[0].mxu0
    %v1743 = vpop.f32.mrb[0].mxu0
    %1744 = vdwg.mxu0
    %v1746 = vsel %vm94, %v580, 0
    %v1749 = vsel %vm94, %v946, 0
    %1751 = vmatprep.subr.bf16.mxu0 0
    %1752 = vmatpush1.bf16.xpose.msra.mxu0 %v1749
    %1753 = vmatprep.subr.bf16.mxu0 0
    %1754 = vmatpush1.bf16.xpose.msra.mxu0 0
    %1755 = vmatprep.subr.bf16.mxu0 0
    %1756 = vmatpush1.bf16.xpose.msra.mxu0 0
    %1757 = vmatprep.subr.bf16.mxu0 0
    %1758 = vmatpush1.bf16.xpose.msra.mxu0 0
    %1759 = vmatprep.subr.bf16.mxu0 0
    %1760 = vmatpush1.bf16.xpose.msra.mxu0 0
    %1761 = vmatprep.subr.bf16.mxu0 0
    %1762 = vmatpush1.bf16.xpose.msra.mxu0 0
    %1763 = vmatprep.subr.bf16.mxu0 0
    %1764 = vmatpush1.bf16.xpose.msra.mxu0 0
    %1765 = vmatprep.subr.bf16.mxu0 0
    %1766 = vmatpush1.bf16.xpose.msra.mxu0 0
    %1767 = vmatprep.subr.bf16.mxu0 0
    %1768 = vmatpush1.bf16.xpose.msra.mxu0 0
    %1769 = vmatprep.subr.bf16.mxu0 0
    %1770 = vmatpush1.bf16.xpose.msra.mxu0 0
    %1771 = vmatprep.subr.bf16.mxu0 0
    %1772 = vmatpush1.bf16.xpose.msra.mxu0 0
    %1773 = vmatprep.subr.bf16.mxu0 0
    %1774 = vmatpush1.bf16.xpose.msra.mxu0 0
    %1775 = vmatprep.subr.bf16.mxu0 0
    %1776 = vmatpush1.bf16.xpose.msra.mxu0 0
    %1777 = vmatprep.subr.bf16.mxu0 0
    %1778 = vmatpush1.bf16.xpose.msra.mxu0 0
    %1779 = vmatprep.subr.bf16.mxu0 0
    %1780 = vmatpush1.bf16.xpose.msra.mxu0 0
    %1781 = vmatprep.subr.bf16.mxu0 0
    %1782 = vmatpush1.bf16.xpose.msra.mxu0 0
    %1783 = vmatprep.mubr.bf16.mxu0 0
    %1784 = vmatmul.mubr.bf16.gmra.mrb[0].mxu0 %v1746
    %v1785 = vpop.f32.mrb[0].mxu0
    %v1786 = vadd.f32 0.0, %v1785
    %v1787 = vpop.f32.mrb[0].mxu0
    %v1788 = vpop.f32.mrb[0].mxu0
    %v1789 = vpop.f32.mrb[0].mxu0
    %1790 = vdwg.mxu0
    %v1792 = vsel %vm94, %v583, 0
    %v1795 = vsel %vm94, %v949, 0
    %1797 = vmatprep.subr.bf16.mxu0 0
    %1798 = vmatpush1.bf16.xpose.msra.mxu0 %v1795
    %1799 = vmatprep.subr.bf16.mxu0 0
    %1800 = vmatpush1.bf16.xpose.msra.mxu0 0
    %1801 = vmatprep.subr.bf16.mxu0 0
    %1802 = vmatpush1.bf16.xpose.msra.mxu0 0
    %1803 = vmatprep.subr.bf16.mxu0 0
    %1804 = vmatpush1.bf16.xpose.msra.mxu0 0
    %1805 = vmatprep.subr.bf16.mxu0 0
    %1806 = vmatpush1.bf16.xpose.msra.mxu0 0
    %1807 = vmatprep.subr.bf16.mxu0 0
    %1808 = vmatpush1.bf16.xpose.msra.mxu0 0
    %1809 = vmatprep.subr.bf16.mxu0 0
    %1810 = vmatpush1.bf16.xpose.msra.mxu0 0
    %1811 = vmatprep.subr.bf16.mxu0 0
    %1812 = vmatpush1.bf16.xpose.msra.mxu0 0
    %1813 = vmatprep.subr.bf16.mxu0 0
    %1814 = vmatpush1.bf16.xpose.msra.mxu0 0
    %1815 = vmatprep.subr.bf16.mxu0 0
    %1816 = vmatpush1.bf16.xpose.msra.mxu0 0
    %1817 = vmatprep.subr.bf16.mxu0 0
    %1818 = vmatpush1.bf16.xpose.msra.mxu0 0
    %1819 = vmatprep.subr.bf16.mxu0 0
    %1820 = vmatpush1.bf16.xpose.msra.mxu0 0
    %1821 = vmatprep.subr.bf16.mxu0 0
    %1822 = vmatpush1.bf16.xpose.msra.mxu0 0
    %1823 = vmatprep.subr.bf16.mxu0 0
    %1824 = vmatpush1.bf16.xpose.msra.mxu0 0
    %1825 = vmatprep.subr.bf16.mxu0 0
    %1826 = vmatpush1.bf16.xpose.msra.mxu0 0
    %1827 = vmatprep.subr.bf16.mxu0 0
    %1828 = vmatpush1.bf16.xpose.msra.mxu0 0
    %1829 = vmatprep.mubr.bf16.mxu0 0
    %1830 = vmatmul.mubr.bf16.gmra.mrb[0].mxu0 %v1792
    %v1831 = vpop.f32.mrb[0].mxu0
    %v1832 = vadd.f32 0.0, %v1831
    %v1833 = vpop.f32.mrb[0].mxu0
    %v1834 = vpop.f32.mrb[0].mxu0
    %v1835 = vpop.f32.mrb[0].mxu0
    %1836 = vdwg.mxu0
    %v1838 = vsel %vm94, %v586, 0
    %v1841 = vsel %vm94, %v952, 0
    %1843 = vmatprep.subr.bf16.mxu0 0
    %1844 = vmatpush1.bf16.xpose.msra.mxu0 %v1841
    %1845 = vmatprep.subr.bf16.mxu0 0
    %1846 = vmatpush1.bf16.xpose.msra.mxu0 0
    %1847 = vmatprep.subr.bf16.mxu0 0
    %1848 = vmatpush1.bf16.xpose.msra.mxu0 0
    %1849 = vmatprep.subr.bf16.mxu0 0
    %1850 = vmatpush1.bf16.xpose.msra.mxu0 0
    %1851 = vmatprep.subr.bf16.mxu0 0
    %1852 = vmatpush1.bf16.xpose.msra.mxu0 0
    %1853 = vmatprep.subr.bf16.mxu0 0
    %1854 = vmatpush1.bf16.xpose.msra.mxu0 0
    %1855 = vmatprep.subr.bf16.mxu0 0
    %1856 = vmatpush1.bf16.xpose.msra.mxu0 0
    %1857 = vmatprep.subr.bf16.mxu0 0
    %1858 = vmatpush1.bf16.xpose.msra.mxu0 0
    %1859 = vmatprep.subr.bf16.mxu0 0
    %1860 = vmatpush1.bf16.xpose.msra.mxu0 0
    %1861 = vmatprep.subr.bf16.mxu0 0
    %1862 = vmatpush1.bf16.xpose.msra.mxu0 0
    %1863 = vmatprep.subr.bf16.mxu0 0
    %1864 = vmatpush1.bf16.xpose.msra.mxu0 0
    %1865 = vmatprep.subr.bf16.mxu0 0
    %1866 = vmatpush1.bf16.xpose.msra.mxu0 0
    %1867 = vmatprep.subr.bf16.mxu0 0
    %1868 = vmatpush1.bf16.xpose.msra.mxu0 0
    %1869 = vmatprep.subr.bf16.mxu0 0
    %1870 = vmatpush1.bf16.xpose.msra.mxu0 0
    %1871 = vmatprep.subr.bf16.mxu0 0
    %1872 = vmatpush1.bf16.xpose.msra.mxu0 0
    %1873 = vmatprep.subr.bf16.mxu0 0
    %1874 = vmatpush1.bf16.xpose.msra.mxu0 0
    %1875 = vmatprep.mubr.bf16.mxu0 0
    %1876 = vmatmul.mubr.bf16.gmra.mrb[0].mxu0 %v1838
    %v1877 = vpop.f32.mrb[0].mxu0
    %v1878 = vadd.f32 0.0, %v1877
    %v1879 = vpop.f32.mrb[0].mxu0
    %v1880 = vpop.f32.mrb[0].mxu0
    %v1881 = vpop.f32.mrb[0].mxu0
    %1882 = vdwg.mxu0
    %v1884 = vsel %vm94, %v589, 0
    %v1887 = vsel %vm94, %v955, 0
    %1889 = vmatprep.subr.bf16.mxu0 0
    %1890 = vmatpush1.bf16.xpose.msra.mxu0 %v1887
    %1891 = vmatprep.subr.bf16.mxu0 0
    %1892 = vmatpush1.bf16.xpose.msra.mxu0 0
    %1893 = vmatprep.subr.bf16.mxu0 0
    %1894 = vmatpush1.bf16.xpose.msra.mxu0 0
    %1895 = vmatprep.subr.bf16.mxu0 0
    %1896 = vmatpush1.bf16.xpose.msra.mxu0 0
    %1897 = vmatprep.subr.bf16.mxu0 0
    %1898 = vmatpush1.bf16.xpose.msra.mxu0 0
    %1899 = vmatprep.subr.bf16.mxu0 0
    %1900 = vmatpush1.bf16.xpose.msra.mxu0 0
    %1901 = vmatprep.subr.bf16.mxu0 0
    %1902 = vmatpush1.bf16.xpose.msra.mxu0 0
    %1903 = vmatprep.subr.bf16.mxu0 0
    %1904 = vmatpush1.bf16.xpose.msra.mxu0 0
    %1905 = vmatprep.subr.bf16.mxu0 0
    %1906 = vmatpush1.bf16.xpose.msra.mxu0 0
    %1907 = vmatprep.subr.bf16.mxu0 0
    %1908 = vmatpush1.bf16.xpose.msra.mxu0 0
    %1909 = vmatprep.subr.bf16.mxu0 0
    %1910 = vmatpush1.bf16.xpose.msra.mxu0 0
    %1911 = vmatprep.subr.bf16.mxu0 0
    %1912 = vmatpush1.bf16.xpose.msra.mxu0 0
    %1913 = vmatprep.subr.bf16.mxu0 0
    %1914 = vmatpush1.bf16.xpose.msra.mxu0 0
    %1915 = vmatprep.subr.bf16.mxu0 0
    %1916 = vmatpush1.bf16.xpose.msra.mxu0 0
    %1917 = vmatprep.subr.bf16.mxu0 0
    %1918 = vmatpush1.bf16.xpose.msra.mxu0 0
    %1919 = vmatprep.subr.bf16.mxu0 0
    %1920 = vmatpush1.bf16.xpose.msra.mxu0 0
    %1921 = vmatprep.mubr.bf16.mxu0 0
    %1922 = vmatmul.mubr.bf16.gmra.mrb[0].mxu0 %v1884
    %v1923 = vpop.f32.mrb[0].mxu0
    %v1924 = vadd.f32 0.0, %v1923
    %v1925 = vpop.f32.mrb[0].mxu0
    %v1926 = vpop.f32.mrb[0].mxu0
    %v1927 = vpop.f32.mrb[0].mxu0
    %1928 = vdwg.mxu0
    %v1930 = vsel %vm94, %v592, 0
    %v1933 = vsel %vm94, %v958, 0
    %1935 = vmatprep.subr.bf16.mxu0 0
    %1936 = vmatpush1.bf16.xpose.msra.mxu0 %v1933
    %1937 = vmatprep.subr.bf16.mxu0 0
    %1938 = vmatpush1.bf16.xpose.msra.mxu0 0
    %1939 = vmatprep.subr.bf16.mxu0 0
    %1940 = vmatpush1.bf16.xpose.msra.mxu0 0
    %1941 = vmatprep.subr.bf16.mxu0 0
    %1942 = vmatpush1.bf16.xpose.msra.mxu0 0
    %1943 = vmatprep.subr.bf16.mxu0 0
    %1944 = vmatpush1.bf16.xpose.msra.mxu0 0
    %1945 = vmatprep.subr.bf16.mxu0 0
    %1946 = vmatpush1.bf16.xpose.msra.mxu0 0
    %1947 = vmatprep.subr.bf16.mxu0 0
    %1948 = vmatpush1.bf16.xpose.msra.mxu0 0
    %1949 = vmatprep.subr.bf16.mxu0 0
    %1950 = vmatpush1.bf16.xpose.msra.mxu0 0
    %1951 = vmatprep.subr.bf16.mxu0 0
    %1952 = vmatpush1.bf16.xpose.msra.mxu0 0
    %1953 = vmatprep.subr.bf16.mxu0 0
    %1954 = vmatpush1.bf16.xpose.msra.mxu0 0
    %1955 = vmatprep.subr.bf16.mxu0 0
    %1956 = vmatpush1.bf16.xpose.msra.mxu0 0
    %1957 = vmatprep.subr.bf16.mxu0 0
    %1958 = vmatpush1.bf16.xpose.msra.mxu0 0
    %1959 = vmatprep.subr.bf16.mxu0 0
    %1960 = vmatpush1.bf16.xpose.msra.mxu0 0
    %1961 = vmatprep.subr.bf16.mxu0 0
    %1962 = vmatpush1.bf16.xpose.msra.mxu0 0
    %1963 = vmatprep.subr.bf16.mxu0 0
    %1964 = vmatpush1.bf16.xpose.msra.mxu0 0
    %1965 = vmatprep.subr.bf16.mxu0 0
    %1966 = vmatpush1.bf16.xpose.msra.mxu0 0
    %1967 = vmatprep.mubr.bf16.mxu0 0
    %1968 = vmatmul.mubr.bf16.gmra.mrb[0].mxu0 %v1930
    %v1969 = vpop.f32.mrb[0].mxu0
    %v1970 = vadd.f32 0.0, %v1969
    %v1971 = vpop.f32.mrb[0].mxu0
    %v1972 = vpop.f32.mrb[0].mxu0
    %v1973 = vpop.f32.mrb[0].mxu0
    %1974 = vdwg.mxu0
    %v1976 = vsel %vm94, %v595, 0
    %v1979 = vsel %vm94, %v961, 0
    %1981 = vmatprep.subr.bf16.mxu0 0
    %1982 = vmatpush1.bf16.xpose.msra.mxu0 %v1979
    %1983 = vmatprep.subr.bf16.mxu0 0
    %1984 = vmatpush1.bf16.xpose.msra.mxu0 0
    %1985 = vmatprep.subr.bf16.mxu0 0
    %1986 = vmatpush1.bf16.xpose.msra.mxu0 0
    %1987 = vmatprep.subr.bf16.mxu0 0
    %1988 = vmatpush1.bf16.xpose.msra.mxu0 0
    %1989 = vmatprep.subr.bf16.mxu0 0
    %1990 = vmatpush1.bf16.xpose.msra.mxu0 0
    %1991 = vmatprep.subr.bf16.mxu0 0
    %1992 = vmatpush1.bf16.xpose.msra.mxu0 0
    %1993 = vmatprep.subr.bf16.mxu0 0
    %1994 = vmatpush1.bf16.xpose.msra.mxu0 0
    %1995 = vmatprep.subr.bf16.mxu0 0
    %1996 = vmatpush1.bf16.xpose.msra.mxu0 0
    %1997 = vmatprep.subr.bf16.mxu0 0
    %1998 = vmatpush1.bf16.xpose.msra.mxu0 0
    %1999 = vmatprep.subr.bf16.mxu0 0
    %2000 = vmatpush1.bf16.xpose.msra.mxu0 0
    %2001 = vmatprep.subr.bf16.mxu0 0
    %2002 = vmatpush1.bf16.xpose.msra.mxu0 0
    %2003 = vmatprep.subr.bf16.mxu0 0
    %2004 = vmatpush1.bf16.xpose.msra.mxu0 0
    %2005 = vmatprep.subr.bf16.mxu0 0
    %2006 = vmatpush1.bf16.xpose.msra.mxu0 0
    %2007 = vmatprep.subr.bf16.mxu0 0
    %2008 = vmatpush1.bf16.xpose.msra.mxu0 0
    %2009 = vmatprep.subr.bf16.mxu0 0
    %2010 = vmatpush1.bf16.xpose.msra.mxu0 0
    %2011 = vmatprep.subr.bf16.mxu0 0
    %2012 = vmatpush1.bf16.xpose.msra.mxu0 0
    %2013 = vmatprep.mubr.bf16.mxu0 0
    %2014 = vmatmul.mubr.bf16.gmra.mrb[0].mxu0 %v1976
    %v2015 = vpop.f32.mrb[0].mxu0
    %v2016 = vadd.f32 0.0, %v2015
    %v2017 = vpop.f32.mrb[0].mxu0
    %v2018 = vpop.f32.mrb[0].mxu0
    %v2019 = vpop.f32.mrb[0].mxu0
    %2020 = vdwg.mxu0
    %v2022 = vsel %vm94, %v598, 0
    %v2025 = vsel %vm94, %v964, 0
    %2027 = vmatprep.subr.bf16.mxu0 0
    %2028 = vmatpush1.bf16.xpose.msra.mxu0 %v2025
    %2029 = vmatprep.subr.bf16.mxu0 0
    %2030 = vmatpush1.bf16.xpose.msra.mxu0 0
    %2031 = vmatprep.subr.bf16.mxu0 0
    %2032 = vmatpush1.bf16.xpose.msra.mxu0 0
    %2033 = vmatprep.subr.bf16.mxu0 0
    %2034 = vmatpush1.bf16.xpose.msra.mxu0 0
    %2035 = vmatprep.subr.bf16.mxu0 0
    %2036 = vmatpush1.bf16.xpose.msra.mxu0 0
    %2037 = vmatprep.subr.bf16.mxu0 0
    %2038 = vmatpush1.bf16.xpose.msra.mxu0 0
    %2039 = vmatprep.subr.bf16.mxu0 0
    %2040 = vmatpush1.bf16.xpose.msra.mxu0 0
    %2041 = vmatprep.subr.bf16.mxu0 0
    %2042 = vmatpush1.bf16.xpose.msra.mxu0 0
    %2043 = vmatprep.subr.bf16.mxu0 0
    %2044 = vmatpush1.bf16.xpose.msra.mxu0 0
    %2045 = vmatprep.subr.bf16.mxu0 0
    %2046 = vmatpush1.bf16.xpose.msra.mxu0 0
    %2047 = vmatprep.subr.bf16.mxu0 0
    %2048 = vmatpush1.bf16.xpose.msra.mxu0 0
    %2049 = vmatprep.subr.bf16.mxu0 0
    %2050 = vmatpush1.bf16.xpose.msra.mxu0 0
    %2051 = vmatprep.subr.bf16.mxu0 0
    %2052 = vmatpush1.bf16.xpose.msra.mxu0 0
    %2053 = vmatprep.subr.bf16.mxu0 0
    %2054 = vmatpush1.bf16.xpose.msra.mxu0 0
    %2055 = vmatprep.subr.bf16.mxu0 0
    %2056 = vmatpush1.bf16.xpose.msra.mxu0 0
    %2057 = vmatprep.subr.bf16.mxu0 0
    %2058 = vmatpush1.bf16.xpose.msra.mxu0 0
    %2059 = vmatprep.mubr.bf16.mxu0 0
    %2060 = vmatmul.mubr.bf16.gmra.mrb[0].mxu0 %v2022
    %v2061 = vpop.f32.mrb[0].mxu0
    %v2062 = vadd.f32 0.0, %v2061
    %v2063 = vpop.f32.mrb[0].mxu0
    %v2064 = vpop.f32.mrb[0].mxu0
    %v2065 = vpop.f32.mrb[0].mxu0
    %2066 = vdwg.mxu0
    %vm2067 = vcmask 64512
    %v2068 = vsel %vm2067, %v1372, -inf
    %2069 = vmax.xlane.f32.xlu0 %v2068
    %v2070 = vpop.xlane.xlu0 %2069
    %v2071 = vsel %vm2067, %v1418, -inf
    %2072 = vmax.xlane.f32.xlu0 %v2071
    %v2073 = vpop.xlane.xlu0 %2072
    %v2074 = vsel %vm2067, %v1464, -inf
    %2075 = vmax.xlane.f32.xlu0 %v2074
    %v2076 = vpop.xlane.xlu0 %2075
    %v2077 = vsel %vm2067, %v1510, -inf
    %2078 = vmax.xlane.f32.xlu0 %v2077
    %v2079 = vpop.xlane.xlu0 %2078
    %v2080 = vsel %vm2067, %v1556, -inf
    %2081 = vmax.xlane.f32.xlu0 %v2080
    %v2082 = vpop.xlane.xlu0 %2081
    %v2083 = vsel %vm2067, %v1602, -inf
    %2084 = vmax.xlane.f32.xlu0 %v2083
    %v2085 = vpop.xlane.xlu0 %2084
    %v2086 = vsel %vm2067, %v1648, -inf
    %2087 = vmax.xlane.f32.xlu0 %v2086
    %v2088 = vpop.xlane.xlu0 %2087
    %v2089 = vsel %vm2067, %v1694, -inf
    %2090 = vmax.xlane.f32.xlu0 %v2089
    %v2091 = vpop.xlane.xlu0 %2090
    %v2092 = vsel %vm2067, %v1740, -inf
    %2093 = vmax.xlane.f32.xlu0 %v2092
    %v2094 = vpop.xlane.xlu0 %2093
    %v2095 = vsel %vm2067, %v1786, -inf
    %2096 = vmax.xlane.f32.xlu0 %v2095
    %v2097 = vpop.xlane.xlu0 %2096
    %v2098 = vsel %vm2067, %v1832, -inf
    %2099 = vmax.xlane.f32.xlu0 %v2098
    %v2100 = vpop.xlane.xlu0 %2099
    %v2101 = vsel %vm2067, %v1878, -inf
    %2102 = vmax.xlane.f32.xlu0 %v2101
    %v2103 = vpop.xlane.xlu0 %2102
    %v2104 = vsel %vm2067, %v1924, -inf
    %2105 = vmax.xlane.f32.xlu0 %v2104
    %v2106 = vpop.xlane.xlu0 %2105
    %v2107 = vsel %vm2067, %v1970, -inf
    %2108 = vmax.xlane.f32.xlu0 %v2107
    %v2109 = vpop.xlane.xlu0 %2108
    %v2110 = vsel %vm2067, %v2016, -inf
    %2111 = vmax.xlane.f32.xlu0 %v2110
    %v2112 = vpop.xlane.xlu0 %2111
    %v2113 = vsel %vm2067, %v2062, -inf
    %2114 = vmax.xlane.f32.xlu0 %v2113
    %v2115 = vpop.xlane.xlu0 %2114
    %v2116 = vsub.f32 %v1372, %v2070
    %v2117 = vsub.f32 %v1418, %v2073
    %v2118 = vsub.f32 %v1464, %v2076
    %v2119 = vsub.f32 %v1510, %v2079
    %v2120 = vsub.f32 %v1556, %v2082
    %v2121 = vsub.f32 %v1602, %v2085
    %v2122 = vsub.f32 %v1648, %v2088
    %v2123 = vsub.f32 %v1694, %v2091
    %v2124 = vsub.f32 %v1740, %v2094
    %v2125 = vsub.f32 %v1786, %v2097
    %v2126 = vsub.f32 %v1832, %v2100
    %v2127 = vsub.f32 %v1878, %v2103
    %v2128 = vsub.f32 %v1924, %v2106
    %v2129 = vsub.f32 %v1970, %v2109
    %v2130 = vsub.f32 %v2016, %v2112
    %v2131 = vsub.f32 %v2062, %v2115
    %v2132 = vmul.f32 %v2116, 1.442695
    %v2133 = vpow.pop %v2132
    %v2134 = vmul.f32 %v2117, 1.442695
    %v2135 = vpow.pop %v2134
    %v2136 = vmul.f32 %v2118, 1.442695
    %v2137 = vpow.pop %v2136
    %v2138 = vmul.f32 %v2119, 1.442695
    %v2139 = vpow.pop %v2138
    %v2140 = vmul.f32 %v2120, 1.442695
    %v2141 = vpow.pop %v2140
    %v2142 = vmul.f32 %v2121, 1.442695
    %v2143 = vpow.pop %v2142
    %v2144 = vmul.f32 %v2122, 1.442695
    %v2145 = vpow.pop %v2144
    %v2146 = vmul.f32 %v2123, 1.442695
    %v2147 = vpow.pop %v2146
    %v2148 = vmul.f32 %v2124, 1.442695
    %v2149 = vpow.pop %v2148
    %v2150 = vmul.f32 %v2125, 1.442695
    %v2151 = vpow.pop %v2150
    %v2152 = vmul.f32 %v2126, 1.442695
    %v2153 = vpow.pop %v2152
    %v2154 = vmul.f32 %v2127, 1.442695
    %v2155 = vpow.pop %v2154
    %v2156 = vmul.f32 %v2128, 1.442695
    %v2157 = vpow.pop %v2156
    %v2158 = vmul.f32 %v2129, 1.442695
    %v2159 = vpow.pop %v2158
    %v2160 = vmul.f32 %v2130, 1.442695
    %v2161 = vpow.pop %v2160
    %v2162 = vmul.f32 %v2131, 1.442695
    %v2163 = vpow.pop %v2162
    %v2164 = vsel %vm2067, %v2133, 0.0
    %2165 = vadd.xlane.f32.xlu0 %v2164
    %v2166 = vpop.xlane.xlu0 %2165
    %v2167 = vsel %vm2067, %v2135, 0.0
    %2168 = vadd.xlane.f32.xlu0 %v2167
    %v2169 = vpop.xlane.xlu0 %2168
    %v2170 = vsel %vm2067, %v2137, 0.0
    %2171 = vadd.xlane.f32.xlu0 %v2170
    %v2172 = vpop.xlane.xlu0 %2171
    %v2173 = vsel %vm2067, %v2139, 0.0
    %2174 = vadd.xlane.f32.xlu0 %v2173
    %v2175 = vpop.xlane.xlu0 %2174
    %v2176 = vsel %vm2067, %v2141, 0.0
    %2177 = vadd.xlane.f32.xlu0 %v2176
    %v2178 = vpop.xlane.xlu0 %2177
    %v2179 = vsel %vm2067, %v2143, 0.0
    %2180 = vadd.xlane.f32.xlu0 %v2179
    %v2181 = vpop.xlane.xlu0 %2180
    %v2182 = vsel %vm2067, %v2145, 0.0
    %2183 = vadd.xlane.f32.xlu0 %v2182
    %v2184 = vpop.xlane.xlu0 %2183
    %v2185 = vsel %vm2067, %v2147, 0.0
    %2186 = vadd.xlane.f32.xlu0 %v2185
    %v2187 = vpop.xlane.xlu0 %2186
    %v2188 = vsel %vm2067, %v2149, 0.0
    %2189 = vadd.xlane.f32.xlu0 %v2188
    %v2190 = vpop.xlane.xlu0 %2189
    %v2191 = vsel %vm2067, %v2151, 0.0
    %2192 = vadd.xlane.f32.xlu0 %v2191
    %v2193 = vpop.xlane.xlu0 %2192
    %v2194 = vsel %vm2067, %v2153, 0.0
    %2195 = vadd.xlane.f32.xlu0 %v2194
    %v2196 = vpop.xlane.xlu0 %2195
    %v2197 = vsel %vm2067, %v2155, 0.0
    %2198 = vadd.xlane.f32.xlu0 %v2197
    %v2199 = vpop.xlane.xlu0 %2198
    %v2200 = vsel %vm2067, %v2157, 0.0
    %2201 = vadd.xlane.f32.xlu0 %v2200
    %v2202 = vpop.xlane.xlu0 %2201
    %v2203 = vsel %vm2067, %v2159, 0.0
    %2204 = vadd.xlane.f32.xlu0 %v2203
    %v2205 = vpop.xlane.xlu0 %2204
    %v2206 = vsel %vm2067, %v2161, 0.0
    %2207 = vadd.xlane.f32.xlu0 %v2206
    %v2208 = vpop.xlane.xlu0 %2207
    %v2209 = vsel %vm2067, %v2163, 0.0
    %2210 = vadd.xlane.f32.xlu0 %v2209
    %v2211 = vpop.xlane.xlu0 %2210
    %v2212 = vrcp.pop %v2166
    %v2213 = vrcp.pop %v2169
    %v2214 = vrcp.pop %v2172
    %v2215 = vrcp.pop %v2175
    %v2216 = vrcp.pop %v2178
    %v2217 = vrcp.pop %v2181
    %v2218 = vrcp.pop %v2184
    %v2219 = vrcp.pop %v2187
    %v2220 = vrcp.pop %v2190
    %v2221 = vrcp.pop %v2193
    %v2222 = vrcp.pop %v2196
    %v2223 = vrcp.pop %v2199
    %v2224 = vrcp.pop %v2202
    %v2225 = vrcp.pop %v2205
    %v2226 = vrcp.pop %v2208
    %v2227 = vrcp.pop %v2211
    %v2228 = vmul.f32 %v2133, %v2212
    %v2229 = vmul.f32 %v2135, %v2213
    %v2230 = vmul.f32 %v2137, %v2214
    %v2231 = vmul.f32 %v2139, %v2215
    %v2232 = vmul.f32 %v2141, %v2216
    %v2233 = vmul.f32 %v2143, %v2217
    %v2234 = vmul.f32 %v2145, %v2218
    %v2235 = vmul.f32 %v2147, %v2219
    %v2236 = vmul.f32 %v2149, %v2220
    %v2237 = vmul.f32 %v2151, %v2221
    %v2238 = vmul.f32 %v2153, %v2222
    %v2239 = vmul.f32 %v2155, %v2223
    %v2240 = vmul.f32 %v2157, %v2224
    %v2241 = vmul.f32 %v2159, %v2225
    %v2242 = vmul.f32 %v2161, %v2226
    %v2243 = vmul.f32 %v2163, %v2227
    %v2244 = vpack.c.bf16 %v2228, %v2228
    %v2245 = vpack.c.bf16 %v2229, %v2229
    %v2246 = vpack.c.bf16 %v2230, %v2230
    %v2247 = vpack.c.bf16 %v2231, %v2231
    %v2248 = vpack.c.bf16 %v2232, %v2232
    %v2249 = vpack.c.bf16 %v2233, %v2233
    %v2250 = vpack.c.bf16 %v2234, %v2234
    %v2251 = vpack.c.bf16 %v2235, %v2235
    %v2252 = vpack.c.bf16 %v2236, %v2236
    %v2253 = vpack.c.bf16 %v2237, %v2237
    %v2254 = vpack.c.bf16 %v2238, %v2238
    %v2255 = vpack.c.bf16 %v2239, %v2239
    %v2256 = vpack.c.bf16 %v2240, %v2240
    %v2257 = vpack.c.bf16 %v2241, %v2241
    %v2258 = vpack.c.bf16 %v2242, %v2242
    %v2259 = vpack.c.bf16 %v2243, %v2243
    %v2261 = vsel %vm2067, %v2244, 0
    %vm2263 = vcmask 1043456
    %v2265 = vsel %vm2263, %v1285, 0
    %2267 = vmatprep.subr.bf16.mxu0 0
    %2268 = vmatpush1.bf16.msra.mxu0 %v2265
    %2269 = vmatprep.subr.bf16.mxu0 0
    %2270 = vmatpush1.bf16.msra.mxu0 0
    %2271 = vmatprep.subr.bf16.mxu0 0
    %2272 = vmatpush1.bf16.msra.mxu0 0
    %2273 = vmatprep.subr.bf16.mxu0 0
    %2274 = vmatpush1.bf16.msra.mxu0 0
    %2275 = vmatprep.subr.bf16.mxu0 0
    %2276 = vmatpush1.bf16.msra.mxu0 0
    %2277 = vmatprep.subr.bf16.mxu0 0
    %2278 = vmatpush1.bf16.msra.mxu0 0
    %2279 = vmatprep.subr.bf16.mxu0 0
    %2280 = vmatpush1.bf16.msra.mxu0 0
    %2281 = vmatprep.subr.bf16.mxu0 0
    %2282 = vmatpush1.bf16.msra.mxu0 0
    %2283 = vmatprep.subr.bf16.mxu0 0
    %2284 = vmatpush1.bf16.msra.mxu0 0
    %2285 = vmatprep.subr.bf16.mxu0 0
    %2286 = vmatpush1.bf16.msra.mxu0 0
    %2287 = vmatprep.subr.bf16.mxu0 0
    %2288 = vmatpush1.bf16.msra.mxu0 0
    %2289 = vmatprep.subr.bf16.mxu0 0
    %2290 = vmatpush1.bf16.msra.mxu0 0
    %2291 = vmatprep.subr.bf16.mxu0 0
    %2292 = vmatpush1.bf16.msra.mxu0 0
    %2293 = vmatprep.subr.bf16.mxu0 0
    %2294 = vmatpush1.bf16.msra.mxu0 0
    %2295 = vmatprep.subr.bf16.mxu0 0
    %2296 = vmatpush1.bf16.msra.mxu0 0
    %2297 = vmatprep.subr.bf16.mxu0 0
    %2298 = vmatpush1.bf16.msra.mxu0 0
    %2299 = vmatprep.mubr.bf16.mxu0 0
    %2300 = vmatmul.mubr.bf16.gmra.mrb[0].mxu0 %v2261
    %v2301 = vpop.f32.mrb[0].mxu0
    %v2302 = vadd.f32 0.0, %v2301
    %v2303 = vpop.f32.mrb[0].mxu0
    %v2304 = vpop.f32.mrb[0].mxu0
    %v2305 = vpop.f32.mrb[0].mxu0
    %2306 = vdwg.mxu0
    %v2308 = vsel %vm2067, %v2245, 0
    %v2311 = vsel %vm2263, %v1288, 0
    %2313 = vmatprep.subr.bf16.mxu0 0
    %2314 = vmatpush1.bf16.msra.mxu0 %v2311
    %2315 = vmatprep.subr.bf16.mxu0 0
    %2316 = vmatpush1.bf16.msra.mxu0 0
    %2317 = vmatprep.subr.bf16.mxu0 0
    %2318 = vmatpush1.bf16.msra.mxu0 0
    %2319 = vmatprep.subr.bf16.mxu0 0
    %2320 = vmatpush1.bf16.msra.mxu0 0
    %2321 = vmatprep.subr.bf16.mxu0 0
    %2322 = vmatpush1.bf16.msra.mxu0 0
    %2323 = vmatprep.subr.bf16.mxu0 0
    %2324 = vmatpush1.bf16.msra.mxu0 0
    %2325 = vmatprep.subr.bf16.mxu0 0
    %2326 = vmatpush1.bf16.msra.mxu0 0
    %2327 = vmatprep.subr.bf16.mxu0 0
    %2328 = vmatpush1.bf16.msra.mxu0 0
    %2329 = vmatprep.subr.bf16.mxu0 0
    %2330 = vmatpush1.bf16.msra.mxu0 0
    %2331 = vmatprep.subr.bf16.mxu0 0
    %2332 = vmatpush1.bf16.msra.mxu0 0
    %2333 = vmatprep.subr.bf16.mxu0 0
    %2334 = vmatpush1.bf16.msra.mxu0 0
    %2335 = vmatprep.subr.bf16.mxu0 0
    %2336 = vmatpush1.bf16.msra.mxu0 0
    %2337 = vmatprep.subr.bf16.mxu0 0
    %2338 = vmatpush1.bf16.msra.mxu0 0
    %2339 = vmatprep.subr.bf16.mxu0 0
    %2340 = vmatpush1.bf16.msra.mxu0 0
    %2341 = vmatprep.subr.bf16.mxu0 0
    %2342 = vmatpush1.bf16.msra.mxu0 0
    %2343 = vmatprep.subr.bf16.mxu0 0
    %2344 = vmatpush1.bf16.msra.mxu0 0
    %2345 = vmatprep.mubr.bf16.mxu0 0
    %2346 = vmatmul.mubr.bf16.gmra.mrb[0].mxu0 %v2308
    %v2347 = vpop.f32.mrb[0].mxu0
    %v2348 = vadd.f32 0.0, %v2347
    %v2349 = vpop.f32.mrb[0].mxu0
    %v2350 = vpop.f32.mrb[0].mxu0
    %v2351 = vpop.f32.mrb[0].mxu0
    %2352 = vdwg.mxu0
    %v2354 = vsel %vm2067, %v2246, 0
    %v2357 = vsel %vm2263, %v1291, 0
    %2359 = vmatprep.subr.bf16.mxu0 0
    %2360 = vmatpush1.bf16.msra.mxu0 %v2357
    %2361 = vmatprep.subr.bf16.mxu0 0
    %2362 = vmatpush1.bf16.msra.mxu0 0
    %2363 = vmatprep.subr.bf16.mxu0 0
    %2364 = vmatpush1.bf16.msra.mxu0 0
    %2365 = vmatprep.subr.bf16.mxu0 0
    %2366 = vmatpush1.bf16.msra.mxu0 0
    %2367 = vmatprep.subr.bf16.mxu0 0
    %2368 = vmatpush1.bf16.msra.mxu0 0
    %2369 = vmatprep.subr.bf16.mxu0 0
    %2370 = vmatpush1.bf16.msra.mxu0 0
    %2371 = vmatprep.subr.bf16.mxu0 0
    %2372 = vmatpush1.bf16.msra.mxu0 0
    %2373 = vmatprep.subr.bf16.mxu0 0
    %2374 = vmatpush1.bf16.msra.mxu0 0
    %2375 = vmatprep.subr.bf16.mxu0 0
    %2376 = vmatpush1.bf16.msra.mxu0 0
    %2377 = vmatprep.subr.bf16.mxu0 0
    %2378 = vmatpush1.bf16.msra.mxu0 0
    %2379 = vmatprep.subr.bf16.mxu0 0
    %2380 = vmatpush1.bf16.msra.mxu0 0
    %2381 = vmatprep.subr.bf16.mxu0 0
    %2382 = vmatpush1.bf16.msra.mxu0 0
    %2383 = vmatprep.subr.bf16.mxu0 0
    %2384 = vmatpush1.bf16.msra.mxu0 0
    %2385 = vmatprep.subr.bf16.mxu0 0
    %2386 = vmatpush1.bf16.msra.mxu0 0
    %2387 = vmatprep.subr.bf16.mxu0 0
    %2388 = vmatpush1.bf16.msra.mxu0 0
    %2389 = vmatprep.subr.bf16.mxu0 0
    %2390 = vmatpush1.bf16.msra.mxu0 0
    %2391 = vmatprep.mubr.bf16.mxu0 0
    %2392 = vmatmul.mubr.bf16.gmra.mrb[0].mxu0 %v2354
    %v2393 = vpop.f32.mrb[0].mxu0
    %v2394 = vadd.f32 0.0, %v2393
    %v2395 = vpop.f32.mrb[0].mxu0
    %v2396 = vpop.f32.mrb[0].mxu0
    %v2397 = vpop.f32.mrb[0].mxu0
    %2398 = vdwg.mxu0
    %v2400 = vsel %vm2067, %v2247, 0
    %v2403 = vsel %vm2263, %v1294, 0
    %2405 = vmatprep.subr.bf16.mxu0 0
    %2406 = vmatpush1.bf16.msra.mxu0 %v2403
    %2407 = vmatprep.subr.bf16.mxu0 0
    %2408 = vmatpush1.bf16.msra.mxu0 0
    %2409 = vmatprep.subr.bf16.mxu0 0
    %2410 = vmatpush1.bf16.msra.mxu0 0
    %2411 = vmatprep.subr.bf16.mxu0 0
    %2412 = vmatpush1.bf16.msra.mxu0 0
    %2413 = vmatprep.subr.bf16.mxu0 0
    %2414 = vmatpush1.bf16.msra.mxu0 0
    %2415 = vmatprep.subr.bf16.mxu0 0
    %2416 = vmatpush1.bf16.msra.mxu0 0
    %2417 = vmatprep.subr.bf16.mxu0 0
    %2418 = vmatpush1.bf16.msra.mxu0 0
    %2419 = vmatprep.subr.bf16.mxu0 0
    %2420 = vmatpush1.bf16.msra.mxu0 0
    %2421 = vmatprep.subr.bf16.mxu0 0
    %2422 = vmatpush1.bf16.msra.mxu0 0
    %2423 = vmatprep.subr.bf16.mxu0 0
    %2424 = vmatpush1.bf16.msra.mxu0 0
    %2425 = vmatprep.subr.bf16.mxu0 0
    %2426 = vmatpush1.bf16.msra.mxu0 0
    %2427 = vmatprep.subr.bf16.mxu0 0
    %2428 = vmatpush1.bf16.msra.mxu0 0
    %2429 = vmatprep.subr.bf16.mxu0 0
    %2430 = vmatpush1.bf16.msra.mxu0 0
    %2431 = vmatprep.subr.bf16.mxu0 0
    %2432 = vmatpush1.bf16.msra.mxu0 0
    %2433 = vmatprep.subr.bf16.mxu0 0
    %2434 = vmatpush1.bf16.msra.mxu0 0
    %2435 = vmatprep.subr.bf16.mxu0 0
    %2436 = vmatpush1.bf16.msra.mxu0 0
    %2437 = vmatprep.mubr.bf16.mxu0 0
    %2438 = vmatmul.mubr.bf16.gmra.mrb[0].mxu0 %v2400
    %v2439 = vpop.f32.mrb[0].mxu0
    %v2440 = vadd.f32 0.0, %v2439
    %v2441 = vpop.f32.mrb[0].mxu0
    %v2442 = vpop.f32.mrb[0].mxu0
    %v2443 = vpop.f32.mrb[0].mxu0
    %2444 = vdwg.mxu0
    %v2446 = vsel %vm2067, %v2248, 0
    %v2449 = vsel %vm2263, %v1297, 0
    %2451 = vmatprep.subr.bf16.mxu0 0
    %2452 = vmatpush1.bf16.msra.mxu0 %v2449
    %2453 = vmatprep.subr.bf16.mxu0 0
    %2454 = vmatpush1.bf16.msra.mxu0 0
    %2455 = vmatprep.subr.bf16.mxu0 0
    %2456 = vmatpush1.bf16.msra.mxu0 0
    %2457 = vmatprep.subr.bf16.mxu0 0
    %2458 = vmatpush1.bf16.msra.mxu0 0
    %2459 = vmatprep.subr.bf16.mxu0 0
    %2460 = vmatpush1.bf16.msra.mxu0 0
    %2461 = vmatprep.subr.bf16.mxu0 0
    %2462 = vmatpush1.bf16.msra.mxu0 0
    %2463 = vmatprep.subr.bf16.mxu0 0
    %2464 = vmatpush1.bf16.msra.mxu0 0
    %2465 = vmatprep.subr.bf16.mxu0 0
    %2466 = vmatpush1.bf16.msra.mxu0 0
    %2467 = vmatprep.subr.bf16.mxu0 0
    %2468 = vmatpush1.bf16.msra.mxu0 0
    %2469 = vmatprep.subr.bf16.mxu0 0
    %2470 = vmatpush1.bf16.msra.mxu0 0
    %2471 = vmatprep.subr.bf16.mxu0 0
    %2472 = vmatpush1.bf16.msra.mxu0 0
    %2473 = vmatprep.subr.bf16.mxu0 0
    %2474 = vmatpush1.bf16.msra.mxu0 0
    %2475 = vmatprep.subr.bf16.mxu0 0
    %2476 = vmatpush1.bf16.msra.mxu0 0
    %2477 = vmatprep.subr.bf16.mxu0 0
    %2478 = vmatpush1.bf16.msra.mxu0 0
    %2479 = vmatprep.subr.bf16.mxu0 0
    %2480 = vmatpush1.bf16.msra.mxu0 0
    %2481 = vmatprep.subr.bf16.mxu0 0
    %2482 = vmatpush1.bf16.msra.mxu0 0
    %2483 = vmatprep.mubr.bf16.mxu0 0
    %2484 = vmatmul.mubr.bf16.gmra.mrb[0].mxu0 %v2446
    %v2485 = vpop.f32.mrb[0].mxu0
    %v2486 = vadd.f32 0.0, %v2485
    %v2487 = vpop.f32.mrb[0].mxu0
    %v2488 = vpop.f32.mrb[0].mxu0
    %v2489 = vpop.f32.mrb[0].mxu0
    %2490 = vdwg.mxu0
    %v2492 = vsel %vm2067, %v2249, 0
    %v2495 = vsel %vm2263, %v1300, 0
    %2497 = vmatprep.subr.bf16.mxu0 0
    %2498 = vmatpush1.bf16.msra.mxu0 %v2495
    %2499 = vmatprep.subr.bf16.mxu0 0
    %2500 = vmatpush1.bf16.msra.mxu0 0
    %2501 = vmatprep.subr.bf16.mxu0 0
    %2502 = vmatpush1.bf16.msra.mxu0 0
    %2503 = vmatprep.subr.bf16.mxu0 0
    %2504 = vmatpush1.bf16.msra.mxu0 0
    %2505 = vmatprep.subr.bf16.mxu0 0
    %2506 = vmatpush1.bf16.msra.mxu0 0
    %2507 = vmatprep.subr.bf16.mxu0 0
    %2508 = vmatpush1.bf16.msra.mxu0 0
    %2509 = vmatprep.subr.bf16.mxu0 0
    %2510 = vmatpush1.bf16.msra.mxu0 0
    %2511 = vmatprep.subr.bf16.mxu0 0
    %2512 = vmatpush1.bf16.msra.mxu0 0
    %2513 = vmatprep.subr.bf16.mxu0 0
    %2514 = vmatpush1.bf16.msra.mxu0 0
    %2515 = vmatprep.subr.bf16.mxu0 0
    %2516 = vmatpush1.bf16.msra.mxu0 0
    %2517 = vmatprep.subr.bf16.mxu0 0
    %2518 = vmatpush1.bf16.msra.mxu0 0
    %2519 = vmatprep.subr.bf16.mxu0 0
    %2520 = vmatpush1.bf16.msra.mxu0 0
    %2521 = vmatprep.subr.bf16.mxu0 0
    %2522 = vmatpush1.bf16.msra.mxu0 0
    %2523 = vmatprep.subr.bf16.mxu0 0
    %2524 = vmatpush1.bf16.msra.mxu0 0
    %2525 = vmatprep.subr.bf16.mxu0 0
    %2526 = vmatpush1.bf16.msra.mxu0 0
    %2527 = vmatprep.subr.bf16.mxu0 0
    %2528 = vmatpush1.bf16.msra.mxu0 0
    %2529 = vmatprep.mubr.bf16.mxu0 0
    %2530 = vmatmul.mubr.bf16.gmra.mrb[0].mxu0 %v2492
    %v2531 = vpop.f32.mrb[0].mxu0
    %v2532 = vadd.f32 0.0, %v2531
    %v2533 = vpop.f32.mrb[0].mxu0
    %v2534 = vpop.f32.mrb[0].mxu0
    %v2535 = vpop.f32.mrb[0].mxu0
    %2536 = vdwg.mxu0
    %v2538 = vsel %vm2067, %v2250, 0
    %v2541 = vsel %vm2263, %v1303, 0
    %2543 = vmatprep.subr.bf16.mxu0 0
    %2544 = vmatpush1.bf16.msra.mxu0 %v2541
    %2545 = vmatprep.subr.bf16.mxu0 0
    %2546 = vmatpush1.bf16.msra.mxu0 0
    %2547 = vmatprep.subr.bf16.mxu0 0
    %2548 = vmatpush1.bf16.msra.mxu0 0
    %2549 = vmatprep.subr.bf16.mxu0 0
    %2550 = vmatpush1.bf16.msra.mxu0 0
    %2551 = vmatprep.subr.bf16.mxu0 0
    %2552 = vmatpush1.bf16.msra.mxu0 0
    %2553 = vmatprep.subr.bf16.mxu0 0
    %2554 = vmatpush1.bf16.msra.mxu0 0
    %2555 = vmatprep.subr.bf16.mxu0 0
    %2556 = vmatpush1.bf16.msra.mxu0 0
    %2557 = vmatprep.subr.bf16.mxu0 0
    %2558 = vmatpush1.bf16.msra.mxu0 0
    %2559 = vmatprep.subr.bf16.mxu0 0
    %2560 = vmatpush1.bf16.msra.mxu0 0
    %2561 = vmatprep.subr.bf16.mxu0 0
    %2562 = vmatpush1.bf16.msra.mxu0 0
    %2563 = vmatprep.subr.bf16.mxu0 0
    %2564 = vmatpush1.bf16.msra.mxu0 0
    %2565 = vmatprep.subr.bf16.mxu0 0
    %2566 = vmatpush1.bf16.msra.mxu0 0
    %2567 = vmatprep.subr.bf16.mxu0 0
    %2568 = vmatpush1.bf16.msra.mxu0 0
    %2569 = vmatprep.subr.bf16.mxu0 0
    %2570 = vmatpush1.bf16.msra.mxu0 0
    %2571 = vmatprep.subr.bf16.mxu0 0
    %2572 = vmatpush1.bf16.msra.mxu0 0
    %2573 = vmatprep.subr.bf16.mxu0 0
    %2574 = vmatpush1.bf16.msra.mxu0 0
    %2575 = vmatprep.mubr.bf16.mxu0 0
    %2576 = vmatmul.mubr.bf16.gmra.mrb[0].mxu0 %v2538
    %v2577 = vpop.f32.mrb[0].mxu0
    %v2578 = vadd.f32 0.0, %v2577
    %v2579 = vpop.f32.mrb[0].mxu0
    %v2580 = vpop.f32.mrb[0].mxu0
    %v2581 = vpop.f32.mrb[0].mxu0
    %2582 = vdwg.mxu0
    %v2584 = vsel %vm2067, %v2251, 0
    %v2587 = vsel %vm2263, %v1306, 0
    %2589 = vmatprep.subr.bf16.mxu0 0
    %2590 = vmatpush1.bf16.msra.mxu0 %v2587
    %2591 = vmatprep.subr.bf16.mxu0 0
    %2592 = vmatpush1.bf16.msra.mxu0 0
    %2593 = vmatprep.subr.bf16.mxu0 0
    %2594 = vmatpush1.bf16.msra.mxu0 0
    %2595 = vmatprep.subr.bf16.mxu0 0
    %2596 = vmatpush1.bf16.msra.mxu0 0
    %2597 = vmatprep.subr.bf16.mxu0 0
    %2598 = vmatpush1.bf16.msra.mxu0 0
    %2599 = vmatprep.subr.bf16.mxu0 0
    %2600 = vmatpush1.bf16.msra.mxu0 0
    %2601 = vmatprep.subr.bf16.mxu0 0
    %2602 = vmatpush1.bf16.msra.mxu0 0
    %2603 = vmatprep.subr.bf16.mxu0 0
    %2604 = vmatpush1.bf16.msra.mxu0 0
    %2605 = vmatprep.subr.bf16.mxu0 0
    %2606 = vmatpush1.bf16.msra.mxu0 0
    %2607 = vmatprep.subr.bf16.mxu0 0
    %2608 = vmatpush1.bf16.msra.mxu0 0
    %2609 = vmatprep.subr.bf16.mxu0 0
    %2610 = vmatpush1.bf16.msra.mxu0 0
    %2611 = vmatprep.subr.bf16.mxu0 0
    %2612 = vmatpush1.bf16.msra.mxu0 0
    %2613 = vmatprep.subr.bf16.mxu0 0
    %2614 = vmatpush1.bf16.msra.mxu0 0
    %2615 = vmatprep.subr.bf16.mxu0 0
    %2616 = vmatpush1.bf16.msra.mxu0 0
    %2617 = vmatprep.subr.bf16.mxu0 0
    %2618 = vmatpush1.bf16.msra.mxu0 0
    %2619 = vmatprep.subr.bf16.mxu0 0
    %2620 = vmatpush1.bf16.msra.mxu0 0
    %2621 = vmatprep.mubr.bf16.mxu0 0
    %2622 = vmatmul.mubr.bf16.gmra.mrb[0].mxu0 %v2584
    %v2623 = vpop.f32.mrb[0].mxu0
    %v2624 = vadd.f32 0.0, %v2623
    %v2625 = vpop.f32.mrb[0].mxu0
    %v2626 = vpop.f32.mrb[0].mxu0
    %v2627 = vpop.f32.mrb[0].mxu0
    %2628 = vdwg.mxu0
    %v2630 = vsel %vm2067, %v2252, 0
    %v2633 = vsel %vm2263, %v1309, 0
    %2635 = vmatprep.subr.bf16.mxu0 0
    %2636 = vmatpush1.bf16.msra.mxu0 %v2633
    %2637 = vmatprep.subr.bf16.mxu0 0
    %2638 = vmatpush1.bf16.msra.mxu0 0
    %2639 = vmatprep.subr.bf16.mxu0 0
    %2640 = vmatpush1.bf16.msra.mxu0 0
    %2641 = vmatprep.subr.bf16.mxu0 0
    %2642 = vmatpush1.bf16.msra.mxu0 0
    %2643 = vmatprep.subr.bf16.mxu0 0
    %2644 = vmatpush1.bf16.msra.mxu0 0
    %2645 = vmatprep.subr.bf16.mxu0 0
    %2646 = vmatpush1.bf16.msra.mxu0 0
    %2647 = vmatprep.subr.bf16.mxu0 0
    %2648 = vmatpush1.bf16.msra.mxu0 0
    %2649 = vmatprep.subr.bf16.mxu0 0
    %2650 = vmatpush1.bf16.msra.mxu0 0
    %2651 = vmatprep.subr.bf16.mxu0 0
    %2652 = vmatpush1.bf16.msra.mxu0 0
    %2653 = vmatprep.subr.bf16.mxu0 0
    %2654 = vmatpush1.bf16.msra.mxu0 0
    %2655 = vmatprep.subr.bf16.mxu0 0
    %2656 = vmatpush1.bf16.msra.mxu0 0
    %2657 = vmatprep.subr.bf16.mxu0 0
    %2658 = vmatpush1.bf16.msra.mxu0 0
    %2659 = vmatprep.subr.bf16.mxu0 0
    %2660 = vmatpush1.bf16.msra.mxu0 0
    %2661 = vmatprep.subr.bf16.mxu0 0
    %2662 = vmatpush1.bf16.msra.mxu0 0
    %2663 = vmatprep.subr.bf16.mxu0 0
    %2664 = vmatpush1.bf16.msra.mxu0 0
    %2665 = vmatprep.subr.bf16.mxu0 0
    %2666 = vmatpush1.bf16.msra.mxu0 0
    %2667 = vmatprep.mubr.bf16.mxu0 0
    %2668 = vmatmul.mubr.bf16.gmra.mrb[0].mxu0 %v2630
    %v2669 = vpop.f32.mrb[0].mxu0
    %v2670 = vadd.f32 0.0, %v2669
    %v2671 = vpop.f32.mrb[0].mxu0
    %v2672 = vpop.f32.mrb[0].mxu0
    %v2673 = vpop.f32.mrb[0].mxu0
    %2674 = vdwg.mxu0
    %v2676 = vsel %vm2067, %v2253, 0
    %v2679 = vsel %vm2263, %v1312, 0
    %2681 = vmatprep.subr.bf16.mxu0 0
    %2682 = vmatpush1.bf16.msra.mxu0 %v2679
    %2683 = vmatprep.subr.bf16.mxu0 0
    %2684 = vmatpush1.bf16.msra.mxu0 0
    %2685 = vmatprep.subr.bf16.mxu0 0
    %2686 = vmatpush1.bf16.msra.mxu0 0
    %2687 = vmatprep.subr.bf16.mxu0 0
    %2688 = vmatpush1.bf16.msra.mxu0 0
    %2689 = vmatprep.subr.bf16.mxu0 0
    %2690 = vmatpush1.bf16.msra.mxu0 0
    %2691 = vmatprep.subr.bf16.mxu0 0
    %2692 = vmatpush1.bf16.msra.mxu0 0
    %2693 = vmatprep.subr.bf16.mxu0 0
    %2694 = vmatpush1.bf16.msra.mxu0 0
    %2695 = vmatprep.subr.bf16.mxu0 0
    %2696 = vmatpush1.bf16.msra.mxu0 0
    %2697 = vmatprep.subr.bf16.mxu0 0
    %2698 = vmatpush1.bf16.msra.mxu0 0
    %2699 = vmatprep.subr.bf16.mxu0 0
    %2700 = vmatpush1.bf16.msra.mxu0 0
    %2701 = vmatprep.subr.bf16.mxu0 0
    %2702 = vmatpush1.bf16.msra.mxu0 0
    %2703 = vmatprep.subr.bf16.mxu0 0
    %2704 = vmatpush1.bf16.msra.mxu0 0
    %2705 = vmatprep.subr.bf16.mxu0 0
    %2706 = vmatpush1.bf16.msra.mxu0 0
    %2707 = vmatprep.subr.bf16.mxu0 0
    %2708 = vmatpush1.bf16.msra.mxu0 0
    %2709 = vmatprep.subr.bf16.mxu0 0
    %2710 = vmatpush1.bf16.msra.mxu0 0
    %2711 = vmatprep.subr.bf16.mxu0 0
    %2712 = vmatpush1.bf16.msra.mxu0 0
    %2713 = vmatprep.mubr.bf16.mxu0 0
    %2714 = vmatmul.mubr.bf16.gmra.mrb[0].mxu0 %v2676
    %v2715 = vpop.f32.mrb[0].mxu0
    %v2716 = vadd.f32 0.0, %v2715
    %v2717 = vpop.f32.mrb[0].mxu0
    %v2718 = vpop.f32.mrb[0].mxu0
    %v2719 = vpop.f32.mrb[0].mxu0
    %2720 = vdwg.mxu0
    %v2722 = vsel %vm2067, %v2254, 0
    %v2725 = vsel %vm2263, %v1315, 0
    %2727 = vmatprep.subr.bf16.mxu0 0
    %2728 = vmatpush1.bf16.msra.mxu0 %v2725
    %2729 = vmatprep.subr.bf16.mxu0 0
    %2730 = vmatpush1.bf16.msra.mxu0 0
    %2731 = vmatprep.subr.bf16.mxu0 0
    %2732 = vmatpush1.bf16.msra.mxu0 0
    %2733 = vmatprep.subr.bf16.mxu0 0
    %2734 = vmatpush1.bf16.msra.mxu0 0
    %2735 = vmatprep.subr.bf16.mxu0 0
    %2736 = vmatpush1.bf16.msra.mxu0 0
    %2737 = vmatprep.subr.bf16.mxu0 0
    %2738 = vmatpush1.bf16.msra.mxu0 0
    %2739 = vmatprep.subr.bf16.mxu0 0
    %2740 = vmatpush1.bf16.msra.mxu0 0
    %2741 = vmatprep.subr.bf16.mxu0 0
    %2742 = vmatpush1.bf16.msra.mxu0 0
    %2743 = vmatprep.subr.bf16.mxu0 0
    %2744 = vmatpush1.bf16.msra.mxu0 0
    %2745 = vmatprep.subr.bf16.mxu0 0
    %2746 = vmatpush1.bf16.msra.mxu0 0
    %2747 = vmatprep.subr.bf16.mxu0 0
    %2748 = vmatpush1.bf16.msra.mxu0 0
    %2749 = vmatprep.subr.bf16.mxu0 0
    %2750 = vmatpush1.bf16.msra.mxu0 0
    %2751 = vmatprep.subr.bf16.mxu0 0
    %2752 = vmatpush1.bf16.msra.mxu0 0
    %2753 = vmatprep.subr.bf16.mxu0 0
    %2754 = vmatpush1.bf16.msra.mxu0 0
    %2755 = vmatprep.subr.bf16.mxu0 0
    %2756 = vmatpush1.bf16.msra.mxu0 0
    %2757 = vmatprep.subr.bf16.mxu0 0
    %2758 = vmatpush1.bf16.msra.mxu0 0
    %2759 = vmatprep.mubr.bf16.mxu0 0
    %2760 = vmatmul.mubr.bf16.gmra.mrb[0].mxu0 %v2722
    %v2761 = vpop.f32.mrb[0].mxu0
    %v2762 = vadd.f32 0.0, %v2761
    %v2763 = vpop.f32.mrb[0].mxu0
    %v2764 = vpop.f32.mrb[0].mxu0
    %v2765 = vpop.f32.mrb[0].mxu0
    %2766 = vdwg.mxu0
    %v2768 = vsel %vm2067, %v2255, 0
    %v2771 = vsel %vm2263, %v1318, 0
    %2773 = vmatprep.subr.bf16.mxu0 0
    %2774 = vmatpush1.bf16.msra.mxu0 %v2771
    %2775 = vmatprep.subr.bf16.mxu0 0
    %2776 = vmatpush1.bf16.msra.mxu0 0
    %2777 = vmatprep.subr.bf16.mxu0 0
    %2778 = vmatpush1.bf16.msra.mxu0 0
    %2779 = vmatprep.subr.bf16.mxu0 0
    %2780 = vmatpush1.bf16.msra.mxu0 0
    %2781 = vmatprep.subr.bf16.mxu0 0
    %2782 = vmatpush1.bf16.msra.mxu0 0
    %2783 = vmatprep.subr.bf16.mxu0 0
    %2784 = vmatpush1.bf16.msra.mxu0 0
    %2785 = vmatprep.subr.bf16.mxu0 0
    %2786 = vmatpush1.bf16.msra.mxu0 0
    %2787 = vmatprep.subr.bf16.mxu0 0
    %2788 = vmatpush1.bf16.msra.mxu0 0
    %2789 = vmatprep.subr.bf16.mxu0 0
    %2790 = vmatpush1.bf16.msra.mxu0 0
    %2791 = vmatprep.subr.bf16.mxu0 0
    %2792 = vmatpush1.bf16.msra.mxu0 0
    %2793 = vmatprep.subr.bf16.mxu0 0
    %2794 = vmatpush1.bf16.msra.mxu0 0
    %2795 = vmatprep.subr.bf16.mxu0 0
    %2796 = vmatpush1.bf16.msra.mxu0 0
    %2797 = vmatprep.subr.bf16.mxu0 0
    %2798 = vmatpush1.bf16.msra.mxu0 0
    %2799 = vmatprep.subr.bf16.mxu0 0
    %2800 = vmatpush1.bf16.msra.mxu0 0
    %2801 = vmatprep.subr.bf16.mxu0 0
    %2802 = vmatpush1.bf16.msra.mxu0 0
    %2803 = vmatprep.subr.bf16.mxu0 0
    %2804 = vmatpush1.bf16.msra.mxu0 0
    %2805 = vmatprep.mubr.bf16.mxu0 0
    %2806 = vmatmul.mubr.bf16.gmra.mrb[0].mxu0 %v2768
    %v2807 = vpop.f32.mrb[0].mxu0
    %v2808 = vadd.f32 0.0, %v2807
    %v2809 = vpop.f32.mrb[0].mxu0
    %v2810 = vpop.f32.mrb[0].mxu0
    %v2811 = vpop.f32.mrb[0].mxu0
    %2812 = vdwg.mxu0
    %v2814 = vsel %vm2067, %v2256, 0
    %v2817 = vsel %vm2263, %v1321, 0
    %2819 = vmatprep.subr.bf16.mxu0 0
    %2820 = vmatpush1.bf16.msra.mxu0 %v2817
    %2821 = vmatprep.subr.bf16.mxu0 0
    %2822 = vmatpush1.bf16.msra.mxu0 0
    %2823 = vmatprep.subr.bf16.mxu0 0
    %2824 = vmatpush1.bf16.msra.mxu0 0
    %2825 = vmatprep.subr.bf16.mxu0 0
    %2826 = vmatpush1.bf16.msra.mxu0 0
    %2827 = vmatprep.subr.bf16.mxu0 0
    %2828 = vmatpush1.bf16.msra.mxu0 0
    %2829 = vmatprep.subr.bf16.mxu0 0
    %2830 = vmatpush1.bf16.msra.mxu0 0
    %2831 = vmatprep.subr.bf16.mxu0 0
    %2832 = vmatpush1.bf16.msra.mxu0 0
    %2833 = vmatprep.subr.bf16.mxu0 0
    %2834 = vmatpush1.bf16.msra.mxu0 0
    %2835 = vmatprep.subr.bf16.mxu0 0
    %2836 = vmatpush1.bf16.msra.mxu0 0
    %2837 = vmatprep.subr.bf16.mxu0 0
    %2838 = vmatpush1.bf16.msra.mxu0 0
    %2839 = vmatprep.subr.bf16.mxu0 0
    %2840 = vmatpush1.bf16.msra.mxu0 0
    %2841 = vmatprep.subr.bf16.mxu0 0
    %2842 = vmatpush1.bf16.msra.mxu0 0
    %2843 = vmatprep.subr.bf16.mxu0 0
    %2844 = vmatpush1.bf16.msra.mxu0 0
    %2845 = vmatprep.subr.bf16.mxu0 0
    %2846 = vmatpush1.bf16.msra.mxu0 0
    %2847 = vmatprep.subr.bf16.mxu0 0
    %2848 = vmatpush1.bf16.msra.mxu0 0
    %2849 = vmatprep.subr.bf16.mxu0 0
    %2850 = vmatpush1.bf16.msra.mxu0 0
    %2851 = vmatprep.mubr.bf16.mxu0 0
    %2852 = vmatmul.mubr.bf16.gmra.mrb[0].mxu0 %v2814
    %v2853 = vpop.f32.mrb[0].mxu0
    %v2854 = vadd.f32 0.0, %v2853
    %v2855 = vpop.f32.mrb[0].mxu0
    %v2856 = vpop.f32.mrb[0].mxu0
    %v2857 = vpop.f32.mrb[0].mxu0
    %2858 = vdwg.mxu0
    %v2860 = vsel %vm2067, %v2257, 0
    %v2863 = vsel %vm2263, %v1324, 0
    %2865 = vmatprep.subr.bf16.mxu0 0
    %2866 = vmatpush1.bf16.msra.mxu0 %v2863
    %2867 = vmatprep.subr.bf16.mxu0 0
    %2868 = vmatpush1.bf16.msra.mxu0 0
    %2869 = vmatprep.subr.bf16.mxu0 0
    %2870 = vmatpush1.bf16.msra.mxu0 0
    %2871 = vmatprep.subr.bf16.mxu0 0
    %2872 = vmatpush1.bf16.msra.mxu0 0
    %2873 = vmatprep.subr.bf16.mxu0 0
    %2874 = vmatpush1.bf16.msra.mxu0 0
    %2875 = vmatprep.subr.bf16.mxu0 0
    %2876 = vmatpush1.bf16.msra.mxu0 0
    %2877 = vmatprep.subr.bf16.mxu0 0
    %2878 = vmatpush1.bf16.msra.mxu0 0
    %2879 = vmatprep.subr.bf16.mxu0 0
    %2880 = vmatpush1.bf16.msra.mxu0 0
    %2881 = vmatprep.subr.bf16.mxu0 0
    %2882 = vmatpush1.bf16.msra.mxu0 0
    %2883 = vmatprep.subr.bf16.mxu0 0
    %2884 = vmatpush1.bf16.msra.mxu0 0
    %2885 = vmatprep.subr.bf16.mxu0 0
    %2886 = vmatpush1.bf16.msra.mxu0 0
    %2887 = vmatprep.subr.bf16.mxu0 0
    %2888 = vmatpush1.bf16.msra.mxu0 0
    %2889 = vmatprep.subr.bf16.mxu0 0
    %2890 = vmatpush1.bf16.msra.mxu0 0
    %2891 = vmatprep.subr.bf16.mxu0 0
    %2892 = vmatpush1.bf16.msra.mxu0 0
    %2893 = vmatprep.subr.bf16.mxu0 0
    %2894 = vmatpush1.bf16.msra.mxu0 0
    %2895 = vmatprep.subr.bf16.mxu0 0
    %2896 = vmatpush1.bf16.msra.mxu0 0
    %2897 = vmatprep.mubr.bf16.mxu0 0
    %2898 = vmatmul.mubr.bf16.gmra.mrb[0].mxu0 %v2860
    %v2899 = vpop.f32.mrb[0].mxu0
    %v2900 = vadd.f32 0.0, %v2899
    %v2901 = vpop.f32.mrb[0].mxu0
    %v2902 = vpop.f32.mrb[0].mxu0
    %v2903 = vpop.f32.mrb[0].mxu0
    %2904 = vdwg.mxu0
    %v2906 = vsel %vm2067, %v2258, 0
    %v2909 = vsel %vm2263, %v1327, 0
    %2911 = vmatprep.subr.bf16.mxu0 0
    %2912 = vmatpush1.bf16.msra.mxu0 %v2909
    %2913 = vmatprep.subr.bf16.mxu0 0
    %2914 = vmatpush1.bf16.msra.mxu0 0
    %2915 = vmatprep.subr.bf16.mxu0 0
    %2916 = vmatpush1.bf16.msra.mxu0 0
    %2917 = vmatprep.subr.bf16.mxu0 0
    %2918 = vmatpush1.bf16.msra.mxu0 0
    %2919 = vmatprep.subr.bf16.mxu0 0
    %2920 = vmatpush1.bf16.msra.mxu0 0
    %2921 = vmatprep.subr.bf16.mxu0 0
    %2922 = vmatpush1.bf16.msra.mxu0 0
    %2923 = vmatprep.subr.bf16.mxu0 0
    %2924 = vmatpush1.bf16.msra.mxu0 0
    %2925 = vmatprep.subr.bf16.mxu0 0
    %2926 = vmatpush1.bf16.msra.mxu0 0
    %2927 = vmatprep.subr.bf16.mxu0 0
    %2928 = vmatpush1.bf16.msra.mxu0 0
    %2929 = vmatprep.subr.bf16.mxu0 0
    %2930 = vmatpush1.bf16.msra.mxu0 0
    %2931 = vmatprep.subr.bf16.mxu0 0
    %2932 = vmatpush1.bf16.msra.mxu0 0
    %2933 = vmatprep.subr.bf16.mxu0 0
    %2934 = vmatpush1.bf16.msra.mxu0 0
    %2935 = vmatprep.subr.bf16.mxu0 0
    %2936 = vmatpush1.bf16.msra.mxu0 0
    %2937 = vmatprep.subr.bf16.mxu0 0
    %2938 = vmatpush1.bf16.msra.mxu0 0
    %2939 = vmatprep.subr.bf16.mxu0 0
    %2940 = vmatpush1.bf16.msra.mxu0 0
    %2941 = vmatprep.subr.bf16.mxu0 0
    %2942 = vmatpush1.bf16.msra.mxu0 0
    %2943 = vmatprep.mubr.bf16.mxu0 0
    %2944 = vmatmul.mubr.bf16.gmra.mrb[0].mxu0 %v2906
    %v2945 = vpop.f32.mrb[0].mxu0
    %v2946 = vadd.f32 0.0, %v2945
    %v2947 = vpop.f32.mrb[0].mxu0
    %v2948 = vpop.f32.mrb[0].mxu0
    %v2949 = vpop.f32.mrb[0].mxu0
    %2950 = vdwg.mxu0
    %v2952 = vsel %vm2067, %v2259, 0
    %v2955 = vsel %vm2263, %v1330, 0
    %2957 = vmatprep.subr.bf16.mxu0 0
    %2958 = vmatpush1.bf16.msra.mxu0 %v2955
    %2959 = vmatprep.subr.bf16.mxu0 0
    %2960 = vmatpush1.bf16.msra.mxu0 0
    %2961 = vmatprep.subr.bf16.mxu0 0
    %2962 = vmatpush1.bf16.msra.mxu0 0
    %2963 = vmatprep.subr.bf16.mxu0 0
    %2964 = vmatpush1.bf16.msra.mxu0 0
    %2965 = vmatprep.subr.bf16.mxu0 0
    %2966 = vmatpush1.bf16.msra.mxu0 0
    %2967 = vmatprep.subr.bf16.mxu0 0
    %2968 = vmatpush1.bf16.msra.mxu0 0
    %2969 = vmatprep.subr.bf16.mxu0 0
    %2970 = vmatpush1.bf16.msra.mxu0 0
    %2971 = vmatprep.subr.bf16.mxu0 0
    %2972 = vmatpush1.bf16.msra.mxu0 0
    %2973 = vmatprep.subr.bf16.mxu0 0
    %2974 = vmatpush1.bf16.msra.mxu0 0
    %2975 = vmatprep.subr.bf16.mxu0 0
    %2976 = vmatpush1.bf16.msra.mxu0 0
    %2977 = vmatprep.subr.bf16.mxu0 0
    %2978 = vmatpush1.bf16.msra.mxu0 0
    %2979 = vmatprep.subr.bf16.mxu0 0
    %2980 = vmatpush1.bf16.msra.mxu0 0
    %2981 = vmatprep.subr.bf16.mxu0 0
    %2982 = vmatpush1.bf16.msra.mxu0 0
    %2983 = vmatprep.subr.bf16.mxu0 0
    %2984 = vmatpush1.bf16.msra.mxu0 0
    %2985 = vmatprep.subr.bf16.mxu0 0
    %2986 = vmatpush1.bf16.msra.mxu0 0
    %2987 = vmatprep.subr.bf16.mxu0 0
    %2988 = vmatpush1.bf16.msra.mxu0 0
    %2989 = vmatprep.mubr.bf16.mxu0 0
    %2990 = vmatmul.mubr.bf16.gmra.mrb[0].mxu0 %v2952
    %v2991 = vpop.f32.mrb[0].mxu0
    %v2992 = vadd.f32 0.0, %v2991
    %v2993 = vpop.f32.mrb[0].mxu0
    %v2994 = vpop.f32.mrb[0].mxu0
    %v2995 = vpop.f32.mrb[0].mxu0
    %2996 = vdwg.mxu0
    %v2997 = vpack.c.bf16 %v2302, %v2302
    %v2998 = vpack.c.bf16 %v2348, %v2348
    %v2999 = vpack.c.bf16 %v2394, %v2394
    %v3000 = vpack.c.bf16 %v2440, %v2440
    %v3001 = vpack.c.bf16 %v2486, %v2486
    %v3002 = vpack.c.bf16 %v2532, %v2532
    %v3003 = vpack.c.bf16 %v2578, %v2578
    %v3004 = vpack.c.bf16 %v2624, %v2624
    %v3005 = vpack.c.bf16 %v2670, %v2670
    %v3006 = vpack.c.bf16 %v2716, %v2716
    %v3007 = vpack.c.bf16 %v2762, %v2762
    %v3008 = vpack.c.bf16 %v2808, %v2808
    %v3009 = vpack.c.bf16 %v2854, %v2854
    %v3010 = vpack.c.bf16 %v2900, %v2900
    %v3011 = vpack.c.bf16 %v2946, %v2946
    %v3012 = vpack.c.bf16 %v2992, %v2992
    %v3013 = vcombine.low %v2997, %v3001
    %v3015 = vunpack.c.l.s4 1983009808
    %v3016 = vunpack.c.0.s8 %v3015
    %v3017 = vlaneseq
    %v3018 = vshrl.u32 %v3017, 7
    %v3019 = vsub.s32 %v3016, %v3018
    %v3020 = vrot.slane %v3013, %v3019
    %v3021 = vcombine.low %v2999, %v3003
    %v3023 = vunpack.c.l.s4 1983009808
    %v3024 = vunpack.c.0.s8 %v3023
    %v3025 = vlaneseq
    %v3026 = vshrl.u32 %v3025, 7
    %v3027 = vsub.s32 %v3024, %v3026
    %v3028 = vrot.slane %v3021, %v3027
    %v3029 = vcombine.low %v3020, %v3028
    %v3030 = vcombine.high %v3020, %v3028
    %v3032 = vunpack.c.l.s4 1934713408
    %v3033 = vunpack.c.0.s8 %v3032
    %v3034 = vlaneseq
    %v3035 = vshrl.u32 %v3034, 7
    %v3036 = vsub.s32 %v3033, %v3035
    %v3037 = vrot.slane %v3029, %v3036
    %v3039 = vunpack.c.l.s4 1934713408
    %v3040 = vunpack.c.0.s8 %v3039
    %v3041 = vlaneseq
    %v3042 = vshrl.u32 %v3041, 7
    %v3043 = vsub.s32 %v3040, %v3042
    %v3044 = vrot.slane %v3030, %v3043
    %v3045 = vcombine.high %v3037, 0
    %v3046 = vcombine.high %v3044, 0
    %v3047 = vcombine.low %v2998, %v3002
    %v3049 = vunpack.c.l.s4 1983009808
    %v3050 = vunpack.c.0.s8 %v3049
    %v3051 = vlaneseq
    %v3052 = vshrl.u32 %v3051, 7
    %v3053 = vsub.s32 %v3050, %v3052
    %v3054 = vrot.slane %v3047, %v3053
    %v3055 = vcombine.low %v3000, %v3004
    %v3057 = vunpack.c.l.s4 1983009808
    %v3058 = vunpack.c.0.s8 %v3057
    %v3059 = vlaneseq
    %v3060 = vshrl.u32 %v3059, 7
    %v3061 = vsub.s32 %v3058, %v3060
    %v3062 = vrot.slane %v3055, %v3061
    %v3063 = vcombine.low %v3054, %v3062
    %v3064 = vcombine.high %v3054, %v3062
    %v3066 = vunpack.c.l.s4 1934713408
    %v3067 = vunpack.c.0.s8 %v3066
    %v3068 = vlaneseq
    %v3069 = vshrl.u32 %v3068, 7
    %v3070 = vsub.s32 %v3067, %v3069
    %v3071 = vrot.slane %v3063, %v3070
    %v3073 = vunpack.c.l.s4 1934713408
    %v3074 = vunpack.c.0.s8 %v3073
    %v3075 = vlaneseq
    %v3076 = vshrl.u32 %v3075, 7
    %v3077 = vsub.s32 %v3074, %v3076
    %v3078 = vrot.slane %v3064, %v3077
    %v3079 = vcombine.high %v3071, 0
    %v3080 = vcombine.high %v3078, 0
    %v3081 = vcombine.low %v3005, %v3009
    %v3083 = vunpack.c.l.s4 1983009808
    %v3084 = vunpack.c.0.s8 %v3083
    %v3085 = vlaneseq
    %v3086 = vshrl.u32 %v3085, 7
    %v3087 = vsub.s32 %v3084, %v3086
    %v3088 = vrot.slane %v3081, %v3087
    %v3089 = vcombine.low %v3007, %v3011
    %v3091 = vunpack.c.l.s4 1983009808
    %v3092 = vunpack.c.0.s8 %v3091
    %v3093 = vlaneseq
    %v3094 = vshrl.u32 %v3093, 7
    %v3095 = vsub.s32 %v3092, %v3094
    %v3096 = vrot.slane %v3089, %v3095
    %v3097 = vcombine.low %v3088, %v3096
    %v3098 = vcombine.high %v3088, %v3096
    %v3100 = vunpack.c.l.s4 1934713408
    %v3101 = vunpack.c.0.s8 %v3100
    %v3102 = vlaneseq
    %v3103 = vshrl.u32 %v3102, 7
    %v3104 = vsub.s32 %v3101, %v3103
    %v3105 = vrot.slane %v3097, %v3104
    %v3107 = vunpack.c.l.s4 1934713408
    %v3108 = vunpack.c.0.s8 %v3107
    %v3109 = vlaneseq
    %v3110 = vshrl.u32 %v3109, 7
    %v3111 = vsub.s32 %v3108, %v3110
    %v3112 = vrot.slane %v3098, %v3111
    %v3113 = vcombine.high %v3105, 0
    %v3114 = vcombine.high %v3112, 0
    %v3115 = vcombine.low %v3006, %v3010
    %v3117 = vunpack.c.l.s4 1983009808
    %v3118 = vunpack.c.0.s8 %v3117
    %v3119 = vlaneseq
    %v3120 = vshrl.u32 %v3119, 7
    %v3121 = vsub.s32 %v3118, %v3120
    %v3122 = vrot.slane %v3115, %v3121
    %v3123 = vcombine.low %v3008, %v3012
    %v3125 = vunpack.c.l.s4 1983009808
    %v3126 = vunpack.c.0.s8 %v3125
    %v3127 = vlaneseq
    %v3128 = vshrl.u32 %v3127, 7
    %v3129 = vsub.s32 %v3126, %v3128
    %v3130 = vrot.slane %v3123, %v3129
    %v3131 = vcombine.low %v3122, %v3130
    %v3132 = vcombine.high %v3122, %v3130
    %v3134 = vunpack.c.l.s4 1934713408
    %v3135 = vunpack.c.0.s8 %v3134
    %v3136 = vlaneseq
    %v3137 = vshrl.u32 %v3136, 7
    %v3138 = vsub.s32 %v3135, %v3137
    %v3139 = vrot.slane %v3131, %v3138
    %v3141 = vunpack.c.l.s4 1934713408
    %v3142 = vunpack.c.0.s8 %v3141
    %v3143 = vlaneseq
    %v3144 = vshrl.u32 %v3143, 7
    %v3145 = vsub.s32 %v3142, %v3144
    %v3146 = vrot.slane %v3132, %v3145
    %v3147 = vcombine.high %v3139, 0
    %v3148 = vcombine.high %v3146, 0
    %v3151 = vpack.i.b16 %v3071, %v3037
    %v3153 = vshrl.u32 %v3037, 16
    %v3154 = vshrl.u32 %v3071, 16
    %v3155 = vpack.i.b16 %v3154, %v3153
    %v3159 = vpack.i.b16 %v3079, %v3045
    %v3161 = vshrl.u32 %v3045, 16
    %v3162 = vshrl.u32 %v3079, 16
    %v3163 = vpack.i.b16 %v3162, %v3161
    %v3167 = vpack.i.b16 %v3078, %v3044
    %v3169 = vshrl.u32 %v3044, 16
    %v3170 = vshrl.u32 %v3078, 16
    %v3171 = vpack.i.b16 %v3170, %v3169
    %v3175 = vpack.i.b16 %v3080, %v3046
    %v3177 = vshrl.u32 %v3046, 16
    %v3178 = vshrl.u32 %v3080, 16
    %v3179 = vpack.i.b16 %v3178, %v3177
    %v3183 = vpack.i.b16 %v3139, %v3105
    %v3185 = vshrl.u32 %v3105, 16
    %v3186 = vshrl.u32 %v3139, 16
    %v3187 = vpack.i.b16 %v3186, %v3185
    %v3191 = vpack.i.b16 %v3147, %v3113
    %v3193 = vshrl.u32 %v3113, 16
    %v3194 = vshrl.u32 %v3147, 16
    %v3195 = vpack.i.b16 %v3194, %v3193
    %v3199 = vpack.i.b16 %v3146, %v3112
    %v3201 = vshrl.u32 %v3112, 16
    %v3202 = vshrl.u32 %v3146, 16
    %v3203 = vpack.i.b16 %v3202, %v3201
    %v3207 = vpack.i.b16 %v3148, %v3114
    %v3209 = vshrl.u32 %v3114, 16
    %v3210 = vshrl.u32 %v3148, 16
    %v3211 = vpack.i.b16 %v3210, %v3209
    %v3213 = vcombine.low %v3151, %v3167
    %v3215 = vunpack.c.l.s4 1983009808
    %v3216 = vunpack.c.0.s8 %v3215
    %v3217 = vlaneseq
    %v3218 = vshrl.u32 %v3217, 7
    %v3219 = vsub.s32 %v3216, %v3218
    %v3220 = vrot.slane %v3213, %v3219
    %v3221 = vcombine.low %v3159, %v3175
    %v3223 = vunpack.c.l.s4 1983009808
    %v3224 = vunpack.c.0.s8 %v3223
    %v3225 = vlaneseq
    %v3226 = vshrl.u32 %v3225, 7
    %v3227 = vsub.s32 %v3224, %v3226
    %v3228 = vrot.slane %v3221, %v3227
    %v3229 = vcombine.low %v3183, %v3199
    %v3231 = vunpack.c.l.s4 1983009808
    %v3232 = vunpack.c.0.s8 %v3231
    %v3233 = vlaneseq
    %v3234 = vshrl.u32 %v3233, 7
    %v3235 = vsub.s32 %v3232, %v3234
    %v3236 = vrot.slane %v3229, %v3235
    %v3237 = vcombine.low %v3191, %v3207
    %v3239 = vunpack.c.l.s4 1983009808
    %v3240 = vunpack.c.0.s8 %v3239
    %v3241 = vlaneseq
    %v3242 = vshrl.u32 %v3241, 7
    %v3243 = vsub.s32 %v3240, %v3242
    %v3244 = vrot.slane %v3237, %v3243
    %v3245 = vcombine.low %v3220, %v3228
    %v3246 = vcombine.high %v3220, %v3228
    %v3248 = vunpack.c.l.s4 1934713408
    %v3249 = vunpack.c.0.s8 %v3248
    %v3250 = vlaneseq
    %v3251 = vshrl.u32 %v3250, 7
    %v3252 = vsub.s32 %v3249, %v3251
    %v3253 = vrot.slane %v3245, %v3252
    %v3255 = vunpack.c.l.s4 1934713408
    %v3256 = vunpack.c.0.s8 %v3255
    %v3257 = vlaneseq
    %v3258 = vshrl.u32 %v3257, 7
    %v3259 = vsub.s32 %v3256, %v3258
    %v3260 = vrot.slane %v3246, %v3259
    %v3261 = vcombine.low %v3236, %v3244
    %v3262 = vcombine.high %v3236, %v3244
    %v3264 = vunpack.c.l.s4 1934713408
    %v3265 = vunpack.c.0.s8 %v3264
    %v3266 = vlaneseq
    %v3267 = vshrl.u32 %v3266, 7
    %v3268 = vsub.s32 %v3265, %v3267
    %v3269 = vrot.slane %v3261, %v3268
    %v3271 = vunpack.c.l.s4 1934713408
    %v3272 = vunpack.c.0.s8 %v3271
    %v3273 = vlaneseq
    %v3274 = vshrl.u32 %v3273, 7
    %v3275 = vsub.s32 %v3272, %v3274
    %v3276 = vrot.slane %v3262, %v3275
    %v3277 = vcombine.low %v3253, %v3269
    %v3278 = vcombine.high %v3253, %v3269
    %v3279 = vcombine.low %v3260, %v3276
    %v3280 = vcombine.high %v3260, %v3276
    %v3281 = vcombine.low %v3155, %v3171
    %v3283 = vunpack.c.l.s4 1983009808
    %v3284 = vunpack.c.0.s8 %v3283
    %v3285 = vlaneseq
    %v3286 = vshrl.u32 %v3285, 7
    %v3287 = vsub.s32 %v3284, %v3286
    %v3288 = vrot.slane %v3281, %v3287
    %v3289 = vcombine.low %v3163, %v3179
    %v3291 = vunpack.c.l.s4 1983009808
    %v3292 = vunpack.c.0.s8 %v3291
    %v3293 = vlaneseq
    %v3294 = vshrl.u32 %v3293, 7
    %v3295 = vsub.s32 %v3292, %v3294
    %v3296 = vrot.slane %v3289, %v3295
    %v3297 = vcombine.low %v3187, %v3203
    %v3299 = vunpack.c.l.s4 1983009808
    %v3300 = vunpack.c.0.s8 %v3299
    %v3301 = vlaneseq
    %v3302 = vshrl.u32 %v3301, 7
    %v3303 = vsub.s32 %v3300, %v3302
    %v3304 = vrot.slane %v3297, %v3303
    %v3305 = vcombine.low %v3195, %v3211
    %v3307 = vunpack.c.l.s4 1983009808
    %v3308 = vunpack.c.0.s8 %v3307
    %v3309 = vlaneseq
    %v3310 = vshrl.u32 %v3309, 7
    %v3311 = vsub.s32 %v3308, %v3310
    %v3312 = vrot.slane %v3305, %v3311
    %v3313 = vcombine.low %v3288, %v3296
    %v3314 = vcombine.high %v3288, %v3296
    %v3316 = vunpack.c.l.s4 1934713408
    %v3317 = vunpack.c.0.s8 %v3316
    %v3318 = vlaneseq
    %v3319 = vshrl.u32 %v3318, 7
    %v3320 = vsub.s32 %v3317, %v3319
    %v3321 = vrot.slane %v3313, %v3320
    %v3323 = vunpack.c.l.s4 1934713408
    %v3324 = vunpack.c.0.s8 %v3323
    %v3325 = vlaneseq
    %v3326 = vshrl.u32 %v3325, 7
    %v3327 = vsub.s32 %v3324, %v3326
    %v3328 = vrot.slane %v3314, %v3327
    %v3329 = vcombine.low %v3304, %v3312
    %v3330 = vcombine.high %v3304, %v3312
    %v3332 = vunpack.c.l.s4 1934713408
    %v3333 = vunpack.c.0.s8 %v3332
    %v3334 = vlaneseq
    %v3335 = vshrl.u32 %v3334, 7
    %v3336 = vsub.s32 %v3333, %v3335
    %v3337 = vrot.slane %v3329, %v3336
    %v3339 = vunpack.c.l.s4 1934713408
    %v3340 = vunpack.c.0.s8 %v3339
    %v3341 = vlaneseq
    %v3342 = vshrl.u32 %v3341, 7
    %v3343 = vsub.s32 %v3340, %v3342
    %v3344 = vrot.slane %v3330, %v3343
    %v3345 = vcombine.low %v3321, %v3337
    %v3346 = vcombine.high %v3321, %v3337
    %v3347 = vcombine.low %v3328, %v3344
    %v3348 = vcombine.high %v3328, %v3344
    %v3351 = vpack.i.b16 %v3345, %v3277
    %v3352 = vshrl.u32 %v3277, 16
    %v3353 = vshrl.u32 %v3345, 16
    %v3354 = vpack.i.b16 %v3353, %v3352
    %v3357 = vpack.i.b16 %v3346, %v3278
    %v3358 = vshrl.u32 %v3278, 16
    %v3359 = vshrl.u32 %v3346, 16
    %v3360 = vpack.i.b16 %v3359, %v3358
    %v3363 = vpack.i.b16 %v3347, %v3279
    %v3364 = vshrl.u32 %v3279, 16
    %v3365 = vshrl.u32 %v3347, 16
    %v3366 = vpack.i.b16 %v3365, %v3364
    %v3369 = vpack.i.b16 %v3348, %v3280
    %v3370 = vshrl.u32 %v3280, 16
    %v3371 = vshrl.u32 %v3348, 16
    %v3372 = vpack.i.b16 %v3371, %v3370
    %3373 = vrot.lane.b32.xlu0 %v3354, 32
    %v3374 = vpop.permute.xlu0 %3373
    %3375 = vrot.lane.b32.xlu0 %v3357, 64
    %v3376 = vpop.permute.xlu0 %3375
    %3377 = vrot.lane.b32.xlu0 %v3360, 96
    %v3378 = vpop.permute.xlu0 %3377
    %3379 = vrot.lane.b32.xlu0 %v3366, 32
    %v3380 = vpop.permute.xlu0 %3379
    %3381 = vrot.lane.b32.xlu0 %v3369, 64
    %v3382 = vpop.permute.xlu0 %3381
    %3383 = vrot.lane.b32.xlu0 %v3372, 96
    %v3384 = vpop.permute.xlu0 %3383
    %v3387 = vsel %vm94, %v3351, %v3374
    %vm3388 = vcmask 523264
    %v3390 = vsel %vm3388, %v3387, %v3376
    %vm3391 = vcmask 785408
    %v3393 = vsel %vm3391, %v3390, %v3378
    %v3397 = vsel %vm94, %v3363, %v3380
    %v3399 = vsel %vm3388, %v3397, %v3382
    %v3401 = vsel %vm3391, %v3399, %v3384
    %v3403 = vld [vmem:[%s2] sm:$0xf]
    %v3404 = vld [vmem:[%s2 + $0x4] sm:$0xf]
    %v3405 = vld [vmem:[%s2 + $0x8] sm:$0xf]
    %v3406 = vld [vmem:[%s2 + $0xc] sm:$0xf]
    %v3407 = vld [vmem:[%s2 + $0x10] sm:$0xf]
    %v3408 = vld [vmem:[%s2 + $0x14] sm:$0xf]
    %v3409 = vld [vmem:[%s2 + $0x18] sm:$0xf]
    %v3410 = vld [vmem:[%s2 + $0x1c] sm:$0xf]
    %v3411 = vld [vmem:[%s2 + $0x20] sm:$0xf]
    %v3412 = vld [vmem:[%s2 + $0x24] sm:$0xf]
    %v3413 = vld [vmem:[%s2 + $0x28] sm:$0xf]
    %v3414 = vld [vmem:[%s2 + $0x2c] sm:$0xf]
    %v3415 = vld [vmem:[%s2 + $0x30] sm:$0xf]
    %v3416 = vld [vmem:[%s2 + $0x34] sm:$0xf]
    %v3417 = vld [vmem:[%s2 + $0x38] sm:$0xf]
    %v3418 = vld [vmem:[%s2 + $0x3c] sm:$0xf]
    %v3419 = vld [vmem:[%s2 + $0x40] sm:$0xf]
    %v3420 = vld [vmem:[%s2 + $0x44] sm:$0xf]
    %v3421 = vld [vmem:[%s2 + $0x48] sm:$0xf]
    %v3422 = vld [vmem:[%s2 + $0x4c] sm:$0xf]
    %v3423 = vld [vmem:[%s2 + $0x50] sm:$0xf]
    %v3424 = vld [vmem:[%s2 + $0x54] sm:$0xf]
    %v3425 = vld [vmem:[%s2 + $0x58] sm:$0xf]
    %v3426 = vld [vmem:[%s2 + $0x5c] sm:$0xf]
    %v3427 = vld [vmem:[%s2 + $0x60] sm:$0xf]
    %v3428 = vld [vmem:[%s2 + $0x64] sm:$0xf]
    %v3429 = vld [vmem:[%s2 + $0x68] sm:$0xf]
    %v3430 = vld [vmem:[%s2 + $0x6c] sm:$0xf]
    %v3431 = vld [vmem:[%s2 + $0x70] sm:$0xf]
    %v3432 = vld [vmem:[%s2 + $0x74] sm:$0xf]
    %v3433 = vld [vmem:[%s2 + $0x78] sm:$0xf]
    %v3434 = vld [vmem:[%s2 + $0x7c] sm:$0xf]
    %v3435 = vld [vmem:[%s3] sm:$0x1]
    %v3437 = vlaneseq
    %v3438 = vshrl.u32 %v3437, 7
    %v3439 = vsub.s32 0, %v3438
    %v3440 = vrot.slane %v3435, %v3439
    %v3474 = vunpack.c.l.b16 %v3403
    %v3475 = vunpack.c.l.b16 %v3404
    %v3476 = vunpack.c.l.b16 %v3405
    %v3477 = vunpack.c.l.b16 %v3406
    %v3478 = vunpack.c.l.b16 %v3407
    %v3479 = vunpack.c.l.b16 %v3408
    %v3480 = vunpack.c.l.b16 %v3409
    %v3481 = vunpack.c.l.b16 %v3410
    %v3482 = vunpack.c.l.b16 %v3411
    %v3483 = vunpack.c.l.b16 %v3412
    %v3484 = vunpack.c.l.b16 %v3413
    %v3485 = vunpack.c.l.b16 %v3414
    %v3486 = vunpack.c.l.b16 %v3415
    %v3487 = vunpack.c.l.b16 %v3416
    %v3488 = vunpack.c.l.b16 %v3417
    %v3489 = vunpack.c.l.b16 %v3418
    %v3490 = vunpack.c.l.b16 %v3419
    %v3491 = vunpack.c.l.b16 %v3420
    %v3492 = vunpack.c.l.b16 %v3421
    %v3493 = vunpack.c.l.b16 %v3422
    %v3494 = vunpack.c.l.b16 %v3423
    %v3495 = vunpack.c.l.b16 %v3424
    %v3496 = vunpack.c.l.b16 %v3425
    %v3497 = vunpack.c.l.b16 %v3426
    %v3498 = vunpack.c.l.b16 %v3427
    %v3499 = vunpack.c.l.b16 %v3428
    %v3500 = vunpack.c.l.b16 %v3429
    %v3501 = vunpack.c.l.b16 %v3430
    %v3502 = vunpack.c.l.b16 %v3431
    %v3503 = vunpack.c.l.b16 %v3432
    %v3504 = vunpack.c.l.b16 %v3433
    %v3505 = vunpack.c.l.b16 %v3434
    %v3506 = vpack.c.b16 %v3475, %v3474
    %v3507 = vpack.c.b16 %v3477, %v3476
    %v3508 = vpack.c.b16 %v3479, %v3478
    %v3509 = vpack.c.b16 %v3481, %v3480
    %v3510 = vpack.c.b16 %v3483, %v3482
    %v3511 = vpack.c.b16 %v3485, %v3484
    %v3512 = vpack.c.b16 %v3487, %v3486
    %v3513 = vpack.c.b16 %v3489, %v3488
    %v3514 = vpack.c.b16 %v3491, %v3490
    %v3515 = vpack.c.b16 %v3493, %v3492
    %v3516 = vpack.c.b16 %v3495, %v3494
    %v3517 = vpack.c.b16 %v3497, %v3496
    %v3518 = vpack.c.b16 %v3499, %v3498
    %v3519 = vpack.c.b16 %v3501, %v3500
    %v3520 = vpack.c.b16 %v3503, %v3502
    %v3521 = vpack.c.b16 %v3505, %v3504
    %3538 = vmatprep.subr.bf16.mxu0 0
    %3539 = vmatpush1.bf16.msra.mxu0 %v3506
    %3540 = vmatprep.subr.bf16.mxu0 0
    %3541 = vmatpush1.bf16.msra.mxu0 %v3507
    %3542 = vmatprep.subr.bf16.mxu0 0
    %3543 = vmatpush1.bf16.msra.mxu0 %v3508
    %3544 = vmatprep.subr.bf16.mxu0 0
    %3545 = vmatpush1.bf16.msra.mxu0 %v3509
    %3546 = vmatprep.subr.bf16.mxu0 0
    %3547 = vmatpush1.bf16.msra.mxu0 %v3510
    %3548 = vmatprep.subr.bf16.mxu0 0
    %3549 = vmatpush1.bf16.msra.mxu0 %v3511
    %3550 = vmatprep.subr.bf16.mxu0 0
    %3551 = vmatpush1.bf16.msra.mxu0 %v3512
    %3552 = vmatprep.subr.bf16.mxu0 0
    %3553 = vmatpush1.bf16.msra.mxu0 %v3513
    %3554 = vmatprep.subr.bf16.mxu0 0
    %3555 = vmatpush1.bf16.msra.mxu0 %v3514
    %3556 = vmatprep.subr.bf16.mxu0 0
    %3557 = vmatpush1.bf16.msra.mxu0 %v3515
    %3558 = vmatprep.subr.bf16.mxu0 0
    %3559 = vmatpush1.bf16.msra.mxu0 %v3516
    %3560 = vmatprep.subr.bf16.mxu0 0
    %3561 = vmatpush1.bf16.msra.mxu0 %v3517
    %3562 = vmatprep.subr.bf16.mxu0 0
    %3563 = vmatpush1.bf16.msra.mxu0 %v3518
    %3564 = vmatprep.subr.bf16.mxu0 0
    %3565 = vmatpush1.bf16.msra.mxu0 %v3519
    %3566 = vmatprep.subr.bf16.mxu0 0
    %3567 = vmatpush1.bf16.msra.mxu0 %v3520
    %3568 = vmatprep.subr.bf16.mxu0 0
    %3569 = vmatpush1.bf16.msra.mxu0 %v3521
    %3570 = vmatprep.mubr.bf16.mxu0 %v3401
    %3571 = vmatmul.mubr.bf16.gmra.mrb[0].mxu0 %v3393
    %v3572 = vpop.f32.mrb[0].mxu0
    %v3573 = vadd.f32 %v3440, %v3572
    %v3574 = vpop.f32.mrb[0].mxu0
    %v3575 = vpop.f32.mrb[0].mxu0
    %v3576 = vadd.f32 %v3440, %v3575
    %v3577 = vpop.f32.mrb[0].mxu0
    %3578 = vdwg.mxu0
    %3579 = vst.msk [vmem:[#allocation2] sm:$0xff] %vm94, %v3573
    %3580 = vst.msk [vmem:[#allocation2 + $0x8] sm:$0xff] %vm94, %v3576
    // Predicated region
    $region18: #{tpu_custom_call.1} parent=1 // pred_check
      _
    $region19: #{tpu_custom_call.1} parent=1 // pred_check_branch
      %3582 = sbr.rel (0) target = $region21
    $region20: #{tpu_custom_call.1} parent=1 // pred_region
      %s3584 = ssub.s32 256, 256
      %3585 = vsyncadd [#allocation3], %s3584
      %s3586 = sshll.u32 [#allocation2], 4
      %s3587 = int_to_ptr.vmem [resolvable:$true] %s3586
      %3592 = dma.vmem_to_hbm [thread:$0]  %s3587, 256, %s4, [#allocation3], 128, 128, 8
    $region21: #{tpu_custom_call.1} parent=1 // pred_fallthru
      _
    // Predicated region
    $region22: #{tpu_custom_call.1} parent=1 // pred_check
      _
    $region23: #{tpu_custom_call.1} parent=1 // pred_check_branch
      %3594 = sbr.rel (0) target = $region25
    $region24: #{tpu_custom_call.1} parent=1 // pred_region
      %3595 = dma.done [#allocation3], 256
    $region25: #{tpu_custom_call.1} parent=1 // pred_fallthru
      _
    %3596 = vsyncpa [#allocation3], 1

</llo_original>
